<compile_context>
chip_gen: v7x
topology: tpu7x:2x2x1
jax: 0.10.0
libtpu: 0.0.40
codegen_flags: <defaults>
</compile_context>

<pallas_src>
import functools

import jax
import jax.numpy as jnp
from jax.experimental import pallas as pl
from jax.experimental.pallas import tpu as pltpu

NEG_INF = float(jnp.finfo(jnp.float32).min)


@functools.lru_cache(maxsize=None)
def _vmem_limit_bytes():
    """Generation-aware VMEM budget (leave headroom on v7x's 64 MiB cores)."""
    cap = 128 * 1024 * 1024
    try:
        cap = int(pltpu.get_tpu_info().vmem_capacity_bytes)
    except Exception:
        pass
    return min(64 * 1024 * 1024, (cap * 3) // 4)


# ----------------------------- Pallas kernels ------------------------------

def _linear_kernel(*refs, nk, has_norm, has_res, activation, norm_eps, k_true):
    """Fused (RMSNorm?) -> matmul -> (+bias) -> (relu?) -> (+residual?)."""
    it = iter(refs)
    x_ref = next(it)                         # (bm, bk)  bf16 activations
    w_ref = next(it)                         # (bk, bn)  bf16 weights
    b_ref = next(it)                         # (1, bn)   f32 bias
    g_ref = next(it) if has_norm else None   # (1, bk)   f32 RMSNorm weight
    r_ref = next(it) if has_res else None    # (bm, bn)  bf16 residual
    o_ref = next(it)                         # (bm, bn)  bf16 output
    acc_ref = next(it)                       # (bm, bn)  f32 scratch accumulator
    xn_ref = next(it) if has_norm else None  # (bm, bk)  bf16 normed-x cache

    @pl.when(pl.program_id(2) == 0)
    def _init():
        acc_ref[...] = jnp.zeros_like(acc_ref)

    if has_norm:
        # Full K lives in one block (enforced by the wrapper).  Compute the
        # RMSNorm once per row-tile (j == 0; j is an "arbitrary" axis so it is
        # not split across cores) and reuse the cached bf16 rows for all
        # N-tiles instead of re-normalizing per (i, j) program.
        @pl.when(pl.program_id(1) == 0)
        def _norm():
            xf = x_ref[...].astype(jnp.float32)
            var = jnp.sum(xf * xf, axis=-1, keepdims=True) * (1.0 / k_true)
            xn_ref[...] = (xf * jax.lax.rsqrt(var + norm_eps)
                           * g_ref[...].astype(jnp.float32)
                           ).astype(jnp.bfloat16)
        x = xn_ref[...]
    else:
        x = x_ref[...].astype(jnp.bfloat16)

    acc_ref[...] += jnp.dot(x, w_ref[...], preferred_element_type=jnp.float32)

    @pl.when(pl.program_id(2) == nk - 1)
    def _finalize():
        out = acc_ref[...] + b_ref[...].astype(jnp.float32)
        if activation == "relu":
            out = jnp.maximum(out, 0.0)
        if has_res:
            out = out + r_ref[...].astype(jnp.float32)
        o_ref[...] = out.astype(o_ref.dtype)


def _mha_kernel(km_ref, q_ref, k_ref, v_ref, o_ref, m_scr, l_scr, acc_scr,
                *, scale, causal, block_q, block_k):
    """Flash-style multi-head attention, heads batched into one MXU dot."""
    kv_i = pl.program_id(2)

    @pl.when(kv_i == 0)
    def _init():
        m_scr[...] = jnp.full_like(m_scr, -jnp.inf)
        l_scr[...] = jnp.zeros_like(l_scr)
        acc_scr[...] = jnp.zeros_like(acc_scr)

    q = q_ref[0]                                  # (H, bq, dh) bf16
    k = k_ref[0]                                  # (H, bk, dh) bf16
    v = v_ref[0]                                  # (H, bk, dh) bf16

    s = jnp.einsum("hqd,hkd->hqk", q, k,
                   preferred_element_type=jnp.float32) * scale   # (H, bq, bk)

    # Additive mask built in-kernel: key padding (+ causal), no HBM mask tensor.
    add = (1.0 - km_ref[0].astype(jnp.float32)) * NEG_INF        # (1, bk)
    mask = add[None]                                             # (1, 1, bk)
    if causal:
        qpos = pl.program_id(1) * block_q + jax.lax.broadcasted_iota(
            jnp.int32, (block_q, block_k), 0)
        kpos = kv_i * block_k + jax.lax.broadcasted_iota(
            jnp.int32, (block_q, block_k), 1)
        mask = mask + jnp.where(kpos <= qpos, 0.0, NEG_INF)[None]
    # clamp so pad+causal (2*finfo.min -> -inf) cannot NaN the softmax
    s = jnp.maximum(s + mask, NEG_INF)

    m_prev = m_scr[...]
    m_new = jnp.maximum(m_prev, jnp.max(s, axis=-1, keepdims=True))
    alpha = jnp.exp(m_prev - m_new)
    p = jnp.exp(s - m_new)
    l_scr[...] = alpha * l_scr[...] + jnp.sum(p, axis=-1, keepdims=True)
    acc_scr[...] = alpha * acc_scr[...] + jnp.einsum(
        "hqk,hkd->hqd", p.astype(v.dtype), v,
        preferred_element_type=jnp.float32)
    m_scr[...] = m_new

    @pl.when(kv_i == pl.num_programs(2) - 1)
    def _finalize():
        o_ref[0] = (acc_scr[...] *
                    pl.reciprocal(l_scr[...], approx=True)).astype(o_ref.dtype)


def _rmsnorm_kernel(x_ref, g_ref, o_ref, *, eps, d_true):
    x = x_ref[...].astype(jnp.float32)
    var = jnp.sum(x * x, axis=-1, keepdims=True) * (1.0 / d_true)
    o_ref[...] = (x * jax.lax.rsqrt(var + eps)
                  * g_ref[...].astype(jnp.float32)).astype(o_ref.dtype)


# ----------------------------- kernel wrappers ------------------------------

def fused_linear(x, w, b, *, norm_weight=None, activation=None, residual=None,
                 norm_eps=1e-6, out_dtype=jnp.bfloat16, tm=256, tn=256, tk=512):
    """y = act(rmsnorm?(x) @ w + b) + residual?  with tiled MXU matmul."""
    m, k = x.shape
    n = w.shape[1]
    has_norm = norm_weight is not None
    has_res = residual is not None

    bm = m if m <= tm else tm
    bn = n if n <= tn else tn
    if has_norm:
        # RMSNorm needs the full row -> single K block.
        # TODO(synk): fall back to a standalone rmsnorm pass + K-tiled matmul
        # when d_model is too large for a single-K block in VMEM.
        bk, kp = k, k
    else:
        bk = k if k <= tk else tk
        kp = k if k <= tk else k + ((-k) % tk)
    mp = m if m <= tm else m + ((-m) % tm)
    np_ = n if n <= tn else n + ((-n) % tn)

    xp = x
    if (mp, kp) != (m, k):
        xp = jnp.pad(xp, ((0, mp - m), (0, kp - k)))
    wp = w if w.dtype == jnp.bfloat16 else w.astype(jnp.bfloat16)
    if (kp, np_) != (k, n):
        # TODO(synk): pre-pad weights once at init when shapes need padding.
        wp = jnp.pad(wp, ((0, kp - k), (0, np_ - n)))
    bp = b if b.ndim == 2 else b.reshape(1, n)
    bp = bp.astype(jnp.float32)
    if np_ != n:
        bp = jnp.pad(bp, ((0, 0), (0, np_ - n)))

    gm, gn, gk = mp // bm, np_ // bn, kp // bk

    in_specs = [
        pl.BlockSpec((bm, bk), lambda i, j, kk: (i, kk)),
        pl.BlockSpec((bk, bn), lambda i, j, kk: (kk, j)),
        pl.BlockSpec((1, bn), lambda i, j, kk: (0, j)),
    ]
    args = [xp, wp, bp]
    if has_norm:
        g = norm_weight.astype(jnp.float32)
        if g.ndim == 1:
            g = g.reshape(1, k)
        in_specs.append(pl.BlockSpec((1, bk), lambda i, j, kk: (0, kk)))
        args.append(g)
    if has_res:
        r = residual
        if (mp, np_) != (m, n):
            r = jnp.pad(r, ((0, mp - m), (0, np_ - n)))
        in_specs.append(pl.BlockSpec((bm, bn), lambda i, j, kk: (i, j)))
        args.append(r)

    scratch = [pltpu.VMEM((bm, bn), jnp.float32)]
    if has_norm:
        scratch.append(pltpu.VMEM((bm, bk), jnp.bfloat16))

    out = pl.pallas_call(
        functools.partial(_linear_kernel, nk=gk, has_norm=has_norm,
                          has_res=has_res, activation=activation,
                          norm_eps=norm_eps, k_true=k),
        out_shape=jax.ShapeDtypeStruct((mp, np_), out_dtype),
        grid=(gm, gn, gk),
        in_specs=in_specs,
        out_specs=pl.BlockSpec((bm, bn), lambda i, j, kk: (i, j)),
        scratch_shapes=scratch,
        compiler_params=pltpu.CompilerParams(
            dimension_semantics=("parallel",
                                 "arbitrary" if has_norm else "parallel",
                                 "arbitrary"),
            vmem_limit_bytes=_vmem_limit_bytes()),
    )(*args)

    if (mp, np_) != (m, n):
        out = out[:m, :n]
    return out


def mha(q, k, v, key_mask, *, scale, causal, out_dtype=jnp.bfloat16,
        tq_max=256, tk_max=256):
    """Flash-style MHA.  q: (B,H,Tq,dh); k/v: (B,H,Tk,dh); key_mask: (B,Tk)."""
    b, h, tql, dh = q.shape
    tkl = k.shape[2]
    bq = tql if tql <= tq_max else tq_max
    bk = tkl if tkl <= tk_max else tk_max
    tq_p = tql if tql <= tq_max else tql + ((-tql) % tq_max)
    tk_p = tkl if tkl <= tk_max else tkl + ((-tkl) % tk_max)
    if tq_p != tql:
        q = jnp.pad(q, ((0, 0), (0, 0), (0, tq_p - tql), (0, 0)))
    if tk_p != tkl:
        k = jnp.pad(k, ((0, 0), (0, 0), (0, tk_p - tkl), (0, 0)))
        v = jnp.pad(v, ((0, 0), (0, 0), (0, tk_p - tkl), (0, 0)))
    km = key_mask.astype(jnp.float32).reshape(b, 1, tkl)
    if tk_p != tkl:
        km = jnp.pad(km, ((0, 0), (0, 0), (0, tk_p - tkl)))  # pad keys masked out

    out = pl.pallas_call(
        functools.partial(_mha_kernel, scale=scale, causal=causal,
                          block_q=bq, block_k=bk),
        out_shape=jax.ShapeDtypeStruct((b, h, tq_p, dh), out_dtype),
        grid=(b, tq_p // bq, tk_p // bk),
        in_specs=[
            pl.BlockSpec((1, 1, bk), lambda bi, qi, ki: (bi, 0, ki)),
            pl.BlockSpec((1, h, bq, dh), lambda bi, qi, ki: (bi, 0, qi, 0)),
            pl.BlockSpec((1, h, bk, dh), lambda bi, qi, ki: (bi, 0, ki, 0)),
            pl.BlockSpec((1, h, bk, dh), lambda bi, qi, ki: (bi, 0, ki, 0)),
        ],
        out_specs=pl.BlockSpec((1, h, bq, dh), lambda bi, qi, ki: (bi, 0, qi, 0)),
        scratch_shapes=[pltpu.VMEM((h, bq, 1), jnp.float32),
                        pltpu.VMEM((h, bq, 1), jnp.float32),
                        pltpu.VMEM((h, bq, dh), jnp.float32)],
        compiler_params=pltpu.CompilerParams(
            dimension_semantics=("parallel", "parallel", "arbitrary"),
            vmem_limit_bytes=_vmem_limit_bytes()),
    )(km, q, k, v)
    if tq_p != tql:
        out = out[:, :, :tql]
    return out


def rmsnorm(x2d, g, eps=1e-6, out_dtype=jnp.float32, tm=256):
    """Standalone row-tiled RMSNorm — used only for final_layer_norm."""
    m, d = x2d.shape
    bm = m if m <= tm else tm
    mp = m if m <= tm else m + ((-m) % tm)
    xp = x2d if mp == m else jnp.pad(x2d, ((0, mp - m), (0, 0)))
    gw = g if g.ndim == 2 else g.reshape(1, d)
    out = pl.pallas_call(
        functools.partial(_rmsnorm_kernel, eps=eps, d_true=d),
        out_shape=jax.ShapeDtypeStruct((mp, d), out_dtype),
        grid=(mp // bm,),
        in_specs=[pl.BlockSpec((bm, d), lambda i: (i, 0)),
                  pl.BlockSpec((1, d), lambda i: (0, 0))],
        out_specs=pl.BlockSpec((bm, d), lambda i: (i, 0)),
        compiler_params=pltpu.CompilerParams(
            dimension_semantics=("parallel",),
            vmem_limit_bytes=_vmem_limit_bytes()),
    )(xp, gw)
    return out[:m] if mp != m else out


# ----------------------------- model components -----------------------------

def _self_attention_block(x2, p, ln_w, key_mask, b, t, n_heads, scale, causal):
    d = x2.shape[-1]
    dh = d // n_heads
    # RMSNorm fused into the single QKV projection (one matmul, one norm).
    qkv = fused_linear(x2, p["wqkv"], p["bqkv"], norm_weight=ln_w)
    qkv = jnp.transpose(qkv.reshape(b, t, 3, n_heads, dh), (2, 0, 3, 1, 4))
    a = mha(qkv[0], qkv[1], qkv[2], key_mask, scale=scale, causal=causal)
    a = jnp.transpose(a, (0, 2, 1, 3)).reshape(b * t, d)
    # output projection with fused residual: h = x + MHA(norm(x))
    return fused_linear(a, p["wo"], p["bo"], residual=x2)


def _cross_attention_block(x2, enc2, p, ln_w, key_mask, b, t, s, n_heads, scale):
    d = x2.shape[-1]
    dh = d // n_heads
    q = fused_linear(x2, p["wq"], p["bq"], norm_weight=ln_w)
    kv = fused_linear(enc2, p["wkv"], p["bkv"])      # K/V from encoder output
    q = jnp.transpose(q.reshape(b, t, n_heads, dh), (0, 2, 1, 3))
    kv = jnp.transpose(kv.reshape(b, s, 2, n_heads, dh), (2, 0, 3, 1, 4))
    c = mha(q, kv[0], kv[1], key_mask, scale=scale, causal=False)
    c = jnp.transpose(c, (0, 2, 1, 3)).reshape(b * t, d)
    return fused_linear(c, p["wo"], p["bo"], residual=x2)


def encoder_layer(x, p, enc_key_mask, n_heads, scale):
    b, t, d = x.shape
    x2 = x.reshape(-1, d)
    h = _self_attention_block(x2, p["attn"], p["ln1"], enc_key_mask, b, t,
                              n_heads, scale, causal=False)
    f = fused_linear(h, p["ffn"]["w1"], p["ffn"]["b1"],
                     norm_weight=p["ln2"], activation="relu")
    out = fused_linear(f, p["ffn"]["w2"], p["ffn"]["b2"], residual=h)
    return out.reshape(b, t, d)


def decoder_layer(x, enc, p, dec_key_mask, enc_key_mask, n_heads, scale):
    b, t, d = x.shape
    s = enc.shape[1]
    x2 = x.reshape(-1, d)
    enc2 = enc.reshape(-1, d)
    h = _self_attention_block(x2, p["self_attn"], p["ln1"], dec_key_mask, b, t,
                              n_heads, scale, causal=True)
    h2 = _cross_attention_block(h, enc2, p["cross_attn"], p["ln2"],
                                enc_key_mask, b, t, s, n_heads, scale)
    f = fused_linear(h2, p["ffn"]["w1"], p["ffn"]["b1"],
                     norm_weight=p["ln3"], activation="relu")
    out = fused_linear(f, p["ffn"]["w2"], p["ffn"]["b2"], residual=h2)
    return out.reshape(b, t, d)


def t5_forward(params, input_ids, decoder_input_ids, config,
               attention_mask=None, decoder_attention_mask=None):
    n_heads = config["num_heads"]
    d_model = config["d_model"]
    scale = 1.0 / ((d_model // n_heads) ** 0.5)

    if attention_mask is None:
        attention_mask = jnp.ones_like(input_ids)
    if decoder_attention_mask is None:
        decoder_attention_mask = jnp.ones_like(decoder_input_ids)

    emb = params["shared"]
    # embedding gather stays in plain JAX; activations flow as bf16
    enc_x = emb[input_ids].astype(jnp.bfloat16)           # (B, S, D)
    dec_x = emb[decoder_input_ids].astype(jnp.bfloat16)   # (B, T, D)

    enc_key_mask = attention_mask.astype(jnp.float32)     # (B, S) 0/1
    dec_key_mask = decoder_attention_mask.astype(jnp.float32)

    h = enc_x
    for lp in params["encoder"]:
        h = encoder_layer(h, lp, enc_key_mask, n_heads, scale)
    encoder_hidden = h

    g = dec_x
    for lp in params["decoder"]:
        g = decoder_layer(g, encoder_hidden, lp, dec_key_mask, enc_key_mask,
                          n_heads, scale)
    g2 = rmsnorm(g.reshape(-1, d_model), params["final_ln"],
                 out_dtype=jnp.float32)
    last_hidden = g2.reshape(g.shape)

    return {"last_hidden_state": last_hidden,
            "encoder_last_hidden_state": encoder_hidden.astype(jnp.float32),
            "encoder_hidden_states": None,
            "decoder_hidden_states": None,
            "encoder_attentions": None,
            "decoder_attentions": None,
            "cross_attentions": None}


# ----------------------------- parameter init --------------------------------

def init_params(key, config):
    d, f, v = config["d_model"], config["d_ff"], config["vocab_size"]
    std = d ** (-0.5)
    keys = iter(jax.random.split(key, 256))

    def lin(din, dout):
        w = (jax.random.normal(next(keys), (din, dout), jnp.float32) * std)
        return w.astype(jnp.bfloat16), jnp.zeros((1, dout), jnp.float32)

    def self_attn_p():
        wqkv, bqkv = lin(d, 3 * d)     # fused Q|K|V projection
        wo, bo = lin(d, d)
        return dict(wqkv=wqkv, bqkv=bqkv, wo=wo, bo=bo)

    def cross_attn_p():
        wq, bq = lin(d, d)
        wkv, bkv = lin(d, 2 * d)       # fused K|V projection
        wo, bo = lin(d, d)
        return dict(wq=wq, bq=bq, wkv=wkv, bkv=bkv, wo=wo, bo=bo)

    def ffn_p():
        w1, b1 = lin(d, f)
        w2, b2 = lin(f, d)
        return dict(w1=w1, b1=b1, w2=w2, b2=b2)

    def ln():
        return jnp.ones((1, d), jnp.float32)

    enc_layers = [dict(ln1=ln(), attn=self_attn_p(), ln2=ln(), ffn=ffn_p())
                  for _ in range(config["num_layers"])]
    dec_layers = [dict(ln1=ln(), self_attn=self_attn_p(), ln2=ln(),
                       cross_attn=cross_attn_p(), ln3=ln(), ffn=ffn_p())
                  for _ in range(config["num_layers"])]

    return dict(
        shared=jax.random.normal(next(keys), (v, d), jnp.float32),
        encoder=enc_layers,
        decoder=dec_layers,
        final_ln=ln(),
    )


# ---------------------------------- main -------------------------------------

if __name__ == "__main__":
    config = dict(vocab_size=32, d_model=32, num_heads=4, d_ff=64,
                  num_layers=2, dropout_rate=0.0)

    key = jax.random.PRNGKey(0)
    k_param, k_enc, k_dec = jax.random.split(key, 3)

    B, S, T = 2, 8, 8
    input_ids = jax.random.randint(k_enc, (B, S), 0, config["vocab_size"])
    decoder_input_ids = jax.random.randint(k_dec, (B, T), 0, config["vocab_size"])

    params = init_params(k_param, config)

    fwd = jax.jit(functools.partial(t5_forward, config=config))
    out = fwd(params, input_ids, decoder_input_ids)
    jax.block_until_ready(out["last_hidden_state"])
    jax.block_until_ready(out["encoder_last_hidden_state"])

    assert out["last_hidden_state"].shape == (B, T, config["d_model"])
    assert out["encoder_last_hidden_state"].shape == (B, S, config["d_model"])
    assert bool(jnp.all(jnp.isfinite(out["last_hidden_state"])))
    assert bool(jnp.all(jnp.isfinite(out["encoder_last_hidden_state"])))
    print("KERNEL_OK")
</pallas_src>

<mosaic_0001>
module attributes {stable_mosaic.version = 11 : i64} {
  func.func @_linear_kernel(%arg0: i32, %arg1: i32, %arg2: i32, %arg3: memref<16x32xbf16, #tpu.memory_space<vmem>>, %arg4: memref<32x96xbf16, #tpu.memory_space<vmem>>, %arg5: memref<1x96xf32, #tpu.memory_space<vmem>>, %arg6: memref<1x32xf32, #tpu.memory_space<vmem>>, %arg7: memref<16x96xbf16, #tpu.memory_space<vmem>>, %arg8: memref<16x96xf32, #tpu.memory_space<vmem>>, %arg9: memref<16x32xbf16, #tpu.memory_space<vmem>>) attributes {dimension_semantics = [#tpu.dimension_semantics<parallel>, #tpu.dimension_semantics<arbitrary>, #tpu.dimension_semantics<arbitrary>], iteration_bounds = array<i64: 1, 1, 1>, scalar_prefetch = 0 : i64, scratch_operands = 2 : i64, tpu.core_type = #tpu.core_type<tc>, window_params = [{transform_indices = @transform_0, window_bounds = array<i64: 16, 32>}, {transform_indices = @transform_1, window_bounds = array<i64: 32, 96>}, {transform_indices = @transform_2, window_bounds = array<i64: 1, 96>}, {transform_indices = @transform_3, window_bounds = array<i64: 1, 32>}, {transform_indices = @transform_4, window_bounds = array<i64: 16, 96>}]} {
    %c0_i32 = arith.constant 0 : i32
    %0 = arith.cmpi eq, %arg2, %c0_i32 : i32
    %1 = arith.extui %0 : i1 to i32
    %c0_i32_0 = arith.constant 0 : i32
    %2 = arith.cmpi ne, %1, %c0_i32_0 : i32
    scf.if %2 {
      %cst_12 = arith.constant 0.000000e+00 : f32
      %15 = vector.broadcast %cst_12 : f32 to vector<16x96xf32>
      %c0_13 = arith.constant 0 : index
      %c0_14 = arith.constant 0 : index
      %16 = vector.load %arg8[%c0_13, %c0_14] : memref<16x96xf32, #tpu.memory_space<vmem>>, vector<16x96xf32>
      tpu.vector_store %arg8[%c0_13, %c0_14], %15 {strides = array<i32>} : memref<16x96xf32, #tpu.memory_space<vmem>>, vector<16x96xf32>,
    } else {
    }
    %c0_i32_1 = arith.constant 0 : i32
    %3 = arith.cmpi eq, %arg1, %c0_i32_1 : i32
    %4 = arith.extui %3 : i1 to i32
    %c0_i32_2 = arith.constant 0 : i32
    %5 = arith.cmpi ne, %4, %c0_i32_2 : i32
    scf.if %5 {
      %c0_12 = arith.constant 0 : index
      %c0_13 = arith.constant 0 : index
      %15 = vector.load %arg3[%c0_12, %c0_13] : memref<16x32xbf16, #tpu.memory_space<vmem>>, vector<16x32xbf16>
      %16 = arith.extf %15 : vector<16x32xbf16> to vector<16x32xf32>
      %17 = arith.mulf %16, %16 : vector<16x32xf32>
      %cst_14 = arith.constant dense<0.000000e+00> : vector<16xf32>
      %18 = vector.multi_reduction <add>, %17, %cst_14 [1] : vector<16x32xf32> to vector<16xf32>
      %19 = vector.shape_cast %18 : vector<16xf32> to vector<16x1xf32>
      %cst_15 = arith.constant 3.125000e-02 : f32
      %20 = vector.broadcast %cst_15 : f32 to vector<16x1xf32>
      %21 = arith.mulf %19, %20 : vector<16x1xf32>
      %cst_16 = arith.constant 9.99999997E-7 : f32
      %22 = vector.broadcast %cst_16 : f32 to vector<16x1xf32>
      %23 = arith.addf %21, %22 : vector<16x1xf32>
      %24 = math.rsqrt %23 : vector<16x1xf32>
      %25 = vector.broadcast %24 : vector<16x1xf32> to vector<16x32xf32>
      %26 = arith.mulf %16, %25 : vector<16x32xf32>
      %c0_17 = arith.constant 0 : index
      %c0_18 = arith.constant 0 : index
      %27 = vector.load %arg6[%c0_17, %c0_18] : memref<1x32xf32, #tpu.memory_space<vmem>>, vector<1x32xf32>
      %28 = vector.broadcast %27 : vector<1x32xf32> to vector<16x32xf32>
      %29 = arith.mulf %26, %28 : vector<16x32xf32>
      %30 = arith.truncf %29 : vector<16x32xf32> to vector<16x32xbf16>
      %c0_19 = arith.constant 0 : index
      %c0_20 = arith.constant 0 : index
      %31 = vector.load %arg9[%c0_19, %c0_20] : memref<16x32xbf16, #tpu.memory_space<vmem>>, vector<16x32xbf16>
      tpu.vector_store %arg9[%c0_19, %c0_20], %30 {strides = array<i32>} : memref<16x32xbf16, #tpu.memory_space<vmem>>, vector<16x32xbf16>,
    } else {
    }
    %c0 = arith.constant 0 : index
    %c0_3 = arith.constant 0 : index
    %6 = vector.load %arg9[%c0, %c0_3] : memref<16x32xbf16, #tpu.memory_space<vmem>>, vector<16x32xbf16>
    %c0_4 = arith.constant 0 : index
    %c0_5 = arith.constant 0 : index
    %7 = vector.load %arg8[%c0_4, %c0_5] : memref<16x96xf32, #tpu.memory_space<vmem>>, vector<16x96xf32>
    %c0_6 = arith.constant 0 : index
    %c0_7 = arith.constant 0 : index
    %8 = vector.load %arg4[%c0_6, %c0_7] : memref<32x96xbf16, #tpu.memory_space<vmem>>, vector<32x96xbf16>
    %cst = arith.constant dense<0.000000e+00> : vector<16x96xf32>
    %9 = tpu.matmul %6, %8, %cst {dimension_numbers = #tpu.dot_dimension_numbers<[1], [0], [0], [1], [0, 0, 1, 1], [], []>} : vector<16x32xbf16>, vector<32x96xbf16>, vector<16x96xf32> -> vector<16x96xf32>
    %10 = arith.addf %7, %9 : vector<16x96xf32>
    %c0_8 = arith.constant 0 : index
    %c0_9 = arith.constant 0 : index
    %11 = vector.load %arg8[%c0_8, %c0_9] : memref<16x96xf32, #tpu.memory_space<vmem>>, vector<16x96xf32>
    tpu.vector_store %arg8[%c0_8, %c0_9], %10 {strides = array<i32>} : memref<16x96xf32, #tpu.memory_space<vmem>>, vector<16x96xf32>,
    %c0_i32_10 = arith.constant 0 : i32
    %12 = arith.cmpi eq, %arg2, %c0_i32_10 : i32
    %13 = arith.extui %12 : i1 to i32
    %c0_i32_11 = arith.constant 0 : i32
    %14 = arith.cmpi ne, %13, %c0_i32_11 : i32
    scf.if %14 {
      %c0_12 = arith.constant 0 : index
      %c0_13 = arith.constant 0 : index
      %15 = vector.load %arg8[%c0_12, %c0_13] : memref<16x96xf32, #tpu.memory_space<vmem>>, vector<16x96xf32>
      %c0_14 = arith.constant 0 : index
      %c0_15 = arith.constant 0 : index
      %16 = vector.load %arg5[%c0_14, %c0_15] : memref<1x96xf32, #tpu.memory_space<vmem>>, vector<1x96xf32>
      %17 = vector.broadcast %16 : vector<1x96xf32> to vector<16x96xf32>
      %18 = arith.addf %15, %17 : vector<16x96xf32>
      %19 = arith.truncf %18 : vector<16x96xf32> to vector<16x96xbf16>
      %c0_16 = arith.constant 0 : index
      %c0_17 = arith.constant 0 : index
      %20 = vector.load %arg7[%c0_16, %c0_17] : memref<16x96xbf16, #tpu.memory_space<vmem>>, vector<16x96xbf16>
      tpu.vector_store %arg7[%c0_16, %c0_17], %19 {strides = array<i32>} : memref<16x96xbf16, #tpu.memory_space<vmem>>, vector<16x96xbf16>,
    } else {
    }
    return
  }
  func.func @transform_0(%arg0: i32, %arg1: i32, %arg2: i32) -> (i32, i32) {
    %c0_i32 = arith.constant 0 : i32
    return %arg0, %arg2 : i32, i32
  }
  func.func @transform_1(%arg0: i32, %arg1: i32, %arg2: i32) -> (i32, i32) {
    %c0_i32 = arith.constant 0 : i32
    return %arg2, %arg1 : i32, i32
  }
  func.func @transform_2(%arg0: i32, %arg1: i32, %arg2: i32) -> (i32, i32) {
    %c0_i32 = arith.constant 0 : i32
    %c0_i32_0 = arith.constant 0 : i32
    return %c0_i32, %arg1 : i32, i32
  }
  func.func @transform_3(%arg0: i32, %arg1: i32, %arg2: i32) -> (i32, i32) {
    %c0_i32 = arith.constant 0 : i32
    %c0_i32_0 = arith.constant 0 : i32
    return %c0_i32, %arg2 : i32, i32
  }
  func.func @transform_4(%arg0: i32, %arg1: i32, %arg2: i32) -> (i32, i32) {
    %c0_i32 = arith.constant 0 : i32
    return %arg0, %arg1 : i32, i32
  }
}

module attributes {stable_mosaic.version = 11 : i64} {
  func.func @_mha_kernel(%arg0: i32, %arg1: i32, %arg2: i32, %arg3: memref<1x1x8xf32, #tpu.memory_space<vmem>>, %arg4: memref<1x4x8x8xbf16, #tpu.memory_space<vmem>>, %arg5: memref<1x4x8x8xbf16, #tpu.memory_space<vmem>>, %arg6: memref<1x4x8x8xbf16, #tpu.memory_space<vmem>>, %arg7: memref<1x4x8x8xbf16, #tpu.memory_space<vmem>>, %arg8: memref<4x8x1xf32, #tpu.memory_space<vmem>>, %arg9: memref<4x8x1xf32, #tpu.memory_space<vmem>>, %arg10: memref<4x8x8xf32, #tpu.memory_space<vmem>>) attributes {dimension_semantics = [#tpu.dimension_semantics<parallel>, #tpu.dimension_semantics<parallel>, #tpu.dimension_semantics<arbitrary>], iteration_bounds = array<i64: 2, 1, 1>, scalar_prefetch = 0 : i64, scratch_operands = 3 : i64, tpu.core_type = #tpu.core_type<tc>, window_params = [{transform_indices = @transform_0, window_bounds = array<i64: 1, 1, 8>}, {transform_indices = @transform_1, window_bounds = array<i64: 1, 4, 8, 8>}, {transform_indices = @transform_2, window_bounds = array<i64: 1, 4, 8, 8>}, {transform_indices = @transform_3, window_bounds = array<i64: 1, 4, 8, 8>}, {transform_indices = @transform_4, window_bounds = array<i64: 1, 4, 8, 8>}]} {
    %c0_i32 = arith.constant 0 : i32
    %0 = arith.cmpi eq, %arg2, %c0_i32 : i32
    %1 = arith.extui %0 : i1 to i32
    %c0_i32_0 = arith.constant 0 : i32
    %2 = arith.cmpi ne, %1, %c0_i32_0 : i32
    scf.if %2 {
      %cst_42 = arith.constant 0xFF800000 : f32
      %49 = vector.broadcast %cst_42 : f32 to vector<4x8x1xf32>
      %c0_43 = arith.constant 0 : index
      %c0_44 = arith.constant 0 : index
      %c0_45 = arith.constant 0 : index
      %50 = vector.load %arg8[%c0_43, %c0_44, %c0_45] : memref<4x8x1xf32, #tpu.memory_space<vmem>>, vector<4x8x1xf32>
      tpu.vector_store %arg8[%c0_43, %c0_44, %c0_45], %49 {strides = array<i32>} : memref<4x8x1xf32, #tpu.memory_space<vmem>>, vector<4x8x1xf32>,
      %cst_46 = arith.constant 0.000000e+00 : f32
      %51 = vector.broadcast %cst_46 : f32 to vector<4x8x1xf32>
      %c0_47 = arith.constant 0 : index
      %c0_48 = arith.constant 0 : index
      %c0_49 = arith.constant 0 : index
      %52 = vector.load %arg9[%c0_47, %c0_48, %c0_49] : memref<4x8x1xf32, #tpu.memory_space<vmem>>, vector<4x8x1xf32>
      tpu.vector_store %arg9[%c0_47, %c0_48, %c0_49], %51 {strides = array<i32>} : memref<4x8x1xf32, #tpu.memory_space<vmem>>, vector<4x8x1xf32>,
      %cst_50 = arith.constant 0.000000e+00 : f32
      %53 = vector.broadcast %cst_50 : f32 to vector<4x8x8xf32>
      %c0_51 = arith.constant 0 : index
      %c0_52 = arith.constant 0 : index
      %c0_53 = arith.constant 0 : index
      %54 = vector.load %arg10[%c0_51, %c0_52, %c0_53] : memref<4x8x8xf32, #tpu.memory_space<vmem>>, vector<4x8x8xf32>
      tpu.vector_store %arg10[%c0_51, %c0_52, %c0_53], %53 {strides = array<i32>} : memref<4x8x8xf32, #tpu.memory_space<vmem>>, vector<4x8x8xf32>,
    } else {
    }
    %c0 = arith.constant 0 : index
    %c0_1 = arith.constant 0 : index
    %c0_2 = arith.constant 0 : index
    %c0_3 = arith.constant 0 : index
    %3 = vector.load %arg4[%c0, %c0_1, %c0_2, %c0_3] : memref<1x4x8x8xbf16, #tpu.memory_space<vmem>>, vector<1x4x8x8xbf16>
    %4 = vector.shape_cast %3 : vector<1x4x8x8xbf16> to vector<4x8x8xbf16>
    %c0_4 = arith.constant 0 : index
    %c0_5 = arith.constant 0 : index
    %c0_6 = arith.constant 0 : index
    %c0_7 = arith.constant 0 : index
    %5 = vector.load %arg5[%c0_4, %c0_5, %c0_6, %c0_7] : memref<1x4x8x8xbf16, #tpu.memory_space<vmem>>, vector<1x4x8x8xbf16>
    %6 = vector.shape_cast %5 : vector<1x4x8x8xbf16> to vector<4x8x8xbf16>
    %c0_8 = arith.constant 0 : index
    %c0_9 = arith.constant 0 : index
    %c0_10 = arith.constant 0 : index
    %c0_11 = arith.constant 0 : index
    %7 = vector.load %arg6[%c0_8, %c0_9, %c0_10, %c0_11] : memref<1x4x8x8xbf16, #tpu.memory_space<vmem>>, vector<1x4x8x8xbf16>
    %8 = vector.shape_cast %7 : vector<1x4x8x8xbf16> to vector<4x8x8xbf16>
    "tpu.trace_start"() <{level = 10 : i32, message = "hqd,hkd->hqk"}> : () -> ()
    %cst = arith.constant dense<0.000000e+00> : vector<4x8x8xf32>
    %9 = tpu.matmul %4, %6, %cst {dimension_numbers = #tpu.dot_dimension_numbers<[2], [2], [1], [1], [0, 0, 0, 1, 1, 1], [0], [0]>} : vector<4x8x8xbf16>, vector<4x8x8xbf16>, vector<4x8x8xf32> -> vector<4x8x8xf32>
    "tpu.trace_stop"() : () -> ()
    %cst_12 = arith.constant 0.353553385 : f32
    %10 = vector.broadcast %cst_12 : f32 to vector<4x8x8xf32>
    %11 = arith.mulf %9, %10 : vector<4x8x8xf32>
    %c0_13 = arith.constant 0 : index
    %c0_14 = arith.constant 0 : index
    %c0_15 = arith.constant 0 : index
    %12 = vector.load %arg3[%c0_13, %c0_14, %c0_15] : memref<1x1x8xf32, #tpu.memory_space<vmem>>, vector<1x1x8xf32>
    %13 = vector.shape_cast %12 : vector<1x1x8xf32> to vector<1x8xf32>
    %cst_16 = arith.constant 1.000000e+00 : f32
    %14 = vector.broadcast %cst_16 : f32 to vector<1x8xf32>
    %15 = arith.subf %14, %13 : vector<1x8xf32>
    %cst_17 = arith.constant -3.40282347E+38 : f32
    %16 = vector.broadcast %cst_17 : f32 to vector<1x8xf32>
    %17 = arith.mulf %15, %16 : vector<1x8xf32>
    %18 = vector.shape_cast %17 : vector<1x8xf32> to vector<1x1x8xf32>
    %19 = vector.broadcast %18 : vector<1x1x8xf32> to vector<4x8x8xf32>
    %20 = arith.addf %11, %19 : vector<4x8x8xf32>
    %cst_18 = arith.constant -3.40282347E+38 : f32
    %21 = vector.broadcast %cst_18 : f32 to vector<4x8x8xf32>
    %22 = arith.maximumf %20, %21 : vector<4x8x8xf32>
    %c0_19 = arith.constant 0 : index
    %c0_20 = arith.constant 0 : index
    %c0_21 = arith.constant 0 : index
    %23 = vector.load %arg8[%c0_19, %c0_20, %c0_21] : memref<4x8x1xf32, #tpu.memory_space<vmem>>, vector<4x8x1xf32>
    %cst_22 = arith.constant dense<0xFF800000> : vector<4x8xf32>
    %24 = vector.multi_reduction <maximumf>, %22, %cst_22 [2] : vector<4x8x8xf32> to vector<4x8xf32>
    %25 = vector.shape_cast %24 : vector<4x8xf32> to vector<4x8x1xf32>
    %26 = arith.maximumf %23, %25 : vector<4x8x1xf32>
    %27 = arith.subf %23, %26 : vector<4x8x1xf32>
    %28 = math.exp %27 : vector<4x8x1xf32>
    %29 = vector.broadcast %26 : vector<4x8x1xf32> to vector<4x8x8xf32>
    %30 = arith.subf %22, %29 : vector<4x8x8xf32>
    %31 = math.exp %30 : vector<4x8x8xf32>
    %c0_23 = arith.constant 0 : index
    %c0_24 = arith.constant 0 : index
    %c0_25 = arith.constant 0 : index
    %32 = vector.load %arg9[%c0_23, %c0_24, %c0_25] : memref<4x8x1xf32, #tpu.memory_space<vmem>>, vector<4x8x1xf32>
    %33 = arith.mulf %28, %32 : vector<4x8x1xf32>
    %cst_26 = arith.constant dense<0.000000e+00> : vector<4x8xf32>
    %34 = vector.multi_reduction <add>, %31, %cst_26 [2] : vector<4x8x8xf32> to vector<4x8xf32>
    %35 = vector.shape_cast %34 : vector<4x8xf32> to vector<4x8x1xf32>
    %36 = arith.addf %33, %35 : vector<4x8x1xf32>
    %c0_27 = arith.constant 0 : index
    %c0_28 = arith.constant 0 : index
    %c0_29 = arith.constant 0 : index
    %37 = vector.load %arg9[%c0_27, %c0_28, %c0_29] : memref<4x8x1xf32, #tpu.memory_space<vmem>>, vector<4x8x1xf32>
    tpu.vector_store %arg9[%c0_27, %c0_28, %c0_29], %36 {strides = array<i32>} : memref<4x8x1xf32, #tpu.memory_space<vmem>>, vector<4x8x1xf32>,
    %c0_30 = arith.constant 0 : index
    %c0_31 = arith.constant 0 : index
    %c0_32 = arith.constant 0 : index
    %38 = vector.load %arg10[%c0_30, %c0_31, %c0_32] : memref<4x8x8xf32, #tpu.memory_space<vmem>>, vector<4x8x8xf32>
    %39 = vector.broadcast %28 : vector<4x8x1xf32> to vector<4x8x8xf32>
    %40 = arith.mulf %39, %38 : vector<4x8x8xf32>
    %41 = arith.truncf %31 : vector<4x8x8xf32> to vector<4x8x8xbf16>
    "tpu.trace_start"() <{level = 10 : i32, message = "hqk,hkd->hqd"}> : () -> ()
    %cst_33 = arith.constant dense<0.000000e+00> : vector<4x8x8xf32>
    %42 = tpu.matmul %41, %8, %cst_33 {dimension_numbers = #tpu.dot_dimension_numbers<[2], [1], [1], [2], [0, 0, 0, 1, 1, 2], [0], [0]>} : vector<4x8x8xbf16>, vector<4x8x8xbf16>, vector<4x8x8xf32> -> vector<4x8x8xf32>
    "tpu.trace_stop"() : () -> ()
    %43 = arith.addf %40, %42 : vector<4x8x8xf32>
    %c0_34 = arith.constant 0 : index
    %c0_35 = arith.constant 0 : index
    %c0_36 = arith.constant 0 : index
    %44 = vector.load %arg10[%c0_34, %c0_35, %c0_36] : memref<4x8x8xf32, #tpu.memory_space<vmem>>, vector<4x8x8xf32>
    tpu.vector_store %arg10[%c0_34, %c0_35, %c0_36], %43 {strides = array<i32>} : memref<4x8x8xf32, #tpu.memory_space<vmem>>, vector<4x8x8xf32>,
    %c0_37 = arith.constant 0 : index
    %c0_38 = arith.constant 0 : index
    %c0_39 = arith.constant 0 : index
    %45 = vector.load %arg8[%c0_37, %c0_38, %c0_39] : memref<4x8x1xf32, #tpu.memory_space<vmem>>, vector<4x8x1xf32>
    tpu.vector_store %arg8[%c0_37, %c0_38, %c0_39], %26 {strides = array<i32>} : memref<4x8x1xf32, #tpu.memory_space<vmem>>, vector<4x8x1xf32>,
    %c0_i32_40 = arith.constant 0 : i32
    %46 = arith.cmpi eq, %arg2, %c0_i32_40 : i32
    %47 = arith.extui %46 : i1 to i32
    %c0_i32_41 = arith.constant 0 : i32
    %48 = arith.cmpi ne, %47, %c0_i32_41 : i32
    scf.if %48 {
      %c0_42 = arith.constant 0 : index
      %c0_43 = arith.constant 0 : index
      %c0_44 = arith.constant 0 : index
      %49 = vector.load %arg10[%c0_42, %c0_43, %c0_44] : memref<4x8x8xf32, #tpu.memory_space<vmem>>, vector<4x8x8xf32>
      %c0_45 = arith.constant 0 : index
      %c0_46 = arith.constant 0 : index
      %c0_47 = arith.constant 0 : index
      %50 = vector.load %arg9[%c0_45, %c0_46, %c0_47] : memref<4x8x1xf32, #tpu.memory_space<vmem>>, vector<4x8x1xf32>
      %51 = tpu.reciprocal %50 {approx = true} : vector<4x8x1xf32> -> vector<4x8x1xf32>
      %52 = vector.broadcast %51 : vector<4x8x1xf32> to vector<4x8x8xf32>
      %53 = arith.mulf %49, %52 : vector<4x8x8xf32>
      %54 = arith.truncf %53 : vector<4x8x8xf32> to vector<4x8x8xbf16>
      %c0_48 = arith.constant 0 : index
      %c0_49 = arith.constant 0 : index
      %c0_50 = arith.constant 0 : index
      %c0_51 = arith.constant 0 : index
      %55 = vector.load %arg7[%c0_48, %c0_49, %c0_50, %c0_51] : memref<1x4x8x8xbf16, #tpu.memory_space<vmem>>, vector<1x4x8x8xbf16>
      %56 = vector.shape_cast %55 : vector<1x4x8x8xbf16> to vector<4x8x8xbf16>
      %57 = vector.shape_cast %54 : vector<4x8x8xbf16> to vector<1x4x8x8xbf16>
      tpu.vector_store %arg7[%c0_48, %c0_49, %c0_50, %c0_51], %57 {strides = array<i32>} : memref<1x4x8x8xbf16, #tpu.memory_space<vmem>>, vector<1x4x8x8xbf16>,
    } else {
    }
    return
  }
  func.func @transform_0(%arg0: i32, %arg1: i32, %arg2: i32) -> (i32, i32, i32) {
    %c0_i32 = arith.constant 0 : i32
    %c0_i32_0 = arith.constant 0 : i32
    return %arg0, %c0_i32, %arg2 : i32, i32, i32
  }
  func.func @transform_1(%arg0: i32, %arg1: i32, %arg2: i32) -> (i32, i32, i32, i32) {
    %c0_i32 = arith.constant 0 : i32
    %c0_i32_0 = arith.constant 0 : i32
    %c0_i32_1 = arith.constant 0 : i32
    return %arg0, %c0_i32, %arg1, %c0_i32_0 : i32, i32, i32, i32
  }
  func.func @transform_2(%arg0: i32, %arg1: i32, %arg2: i32) -> (i32, i32, i32, i32) {
    %c0_i32 = arith.constant 0 : i32
    %c0_i32_0 = arith.constant 0 : i32
    %c0_i32_1 = arith.constant 0 : i32
    return %arg0, %c0_i32, %arg2, %c0_i32_0 : i32, i32, i32, i32
  }
  func.func @transform_3(%arg0: i32, %arg1: i32, %arg2: i32) -> (i32, i32, i32, i32) {
    %c0_i32 = arith.constant 0 : i32
    %c0_i32_0 = arith.constant 0 : i32
    %c0_i32_1 = arith.constant 0 : i32
    return %arg0, %c0_i32, %arg2, %c0_i32_0 : i32, i32, i32, i32
  }
  func.func @transform_4(%arg0: i32, %arg1: i32, %arg2: i32) -> (i32, i32, i32, i32) {
    %c0_i32 = arith.constant 0 : i32
    %c0_i32_0 = arith.constant 0 : i32
    %c0_i32_1 = arith.constant 0 : i32
    return %arg0, %c0_i32, %arg1, %c0_i32_0 : i32, i32, i32, i32
  }
}

module attributes {stable_mosaic.version = 11 : i64} {
  func.func @_linear_kernel(%arg0: i32, %arg1: i32, %arg2: i32, %arg3: memref<16x32xbf16, #tpu.memory_space<vmem>>, %arg4: memref<32x64xbf16, #tpu.memory_space<vmem>>, %arg5: memref<1x64xf32, #tpu.memory_space<vmem>>, %arg6: memref<1x32xf32, #tpu.memory_space<vmem>>, %arg7: memref<16x64xbf16, #tpu.memory_space<vmem>>, %arg8: memref<16x64xf32, #tpu.memory_space<vmem>>, %arg9: memref<16x32xbf16, #tpu.memory_space<vmem>>) attributes {dimension_semantics = [#tpu.dimension_semantics<parallel>, #tpu.dimension_semantics<arbitrary>, #tpu.dimension_semantics<arbitrary>], iteration_bounds = array<i64: 1, 1, 1>, scalar_prefetch = 0 : i64, scratch_operands = 2 : i64, tpu.core_type = #tpu.core_type<tc>, window_params = [{transform_indices = @transform_0, window_bounds = array<i64: 16, 32>}, {transform_indices = @transform_1, window_bounds = array<i64: 32, 64>}, {transform_indices = @transform_2, window_bounds = array<i64: 1, 64>}, {transform_indices = @transform_3, window_bounds = array<i64: 1, 32>}, {transform_indices = @transform_4, window_bounds = array<i64: 16, 64>}]} {
    %c0_i32 = arith.constant 0 : i32
    %0 = arith.cmpi eq, %arg2, %c0_i32 : i32
    %1 = arith.extui %0 : i1 to i32
    %c0_i32_0 = arith.constant 0 : i32
    %2 = arith.cmpi ne, %1, %c0_i32_0 : i32
    scf.if %2 {
      %cst_12 = arith.constant 0.000000e+00 : f32
      %15 = vector.broadcast %cst_12 : f32 to vector<16x64xf32>
      %c0_13 = arith.constant 0 : index
      %c0_14 = arith.constant 0 : index
      %16 = vector.load %arg8[%c0_13, %c0_14] : memref<16x64xf32, #tpu.memory_space<vmem>>, vector<16x64xf32>
      tpu.vector_store %arg8[%c0_13, %c0_14], %15 {strides = array<i32>} : memref<16x64xf32, #tpu.memory_space<vmem>>, vector<16x64xf32>,
    } else {
    }
    %c0_i32_1 = arith.constant 0 : i32
    %3 = arith.cmpi eq, %arg1, %c0_i32_1 : i32
    %4 = arith.extui %3 : i1 to i32
    %c0_i32_2 = arith.constant 0 : i32
    %5 = arith.cmpi ne, %4, %c0_i32_2 : i32
    scf.if %5 {
      %c0_12 = arith.constant 0 : index
      %c0_13 = arith.constant 0 : index
      %15 = vector.load %arg3[%c0_12, %c0_13] : memref<16x32xbf16, #tpu.memory_space<vmem>>, vector<16x32xbf16>
      %16 = arith.extf %15 : vector<16x32xbf16> to vector<16x32xf32>
      %17 = arith.mulf %16, %16 : vector<16x32xf32>
      %cst_14 = arith.constant dense<0.000000e+00> : vector<16xf32>
      %18 = vector.multi_reduction <add>, %17, %cst_14 [1] : vector<16x32xf32> to vector<16xf32>
      %19 = vector.shape_cast %18 : vector<16xf32> to vector<16x1xf32>
      %cst_15 = arith.constant 3.125000e-02 : f32
      %20 = vector.broadcast %cst_15 : f32 to vector<16x1xf32>
      %21 = arith.mulf %19, %20 : vector<16x1xf32>
      %cst_16 = arith.constant 9.99999997E-7 : f32
      %22 = vector.broadcast %cst_16 : f32 to vector<16x1xf32>
      %23 = arith.addf %21, %22 : vector<16x1xf32>
      %24 = math.rsqrt %23 : vector<16x1xf32>
      %25 = vector.broadcast %24 : vector<16x1xf32> to vector<16x32xf32>
      %26 = arith.mulf %16, %25 : vector<16x32xf32>
      %c0_17 = arith.constant 0 : index
      %c0_18 = arith.constant 0 : index
      %27 = vector.load %arg6[%c0_17, %c0_18] : memref<1x32xf32, #tpu.memory_space<vmem>>, vector<1x32xf32>
      %28 = vector.broadcast %27 : vector<1x32xf32> to vector<16x32xf32>
      %29 = arith.mulf %26, %28 : vector<16x32xf32>
      %30 = arith.truncf %29 : vector<16x32xf32> to vector<16x32xbf16>
      %c0_19 = arith.constant 0 : index
      %c0_20 = arith.constant 0 : index
      %31 = vector.load %arg9[%c0_19, %c0_20] : memref<16x32xbf16, #tpu.memory_space<vmem>>, vector<16x32xbf16>
      tpu.vector_store %arg9[%c0_19, %c0_20], %30 {strides = array<i32>} : memref<16x32xbf16, #tpu.memory_space<vmem>>, vector<16x32xbf16>,
    } else {
    }
    %c0 = arith.constant 0 : index
    %c0_3 = arith.constant 0 : index
    %6 = vector.load %arg9[%c0, %c0_3] : memref<16x32xbf16, #tpu.memory_space<vmem>>, vector<16x32xbf16>
    %c0_4 = arith.constant 0 : index
    %c0_5 = arith.constant 0 : index
    %7 = vector.load %arg8[%c0_4, %c0_5] : memref<16x64xf32, #tpu.memory_space<vmem>>, vector<16x64xf32>
    %c0_6 = arith.constant 0 : index
    %c0_7 = arith.constant 0 : index
    %8 = vector.load %arg4[%c0_6, %c0_7] : memref<32x64xbf16, #tpu.memory_space<vmem>>, vector<32x64xbf16>
    %cst = arith.constant dense<0.000000e+00> : vector<16x64xf32>
    %9 = tpu.matmul %6, %8, %cst {dimension_numbers = #tpu.dot_dimension_numbers<[1], [0], [0], [1], [0, 0, 1, 1], [], []>} : vector<16x32xbf16>, vector<32x64xbf16>, vector<16x64xf32> -> vector<16x64xf32>
    %10 = arith.addf %7, %9 : vector<16x64xf32>
    %c0_8 = arith.constant 0 : index
    %c0_9 = arith.constant 0 : index
    %11 = vector.load %arg8[%c0_8, %c0_9] : memref<16x64xf32, #tpu.memory_space<vmem>>, vector<16x64xf32>
    tpu.vector_store %arg8[%c0_8, %c0_9], %10 {strides = array<i32>} : memref<16x64xf32, #tpu.memory_space<vmem>>, vector<16x64xf32>,
    %c0_i32_10 = arith.constant 0 : i32
    %12 = arith.cmpi eq, %arg2, %c0_i32_10 : i32
    %13 = arith.extui %12 : i1 to i32
    %c0_i32_11 = arith.constant 0 : i32
    %14 = arith.cmpi ne, %13, %c0_i32_11 : i32
    scf.if %14 {
      %c0_12 = arith.constant 0 : index
      %c0_13 = arith.constant 0 : index
      %15 = vector.load %arg8[%c0_12, %c0_13] : memref<16x64xf32, #tpu.memory_space<vmem>>, vector<16x64xf32>
      %c0_14 = arith.constant 0 : index
      %c0_15 = arith.constant 0 : index
      %16 = vector.load %arg5[%c0_14, %c0_15] : memref<1x64xf32, #tpu.memory_space<vmem>>, vector<1x64xf32>
      %17 = vector.broadcast %16 : vector<1x64xf32> to vector<16x64xf32>
      %18 = arith.addf %15, %17 : vector<16x64xf32>
      %cst_16 = arith.constant 0.000000e+00 : f32
      %19 = vector.broadcast %cst_16 : f32 to vector<16x64xf32>
      %20 = arith.maximumf %18, %19 : vector<16x64xf32>
      %21 = arith.truncf %20 : vector<16x64xf32> to vector<16x64xbf16>
      %c0_17 = arith.constant 0 : index
      %c0_18 = arith.constant 0 : index
      %22 = vector.load %arg7[%c0_17, %c0_18] : memref<16x64xbf16, #tpu.memory_space<vmem>>, vector<16x64xbf16>
      tpu.vector_store %arg7[%c0_17, %c0_18], %21 {strides = array<i32>} : memref<16x64xbf16, #tpu.memory_space<vmem>>, vector<16x64xbf16>,
    } else {
    }
    return
  }
  func.func @transform_0(%arg0: i32, %arg1: i32, %arg2: i32) -> (i32, i32) {
    %c0_i32 = arith.constant 0 : i32
    return %arg0, %arg2 : i32, i32
  }
  func.func @transform_1(%arg0: i32, %arg1: i32, %arg2: i32) -> (i32, i32) {
    %c0_i32 = arith.constant 0 : i32
    return %arg2, %arg1 : i32, i32
  }
  func.func @transform_2(%arg0: i32, %arg1: i32, %arg2: i32) -> (i32, i32) {
    %c0_i32 = arith.constant 0 : i32
    %c0_i32_0 = arith.constant 0 : i32
    return %c0_i32, %arg1 : i32, i32
  }
  func.func @transform_3(%arg0: i32, %arg1: i32, %arg2: i32) -> (i32, i32) {
    %c0_i32 = arith.constant 0 : i32
    %c0_i32_0 = arith.constant 0 : i32
    return %c0_i32, %arg2 : i32, i32
  }
  func.func @transform_4(%arg0: i32, %arg1: i32, %arg2: i32) -> (i32, i32) {
    %c0_i32 = arith.constant 0 : i32
    return %arg0, %arg1 : i32, i32
  }
}

module attributes {stable_mosaic.version = 11 : i64} {
  func.func @_linear_kernel(%arg0: i32, %arg1: i32, %arg2: i32, %arg3: memref<16x32xbf16, #tpu.memory_space<vmem>>, %arg4: memref<32x32xbf16, #tpu.memory_space<vmem>>, %arg5: memref<1x32xf32, #tpu.memory_space<vmem>>, %arg6: memref<16x32xbf16, #tpu.memory_space<vmem>>, %arg7: memref<16x32xbf16, #tpu.memory_space<vmem>>, %arg8: memref<16x32xf32, #tpu.memory_space<vmem>>) attributes {dimension_semantics = [#tpu.dimension_semantics<parallel>, #tpu.dimension_semantics<parallel>, #tpu.dimension_semantics<arbitrary>], iteration_bounds = array<i64: 1, 1, 1>, scalar_prefetch = 0 : i64, scratch_operands = 1 : i64, tpu.core_type = #tpu.core_type<tc>, window_params = [{transform_indices = @transform_0, window_bounds = array<i64: 16, 32>}, {transform_indices = @transform_1, window_bounds = array<i64: 32, 32>}, {transform_indices = @transform_2, window_bounds = array<i64: 1, 32>}, {transform_indices = @transform_3, window_bounds = array<i64: 16, 32>}, {transform_indices = @transform_4, window_bounds = array<i64: 16, 32>}]} {
    %c0_i32 = arith.constant 0 : i32
    %0 = arith.cmpi eq, %arg2, %c0_i32 : i32
    %1 = arith.extui %0 : i1 to i32
    %c0_i32_0 = arith.constant 0 : i32
    %2 = arith.cmpi ne, %1, %c0_i32_0 : i32
    scf.if %2 {
      %cst_10 = arith.constant 0.000000e+00 : f32
      %12 = vector.broadcast %cst_10 : f32 to vector<16x32xf32>
      %c0_11 = arith.constant 0 : index
      %c0_12 = arith.constant 0 : index
      %13 = vector.load %arg8[%c0_11, %c0_12] : memref<16x32xf32, #tpu.memory_space<vmem>>, vector<16x32xf32>
      tpu.vector_store %arg8[%c0_11, %c0_12], %12 {strides = array<i32>} : memref<16x32xf32, #tpu.memory_space<vmem>>, vector<16x32xf32>,
    } else {
    }
    %c0 = arith.constant 0 : index
    %c0_1 = arith.constant 0 : index
    %3 = vector.load %arg3[%c0, %c0_1] : memref<16x32xbf16, #tpu.memory_space<vmem>>, vector<16x32xbf16>
    %c0_2 = arith.constant 0 : index
    %c0_3 = arith.constant 0 : index
    %4 = vector.load %arg8[%c0_2, %c0_3] : memref<16x32xf32, #tpu.memory_space<vmem>>, vector<16x32xf32>
    %c0_4 = arith.constant 0 : index
    %c0_5 = arith.constant 0 : index
    %5 = vector.load %arg4[%c0_4, %c0_5] : memref<32x32xbf16, #tpu.memory_space<vmem>>, vector<32x32xbf16>
    %cst = arith.constant dense<0.000000e+00> : vector<16x32xf32>
    %6 = tpu.matmul %3, %5, %cst {dimension_numbers = #tpu.dot_dimension_numbers<[1], [0], [0], [1], [0, 0, 1, 1], [], []>} : vector<16x32xbf16>, vector<32x32xbf16>, vector<16x32xf32> -> vector<16x32xf32>
    %7 = arith.addf %4, %6 : vector<16x32xf32>
    %c0_6 = arith.constant 0 : index
    %c0_7 = arith.constant 0 : index
    %8 = vector.load %arg8[%c0_6, %c0_7] : memref<16x32xf32, #tpu.memory_space<vmem>>, vector<16x32xf32>
    tpu.vector_store %arg8[%c0_6, %c0_7], %7 {strides = array<i32>} : memref<16x32xf32, #tpu.memory_space<vmem>>, vector<16x32xf32>,
    %c0_i32_8 = arith.constant 0 : i32
    %9 = arith.cmpi eq, %arg2, %c0_i32_8 : i32
    %10 = arith.extui %9 : i1 to i32
    %c0_i32_9 = arith.constant 0 : i32
    %11 = arith.cmpi ne, %10, %c0_i32_9 : i32
    scf.if %11 {
      %c0_10 = arith.constant 0 : index
      %c0_11 = arith.constant 0 : index
      %12 = vector.load %arg8[%c0_10, %c0_11] : memref<16x32xf32, #tpu.memory_space<vmem>>, vector<16x32xf32>
      %c0_12 = arith.constant 0 : index
      %c0_13 = arith.constant 0 : index
      %13 = vector.load %arg5[%c0_12, %c0_13] : memref<1x32xf32, #tpu.memory_space<vmem>>, vector<1x32xf32>
      %14 = vector.broadcast %13 : vector<1x32xf32> to vector<16x32xf32>
      %15 = arith.addf %12, %14 : vector<16x32xf32>
      %c0_14 = arith.constant 0 : index
      %c0_15 = arith.constant 0 : index
      %16 = vector.load %arg6[%c0_14, %c0_15] : memref<16x32xbf16, #tpu.memory_space<vmem>>, vector<16x32xbf16>
      %17 = arith.extf %16 : vector<16x32xbf16> to vector<16x32xf32>
      %18 = arith.addf %15, %17 : vector<16x32xf32>
      %19 = arith.truncf %18 : vector<16x32xf32> to vector<16x32xbf16>
      %c0_16 = arith.constant 0 : index
      %c0_17 = arith.constant 0 : index
      %20 = vector.load %arg7[%c0_16, %c0_17] : memref<16x32xbf16, #tpu.memory_space<vmem>>, vector<16x32xbf16>
      tpu.vector_store %arg7[%c0_16, %c0_17], %19 {strides = array<i32>} : memref<16x32xbf16, #tpu.memory_space<vmem>>, vector<16x32xbf16>,
    } else {
    }
    return
  }
  func.func @transform_0(%arg0: i32, %arg1: i32, %arg2: i32) -> (i32, i32) {
    %c0_i32 = arith.constant 0 : i32
    return %arg0, %arg2 : i32, i32
  }
  func.func @transform_1(%arg0: i32, %arg1: i32, %arg2: i32) -> (i32, i32) {
    %c0_i32 = arith.constant 0 : i32
    return %arg2, %arg1 : i32, i32
  }
  func.func @transform_2(%arg0: i32, %arg1: i32, %arg2: i32) -> (i32, i32) {
    %c0_i32 = arith.constant 0 : i32
    %c0_i32_0 = arith.constant 0 : i32
    return %c0_i32, %arg1 : i32, i32
  }
  func.func @transform_3(%arg0: i32, %arg1: i32, %arg2: i32) -> (i32, i32) {
    %c0_i32 = arith.constant 0 : i32
    return %arg0, %arg1 : i32, i32
  }
  func.func @transform_4(%arg0: i32, %arg1: i32, %arg2: i32) -> (i32, i32) {
    %c0_i32 = arith.constant 0 : i32
    return %arg0, %arg1 : i32, i32
  }
}

module attributes {stable_mosaic.version = 11 : i64} {
  func.func @_linear_kernel(%arg0: i32, %arg1: i32, %arg2: i32, %arg3: memref<16x64xbf16, #tpu.memory_space<vmem>>, %arg4: memref<64x32xbf16, #tpu.memory_space<vmem>>, %arg5: memref<1x32xf32, #tpu.memory_space<vmem>>, %arg6: memref<16x32xbf16, #tpu.memory_space<vmem>>, %arg7: memref<16x32xbf16, #tpu.memory_space<vmem>>, %arg8: memref<16x32xf32, #tpu.memory_space<vmem>>) attributes {dimension_semantics = [#tpu.dimension_semantics<parallel>, #tpu.dimension_semantics<parallel>, #tpu.dimension_semantics<arbitrary>], iteration_bounds = array<i64: 1, 1, 1>, scalar_prefetch = 0 : i64, scratch_operands = 1 : i64, tpu.core_type = #tpu.core_type<tc>, window_params = [{transform_indices = @transform_0, window_bounds = array<i64: 16, 64>}, {transform_indices = @transform_1, window_bounds = array<i64: 64, 32>}, {transform_indices = @transform_2, window_bounds = array<i64: 1, 32>}, {transform_indices = @transform_3, window_bounds = array<i64: 16, 32>}, {transform_indices = @transform_4, window_bounds = array<i64: 16, 32>}]} {
    %c0_i32 = arith.constant 0 : i32
    %0 = arith.cmpi eq, %arg2, %c0_i32 : i32
    %1 = arith.extui %0 : i1 to i32
    %c0_i32_0 = arith.constant 0 : i32
    %2 = arith.cmpi ne, %1, %c0_i32_0 : i32
    scf.if %2 {
      %cst_10 = arith.constant 0.000000e+00 : f32
      %12 = vector.broadcast %cst_10 : f32 to vector<16x32xf32>
      %c0_11 = arith.constant 0 : index
      %c0_12 = arith.constant 0 : index
      %13 = vector.load %arg8[%c0_11, %c0_12] : memref<16x32xf32, #tpu.memory_space<vmem>>, vector<16x32xf32>
      tpu.vector_store %arg8[%c0_11, %c0_12], %12 {strides = array<i32>} : memref<16x32xf32, #tpu.memory_space<vmem>>, vector<16x32xf32>,
    } else {
    }
    %c0 = arith.constant 0 : index
    %c0_1 = arith.constant 0 : index
    %3 = vector.load %arg3[%c0, %c0_1] : memref<16x64xbf16, #tpu.memory_space<vmem>>, vector<16x64xbf16>
    %c0_2 = arith.constant 0 : index
    %c0_3 = arith.constant 0 : index
    %4 = vector.load %arg8[%c0_2, %c0_3] : memref<16x32xf32, #tpu.memory_space<vmem>>, vector<16x32xf32>
    %c0_4 = arith.constant 0 : index
    %c0_5 = arith.constant 0 : index
    %5 = vector.load %arg4[%c0_4, %c0_5] : memref<64x32xbf16, #tpu.memory_space<vmem>>, vector<64x32xbf16>
    %cst = arith.constant dense<0.000000e+00> : vector<16x32xf32>
    %6 = tpu.matmul %3, %5, %cst {dimension_numbers = #tpu.dot_dimension_numbers<[1], [0], [0], [1], [0, 0, 1, 1], [], []>} : vector<16x64xbf16>, vector<64x32xbf16>, vector<16x32xf32> -> vector<16x32xf32>
    %7 = arith.addf %4, %6 : vector<16x32xf32>
    %c0_6 = arith.constant 0 : index
    %c0_7 = arith.constant 0 : index
    %8 = vector.load %arg8[%c0_6, %c0_7] : memref<16x32xf32, #tpu.memory_space<vmem>>, vector<16x32xf32>
    tpu.vector_store %arg8[%c0_6, %c0_7], %7 {strides = array<i32>} : memref<16x32xf32, #tpu.memory_space<vmem>>, vector<16x32xf32>,
    %c0_i32_8 = arith.constant 0 : i32
    %9 = arith.cmpi eq, %arg2, %c0_i32_8 : i32
    %10 = arith.extui %9 : i1 to i32
    %c0_i32_9 = arith.constant 0 : i32
    %11 = arith.cmpi ne, %10, %c0_i32_9 : i32
    scf.if %11 {
      %c0_10 = arith.constant 0 : index
      %c0_11 = arith.constant 0 : index
      %12 = vector.load %arg8[%c0_10, %c0_11] : memref<16x32xf32, #tpu.memory_space<vmem>>, vector<16x32xf32>
      %c0_12 = arith.constant 0 : index
      %c0_13 = arith.constant 0 : index
      %13 = vector.load %arg5[%c0_12, %c0_13] : memref<1x32xf32, #tpu.memory_space<vmem>>, vector<1x32xf32>
      %14 = vector.broadcast %13 : vector<1x32xf32> to vector<16x32xf32>
      %15 = arith.addf %12, %14 : vector<16x32xf32>
      %c0_14 = arith.constant 0 : index
      %c0_15 = arith.constant 0 : index
      %16 = vector.load %arg6[%c0_14, %c0_15] : memref<16x32xbf16, #tpu.memory_space<vmem>>, vector<16x32xbf16>
      %17 = arith.extf %16 : vector<16x32xbf16> to vector<16x32xf32>
      %18 = arith.addf %15, %17 : vector<16x32xf32>
      %19 = arith.truncf %18 : vector<16x32xf32> to vector<16x32xbf16>
      %c0_16 = arith.constant 0 : index
      %c0_17 = arith.constant 0 : index
      %20 = vector.load %arg7[%c0_16, %c0_17] : memref<16x32xbf16, #tpu.memory_space<vmem>>, vector<16x32xbf16>
      tpu.vector_store %arg7[%c0_16, %c0_17], %19 {strides = array<i32>} : memref<16x32xbf16, #tpu.memory_space<vmem>>, vector<16x32xbf16>,
    } else {
    }
    return
  }
  func.func @transform_0(%arg0: i32, %arg1: i32, %arg2: i32) -> (i32, i32) {
    %c0_i32 = arith.constant 0 : i32
    return %arg0, %arg2 : i32, i32
  }
  func.func @transform_1(%arg0: i32, %arg1: i32, %arg2: i32) -> (i32, i32) {
    %c0_i32 = arith.constant 0 : i32
    return %arg2, %arg1 : i32, i32
  }
  func.func @transform_2(%arg0: i32, %arg1: i32, %arg2: i32) -> (i32, i32) {
    %c0_i32 = arith.constant 0 : i32
    %c0_i32_0 = arith.constant 0 : i32
    return %c0_i32, %arg1 : i32, i32
  }
  func.func @transform_3(%arg0: i32, %arg1: i32, %arg2: i32) -> (i32, i32) {
    %c0_i32 = arith.constant 0 : i32
    return %arg0, %arg1 : i32, i32
  }
  func.func @transform_4(%arg0: i32, %arg1: i32, %arg2: i32) -> (i32, i32) {
    %c0_i32 = arith.constant 0 : i32
    return %arg0, %arg1 : i32, i32
  }
}

module attributes {stable_mosaic.version = 11 : i64} {
  func.func @_linear_kernel(%arg0: i32, %arg1: i32, %arg2: i32, %arg3: memref<16x32xbf16, #tpu.memory_space<vmem>>, %arg4: memref<32x32xbf16, #tpu.memory_space<vmem>>, %arg5: memref<1x32xf32, #tpu.memory_space<vmem>>, %arg6: memref<1x32xf32, #tpu.memory_space<vmem>>, %arg7: memref<16x32xbf16, #tpu.memory_space<vmem>>, %arg8: memref<16x32xf32, #tpu.memory_space<vmem>>, %arg9: memref<16x32xbf16, #tpu.memory_space<vmem>>) attributes {dimension_semantics = [#tpu.dimension_semantics<parallel>, #tpu.dimension_semantics<arbitrary>, #tpu.dimension_semantics<arbitrary>], iteration_bounds = array<i64: 1, 1, 1>, scalar_prefetch = 0 : i64, scratch_operands = 2 : i64, tpu.core_type = #tpu.core_type<tc>, window_params = [{transform_indices = @transform_0, window_bounds = array<i64: 16, 32>}, {transform_indices = @transform_1, window_bounds = array<i64: 32, 32>}, {transform_indices = @transform_2, window_bounds = array<i64: 1, 32>}, {transform_indices = @transform_3, window_bounds = array<i64: 1, 32>}, {transform_indices = @transform_4, window_bounds = array<i64: 16, 32>}]} {
    %c0_i32 = arith.constant 0 : i32
    %0 = arith.cmpi eq, %arg2, %c0_i32 : i32
    %1 = arith.extui %0 : i1 to i32
    %c0_i32_0 = arith.constant 0 : i32
    %2 = arith.cmpi ne, %1, %c0_i32_0 : i32
    scf.if %2 {
      %cst_12 = arith.constant 0.000000e+00 : f32
      %15 = vector.broadcast %cst_12 : f32 to vector<16x32xf32>
      %c0_13 = arith.constant 0 : index
      %c0_14 = arith.constant 0 : index
      %16 = vector.load %arg8[%c0_13, %c0_14] : memref<16x32xf32, #tpu.memory_space<vmem>>, vector<16x32xf32>
      tpu.vector_store %arg8[%c0_13, %c0_14], %15 {strides = array<i32>} : memref<16x32xf32, #tpu.memory_space<vmem>>, vector<16x32xf32>,
    } else {
    }
    %c0_i32_1 = arith.constant 0 : i32
    %3 = arith.cmpi eq, %arg1, %c0_i32_1 : i32
    %4 = arith.extui %3 : i1 to i32
    %c0_i32_2 = arith.constant 0 : i32
    %5 = arith.cmpi ne, %4, %c0_i32_2 : i32
    scf.if %5 {
      %c0_12 = arith.constant 0 : index
      %c0_13 = arith.constant 0 : index
      %15 = vector.load %arg3[%c0_12, %c0_13] : memref<16x32xbf16, #tpu.memory_space<vmem>>, vector<16x32xbf16>
      %16 = arith.extf %15 : vector<16x32xbf16> to vector<16x32xf32>
      %17 = arith.mulf %16, %16 : vector<16x32xf32>
      %cst_14 = arith.constant dense<0.000000e+00> : vector<16xf32>
      %18 = vector.multi_reduction <add>, %17, %cst_14 [1] : vector<16x32xf32> to vector<16xf32>
      %19 = vector.shape_cast %18 : vector<16xf32> to vector<16x1xf32>
      %cst_15 = arith.constant 3.125000e-02 : f32
      %20 = vector.broadcast %cst_15 : f32 to vector<16x1xf32>
      %21 = arith.mulf %19, %20 : vector<16x1xf32>
      %cst_16 = arith.constant 9.99999997E-7 : f32
      %22 = vector.broadcast %cst_16 : f32 to vector<16x1xf32>
      %23 = arith.addf %21, %22 : vector<16x1xf32>
      %24 = math.rsqrt %23 : vector<16x1xf32>
      %25 = vector.broadcast %24 : vector<16x1xf32> to vector<16x32xf32>
      %26 = arith.mulf %16, %25 : vector<16x32xf32>
      %c0_17 = arith.constant 0 : index
      %c0_18 = arith.constant 0 : index
      %27 = vector.load %arg6[%c0_17, %c0_18] : memref<1x32xf32, #tpu.memory_space<vmem>>, vector<1x32xf32>
      %28 = vector.broadcast %27 : vector<1x32xf32> to vector<16x32xf32>
      %29 = arith.mulf %26, %28 : vector<16x32xf32>
      %30 = arith.truncf %29 : vector<16x32xf32> to vector<16x32xbf16>
      %c0_19 = arith.constant 0 : index
      %c0_20 = arith.constant 0 : index
      %31 = vector.load %arg9[%c0_19, %c0_20] : memref<16x32xbf16, #tpu.memory_space<vmem>>, vector<16x32xbf16>
      tpu.vector_store %arg9[%c0_19, %c0_20], %30 {strides = array<i32>} : memref<16x32xbf16, #tpu.memory_space<vmem>>, vector<16x32xbf16>,
    } else {
    }
    %c0 = arith.constant 0 : index
    %c0_3 = arith.constant 0 : index
    %6 = vector.load %arg9[%c0, %c0_3] : memref<16x32xbf16, #tpu.memory_space<vmem>>, vector<16x32xbf16>
    %c0_4 = arith.constant 0 : index
    %c0_5 = arith.constant 0 : index
    %7 = vector.load %arg8[%c0_4, %c0_5] : memref<16x32xf32, #tpu.memory_space<vmem>>, vector<16x32xf32>
    %c0_6 = arith.constant 0 : index
    %c0_7 = arith.constant 0 : index
    %8 = vector.load %arg4[%c0_6, %c0_7] : memref<32x32xbf16, #tpu.memory_space<vmem>>, vector<32x32xbf16>
    %cst = arith.constant dense<0.000000e+00> : vector<16x32xf32>
    %9 = tpu.matmul %6, %8, %cst {dimension_numbers = #tpu.dot_dimension_numbers<[1], [0], [0], [1], [0, 0, 1, 1], [], []>} : vector<16x32xbf16>, vector<32x32xbf16>, vector<16x32xf32> -> vector<16x32xf32>
    %10 = arith.addf %7, %9 : vector<16x32xf32>
    %c0_8 = arith.constant 0 : index
    %c0_9 = arith.constant 0 : index
    %11 = vector.load %arg8[%c0_8, %c0_9] : memref<16x32xf32, #tpu.memory_space<vmem>>, vector<16x32xf32>
    tpu.vector_store %arg8[%c0_8, %c0_9], %10 {strides = array<i32>} : memref<16x32xf32, #tpu.memory_space<vmem>>, vector<16x32xf32>,
    %c0_i32_10 = arith.constant 0 : i32
    %12 = arith.cmpi eq, %arg2, %c0_i32_10 : i32
    %13 = arith.extui %12 : i1 to i32
    %c0_i32_11 = arith.constant 0 : i32
    %14 = arith.cmpi ne, %13, %c0_i32_11 : i32
    scf.if %14 {
      %c0_12 = arith.constant 0 : index
      %c0_13 = arith.constant 0 : index
      %15 = vector.load %arg8[%c0_12, %c0_13] : memref<16x32xf32, #tpu.memory_space<vmem>>, vector<16x32xf32>
      %c0_14 = arith.constant 0 : index
      %c0_15 = arith.constant 0 : index
      %16 = vector.load %arg5[%c0_14, %c0_15] : memref<1x32xf32, #tpu.memory_space<vmem>>, vector<1x32xf32>
      %17 = vector.broadcast %16 : vector<1x32xf32> to vector<16x32xf32>
      %18 = arith.addf %15, %17 : vector<16x32xf32>
      %19 = arith.truncf %18 : vector<16x32xf32> to vector<16x32xbf16>
      %c0_16 = arith.constant 0 : index
      %c0_17 = arith.constant 0 : index
      %20 = vector.load %arg7[%c0_16, %c0_17] : memref<16x32xbf16, #tpu.memory_space<vmem>>, vector<16x32xbf16>
      tpu.vector_store %arg7[%c0_16, %c0_17], %19 {strides = array<i32>} : memref<16x32xbf16, #tpu.memory_space<vmem>>, vector<16x32xbf16>,
    } else {
    }
    return
  }
  func.func @transform_0(%arg0: i32, %arg1: i32, %arg2: i32) -> (i32, i32) {
    %c0_i32 = arith.constant 0 : i32
    return %arg0, %arg2 : i32, i32
  }
  func.func @transform_1(%arg0: i32, %arg1: i32, %arg2: i32) -> (i32, i32) {
    %c0_i32 = arith.constant 0 : i32
    return %arg2, %arg1 : i32, i32
  }
  func.func @transform_2(%arg0: i32, %arg1: i32, %arg2: i32) -> (i32, i32) {
    %c0_i32 = arith.constant 0 : i32
    %c0_i32_0 = arith.constant 0 : i32
    return %c0_i32, %arg1 : i32, i32
  }
  func.func @transform_3(%arg0: i32, %arg1: i32, %arg2: i32) -> (i32, i32) {
    %c0_i32 = arith.constant 0 : i32
    %c0_i32_0 = arith.constant 0 : i32
    return %c0_i32, %arg2 : i32, i32
  }
  func.func @transform_4(%arg0: i32, %arg1: i32, %arg2: i32) -> (i32, i32) {
    %c0_i32 = arith.constant 0 : i32
    return %arg0, %arg1 : i32, i32
  }
}

module attributes {stable_mosaic.version = 11 : i64} {
  func.func @_mha_kernel(%arg0: i32, %arg1: i32, %arg2: i32, %arg3: memref<1x1x8xf32, #tpu.memory_space<vmem>>, %arg4: memref<1x4x8x8xbf16, #tpu.memory_space<vmem>>, %arg5: memref<1x4x8x8xbf16, #tpu.memory_space<vmem>>, %arg6: memref<1x4x8x8xbf16, #tpu.memory_space<vmem>>, %arg7: memref<1x4x8x8xbf16, #tpu.memory_space<vmem>>, %arg8: memref<4x8x1xf32, #tpu.memory_space<vmem>>, %arg9: memref<4x8x1xf32, #tpu.memory_space<vmem>>, %arg10: memref<4x8x8xf32, #tpu.memory_space<vmem>>) attributes {dimension_semantics = [#tpu.dimension_semantics<parallel>, #tpu.dimension_semantics<parallel>, #tpu.dimension_semantics<arbitrary>], iteration_bounds = array<i64: 2, 1, 1>, scalar_prefetch = 0 : i64, scratch_operands = 3 : i64, tpu.core_type = #tpu.core_type<tc>, window_params = [{transform_indices = @transform_0, window_bounds = array<i64: 1, 1, 8>}, {transform_indices = @transform_1, window_bounds = array<i64: 1, 4, 8, 8>}, {transform_indices = @transform_2, window_bounds = array<i64: 1, 4, 8, 8>}, {transform_indices = @transform_3, window_bounds = array<i64: 1, 4, 8, 8>}, {transform_indices = @transform_4, window_bounds = array<i64: 1, 4, 8, 8>}]} {
    %c0_i32 = arith.constant 0 : i32
    %0 = arith.cmpi eq, %arg2, %c0_i32 : i32
    %1 = arith.extui %0 : i1 to i32
    %c0_i32_0 = arith.constant 0 : i32
    %2 = arith.cmpi ne, %1, %c0_i32_0 : i32
    scf.if %2 {
      %cst_45 = arith.constant 0xFF800000 : f32
      %64 = vector.broadcast %cst_45 : f32 to vector<4x8x1xf32>
      %c0_46 = arith.constant 0 : index
      %c0_47 = arith.constant 0 : index
      %c0_48 = arith.constant 0 : index
      %65 = vector.load %arg8[%c0_46, %c0_47, %c0_48] : memref<4x8x1xf32, #tpu.memory_space<vmem>>, vector<4x8x1xf32>
      tpu.vector_store %arg8[%c0_46, %c0_47, %c0_48], %64 {strides = array<i32>} : memref<4x8x1xf32, #tpu.memory_space<vmem>>, vector<4x8x1xf32>,
      %cst_49 = arith.constant 0.000000e+00 : f32
      %66 = vector.broadcast %cst_49 : f32 to vector<4x8x1xf32>
      %c0_50 = arith.constant 0 : index
      %c0_51 = arith.constant 0 : index
      %c0_52 = arith.constant 0 : index
      %67 = vector.load %arg9[%c0_50, %c0_51, %c0_52] : memref<4x8x1xf32, #tpu.memory_space<vmem>>, vector<4x8x1xf32>
      tpu.vector_store %arg9[%c0_50, %c0_51, %c0_52], %66 {strides = array<i32>} : memref<4x8x1xf32, #tpu.memory_space<vmem>>, vector<4x8x1xf32>,
      %cst_53 = arith.constant 0.000000e+00 : f32
      %68 = vector.broadcast %cst_53 : f32 to vector<4x8x8xf32>
      %c0_54 = arith.constant 0 : index
      %c0_55 = arith.constant 0 : index
      %c0_56 = arith.constant 0 : index
      %69 = vector.load %arg10[%c0_54, %c0_55, %c0_56] : memref<4x8x8xf32, #tpu.memory_space<vmem>>, vector<4x8x8xf32>
      tpu.vector_store %arg10[%c0_54, %c0_55, %c0_56], %68 {strides = array<i32>} : memref<4x8x8xf32, #tpu.memory_space<vmem>>, vector<4x8x8xf32>,
    } else {
    }
    %c0 = arith.constant 0 : index
    %c0_1 = arith.constant 0 : index
    %c0_2 = arith.constant 0 : index
    %c0_3 = arith.constant 0 : index
    %3 = vector.load %arg4[%c0, %c0_1, %c0_2, %c0_3] : memref<1x4x8x8xbf16, #tpu.memory_space<vmem>>, vector<1x4x8x8xbf16>
    %4 = vector.shape_cast %3 : vector<1x4x8x8xbf16> to vector<4x8x8xbf16>
    %c0_4 = arith.constant 0 : index
    %c0_5 = arith.constant 0 : index
    %c0_6 = arith.constant 0 : index
    %c0_7 = arith.constant 0 : index
    %5 = vector.load %arg5[%c0_4, %c0_5, %c0_6, %c0_7] : memref<1x4x8x8xbf16, #tpu.memory_space<vmem>>, vector<1x4x8x8xbf16>
    %6 = vector.shape_cast %5 : vector<1x4x8x8xbf16> to vector<4x8x8xbf16>
    %c0_8 = arith.constant 0 : index
    %c0_9 = arith.constant 0 : index
    %c0_10 = arith.constant 0 : index
    %c0_11 = arith.constant 0 : index
    %7 = vector.load %arg6[%c0_8, %c0_9, %c0_10, %c0_11] : memref<1x4x8x8xbf16, #tpu.memory_space<vmem>>, vector<1x4x8x8xbf16>
    %8 = vector.shape_cast %7 : vector<1x4x8x8xbf16> to vector<4x8x8xbf16>
    "tpu.trace_start"() <{level = 10 : i32, message = "hqd,hkd->hqk"}> : () -> ()
    %cst = arith.constant dense<0.000000e+00> : vector<4x8x8xf32>
    %9 = tpu.matmul %4, %6, %cst {dimension_numbers = #tpu.dot_dimension_numbers<[2], [2], [1], [1], [0, 0, 0, 1, 1, 1], [0], [0]>} : vector<4x8x8xbf16>, vector<4x8x8xbf16>, vector<4x8x8xf32> -> vector<4x8x8xf32>
    "tpu.trace_stop"() : () -> ()
    %cst_12 = arith.constant 0.353553385 : f32
    %10 = vector.broadcast %cst_12 : f32 to vector<4x8x8xf32>
    %11 = arith.mulf %9, %10 : vector<4x8x8xf32>
    %c0_13 = arith.constant 0 : index
    %c0_14 = arith.constant 0 : index
    %c0_15 = arith.constant 0 : index
    %12 = vector.load %arg3[%c0_13, %c0_14, %c0_15] : memref<1x1x8xf32, #tpu.memory_space<vmem>>, vector<1x1x8xf32>
    %13 = vector.shape_cast %12 : vector<1x1x8xf32> to vector<1x8xf32>
    %cst_16 = arith.constant 1.000000e+00 : f32
    %14 = vector.broadcast %cst_16 : f32 to vector<1x8xf32>
    %15 = arith.subf %14, %13 : vector<1x8xf32>
    %cst_17 = arith.constant -3.40282347E+38 : f32
    %16 = vector.broadcast %cst_17 : f32 to vector<1x8xf32>
    %17 = arith.mulf %15, %16 : vector<1x8xf32>
    %18 = vector.shape_cast %17 : vector<1x8xf32> to vector<1x1x8xf32>
    %c8_i32 = arith.constant 8 : i32
    %19 = arith.muli %arg1, %c8_i32 : i32
    %20 = tpu.iota {dimensions = array<i32: 0>} : vector<8x8xi32>
    %21 = vector.broadcast %19 : i32 to vector<8x8xi32>
    %22 = arith.addi %21, %20 : vector<8x8xi32>
    %c8_i32_18 = arith.constant 8 : i32
    %23 = arith.muli %arg2, %c8_i32_18 : i32
    %24 = tpu.iota {dimensions = array<i32: 1>} : vector<8x8xi32>
    %25 = vector.broadcast %23 : i32 to vector<8x8xi32>
    %26 = arith.addi %25, %24 : vector<8x8xi32>
    %27 = arith.cmpi sle, %26, %22 : vector<8x8xi32>
    %cst_19 = arith.constant 0.000000e+00 : f32
    %cst_20 = arith.constant -3.40282347E+38 : f32
    %28 = vector.broadcast %cst_19 : f32 to vector<8x8xf32>
    %29 = vector.broadcast %cst_20 : f32 to vector<8x8xf32>
    %30 = arith.select %27, %28, %29 : vector<8x8xi1>, vector<8x8xf32>
    %31 = vector.shape_cast %30 : vector<8x8xf32> to vector<1x8x8xf32>
    %32 = vector.broadcast %18 : vector<1x1x8xf32> to vector<1x8x8xf32>
    %33 = arith.addf %32, %31 : vector<1x8x8xf32>
    %34 = vector.broadcast %33 : vector<1x8x8xf32> to vector<4x8x8xf32>
    %35 = arith.addf %11, %34 : vector<4x8x8xf32>
    %cst_21 = arith.constant -3.40282347E+38 : f32
    %36 = vector.broadcast %cst_21 : f32 to vector<4x8x8xf32>
    %37 = arith.maximumf %35, %36 : vector<4x8x8xf32>
    %c0_22 = arith.constant 0 : index
    %c0_23 = arith.constant 0 : index
    %c0_24 = arith.constant 0 : index
    %38 = vector.load %arg8[%c0_22, %c0_23, %c0_24] : memref<4x8x1xf32, #tpu.memory_space<vmem>>, vector<4x8x1xf32>
    %cst_25 = arith.constant dense<0xFF800000> : vector<4x8xf32>
    %39 = vector.multi_reduction <maximumf>, %37, %cst_25 [2] : vector<4x8x8xf32> to vector<4x8xf32>
    %40 = vector.shape_cast %39 : vector<4x8xf32> to vector<4x8x1xf32>
    %41 = arith.maximumf %38, %40 : vector<4x8x1xf32>
    %42 = arith.subf %38, %41 : vector<4x8x1xf32>
    %43 = math.exp %42 : vector<4x8x1xf32>
    %44 = vector.broadcast %41 : vector<4x8x1xf32> to vector<4x8x8xf32>
    %45 = arith.subf %37, %44 : vector<4x8x8xf32>
    %46 = math.exp %45 : vector<4x8x8xf32>
    %c0_26 = arith.constant 0 : index
    %c0_27 = arith.constant 0 : index
    %c0_28 = arith.constant 0 : index
    %47 = vector.load %arg9[%c0_26, %c0_27, %c0_28] : memref<4x8x1xf32, #tpu.memory_space<vmem>>, vector<4x8x1xf32>
    %48 = arith.mulf %43, %47 : vector<4x8x1xf32>
    %cst_29 = arith.constant dense<0.000000e+00> : vector<4x8xf32>
    %49 = vector.multi_reduction <add>, %46, %cst_29 [2] : vector<4x8x8xf32> to vector<4x8xf32>
    %50 = vector.shape_cast %49 : vector<4x8xf32> to vector<4x8x1xf32>
    %51 = arith.addf %48, %50 : vector<4x8x1xf32>
    %c0_30 = arith.constant 0 : index
    %c0_31 = arith.constant 0 : index
    %c0_32 = arith.constant 0 : index
    %52 = vector.load %arg9[%c0_30, %c0_31, %c0_32] : memref<4x8x1xf32, #tpu.memory_space<vmem>>, vector<4x8x1xf32>
    tpu.vector_store %arg9[%c0_30, %c0_31, %c0_32], %51 {strides = array<i32>} : memref<4x8x1xf32, #tpu.memory_space<vmem>>, vector<4x8x1xf32>,
    %c0_33 = arith.constant 0 : index
    %c0_34 = arith.constant 0 : index
    %c0_35 = arith.constant 0 : index
    %53 = vector.load %arg10[%c0_33, %c0_34, %c0_35] : memref<4x8x8xf32, #tpu.memory_space<vmem>>, vector<4x8x8xf32>
    %54 = vector.broadcast %43 : vector<4x8x1xf32> to vector<4x8x8xf32>
    %55 = arith.mulf %54, %53 : vector<4x8x8xf32>
    %56 = arith.truncf %46 : vector<4x8x8xf32> to vector<4x8x8xbf16>
    "tpu.trace_start"() <{level = 10 : i32, message = "hqk,hkd->hqd"}> : () -> ()
    %cst_36 = arith.constant dense<0.000000e+00> : vector<4x8x8xf32>
    %57 = tpu.matmul %56, %8, %cst_36 {dimension_numbers = #tpu.dot_dimension_numbers<[2], [1], [1], [2], [0, 0, 0, 1, 1, 2], [0], [0]>} : vector<4x8x8xbf16>, vector<4x8x8xbf16>, vector<4x8x8xf32> -> vector<4x8x8xf32>
    "tpu.trace_stop"() : () -> ()
    %58 = arith.addf %55, %57 : vector<4x8x8xf32>
    %c0_37 = arith.constant 0 : index
    %c0_38 = arith.constant 0 : index
    %c0_39 = arith.constant 0 : index
    %59 = vector.load %arg10[%c0_37, %c0_38, %c0_39] : memref<4x8x8xf32, #tpu.memory_space<vmem>>, vector<4x8x8xf32>
    tpu.vector_store %arg10[%c0_37, %c0_38, %c0_39], %58 {strides = array<i32>} : memref<4x8x8xf32, #tpu.memory_space<vmem>>, vector<4x8x8xf32>,
    %c0_40 = arith.constant 0 : index
    %c0_41 = arith.constant 0 : index
    %c0_42 = arith.constant 0 : index
    %60 = vector.load %arg8[%c0_40, %c0_41, %c0_42] : memref<4x8x1xf32, #tpu.memory_space<vmem>>, vector<4x8x1xf32>
    tpu.vector_store %arg8[%c0_40, %c0_41, %c0_42], %41 {strides = array<i32>} : memref<4x8x1xf32, #tpu.memory_space<vmem>>, vector<4x8x1xf32>,
    %c0_i32_43 = arith.constant 0 : i32
    %61 = arith.cmpi eq, %arg2, %c0_i32_43 : i32
    %62 = arith.extui %61 : i1 to i32
    %c0_i32_44 = arith.constant 0 : i32
    %63 = arith.cmpi ne, %62, %c0_i32_44 : i32
    scf.if %63 {
      %c0_45 = arith.constant 0 : index
      %c0_46 = arith.constant 0 : index
      %c0_47 = arith.constant 0 : index
      %64 = vector.load %arg10[%c0_45, %c0_46, %c0_47] : memref<4x8x8xf32, #tpu.memory_space<vmem>>, vector<4x8x8xf32>
      %c0_48 = arith.constant 0 : index
      %c0_49 = arith.constant 0 : index
      %c0_50 = arith.constant 0 : index
      %65 = vector.load %arg9[%c0_48, %c0_49, %c0_50] : memref<4x8x1xf32, #tpu.memory_space<vmem>>, vector<4x8x1xf32>
      %66 = tpu.reciprocal %65 {approx = true} : vector<4x8x1xf32> -> vector<4x8x1xf32>
      %67 = vector.broadcast %66 : vector<4x8x1xf32> to vector<4x8x8xf32>
      %68 = arith.mulf %64, %67 : vector<4x8x8xf32>
      %69 = arith.truncf %68 : vector<4x8x8xf32> to vector<4x8x8xbf16>
      %c0_51 = arith.constant 0 : index
      %c0_52 = arith.constant 0 : index
      %c0_53 = arith.constant 0 : index
      %c0_54 = arith.constant 0 : index
      %70 = vector.load %arg7[%c0_51, %c0_52, %c0_53, %c0_54] : memref<1x4x8x8xbf16, #tpu.memory_space<vmem>>, vector<1x4x8x8xbf16>
      %71 = vector.shape_cast %70 : vector<1x4x8x8xbf16> to vector<4x8x8xbf16>
      %72 = vector.shape_cast %69 : vector<4x8x8xbf16> to vector<1x4x8x8xbf16>
      tpu.vector_store %arg7[%c0_51, %c0_52, %c0_53, %c0_54], %72 {strides = array<i32>} : memref<1x4x8x8xbf16, #tpu.memory_space<vmem>>, vector<1x4x8x8xbf16>,
    } else {
    }
    return
  }
  func.func @transform_0(%arg0: i32, %arg1: i32, %arg2: i32) -> (i32, i32, i32) {
    %c0_i32 = arith.constant 0 : i32
    %c0_i32_0 = arith.constant 0 : i32
    return %arg0, %c0_i32, %arg2 : i32, i32, i32
  }
  func.func @transform_1(%arg0: i32, %arg1: i32, %arg2: i32) -> (i32, i32, i32, i32) {
    %c0_i32 = arith.constant 0 : i32
    %c0_i32_0 = arith.constant 0 : i32
    %c0_i32_1 = arith.constant 0 : i32
    return %arg0, %c0_i32, %arg1, %c0_i32_0 : i32, i32, i32, i32
  }
  func.func @transform_2(%arg0: i32, %arg1: i32, %arg2: i32) -> (i32, i32, i32, i32) {
    %c0_i32 = arith.constant 0 : i32
    %c0_i32_0 = arith.constant 0 : i32
    %c0_i32_1 = arith.constant 0 : i32
    return %arg0, %c0_i32, %arg2, %c0_i32_0 : i32, i32, i32, i32
  }
  func.func @transform_3(%arg0: i32, %arg1: i32, %arg2: i32) -> (i32, i32, i32, i32) {
    %c0_i32 = arith.constant 0 : i32
    %c0_i32_0 = arith.constant 0 : i32
    %c0_i32_1 = arith.constant 0 : i32
    return %arg0, %c0_i32, %arg2, %c0_i32_0 : i32, i32, i32, i32
  }
  func.func @transform_4(%arg0: i32, %arg1: i32, %arg2: i32) -> (i32, i32, i32, i32) {
    %c0_i32 = arith.constant 0 : i32
    %c0_i32_0 = arith.constant 0 : i32
    %c0_i32_1 = arith.constant 0 : i32
    return %arg0, %c0_i32, %arg1, %c0_i32_0 : i32, i32, i32, i32
  }
}

module attributes {stable_mosaic.version = 11 : i64} {
  func.func @_linear_kernel(%arg0: i32, %arg1: i32, %arg2: i32, %arg3: memref<16x32xbf16, #tpu.memory_space<vmem>>, %arg4: memref<32x64xbf16, #tpu.memory_space<vmem>>, %arg5: memref<1x64xf32, #tpu.memory_space<vmem>>, %arg6: memref<16x64xbf16, #tpu.memory_space<vmem>>, %arg7: memref<16x64xf32, #tpu.memory_space<vmem>>) attributes {dimension_semantics = [#tpu.dimension_semantics<parallel>, #tpu.dimension_semantics<parallel>, #tpu.dimension_semantics<arbitrary>], iteration_bounds = array<i64: 1, 1, 1>, scalar_prefetch = 0 : i64, scratch_operands = 1 : i64, tpu.core_type = #tpu.core_type<tc>, window_params = [{transform_indices = @transform_0, window_bounds = array<i64: 16, 32>}, {transform_indices = @transform_1, window_bounds = array<i64: 32, 64>}, {transform_indices = @transform_2, window_bounds = array<i64: 1, 64>}, {transform_indices = @transform_3, window_bounds = array<i64: 16, 64>}]} {
    %c0_i32 = arith.constant 0 : i32
    %0 = arith.cmpi eq, %arg2, %c0_i32 : i32
    %1 = arith.extui %0 : i1 to i32
    %c0_i32_0 = arith.constant 0 : i32
    %2 = arith.cmpi ne, %1, %c0_i32_0 : i32
    scf.if %2 {
      %cst_10 = arith.constant 0.000000e+00 : f32
      %12 = vector.broadcast %cst_10 : f32 to vector<16x64xf32>
      %c0_11 = arith.constant 0 : index
      %c0_12 = arith.constant 0 : index
      %13 = vector.load %arg7[%c0_11, %c0_12] : memref<16x64xf32, #tpu.memory_space<vmem>>, vector<16x64xf32>
      tpu.vector_store %arg7[%c0_11, %c0_12], %12 {strides = array<i32>} : memref<16x64xf32, #tpu.memory_space<vmem>>, vector<16x64xf32>,
    } else {
    }
    %c0 = arith.constant 0 : index
    %c0_1 = arith.constant 0 : index
    %3 = vector.load %arg3[%c0, %c0_1] : memref<16x32xbf16, #tpu.memory_space<vmem>>, vector<16x32xbf16>
    %c0_2 = arith.constant 0 : index
    %c0_3 = arith.constant 0 : index
    %4 = vector.load %arg7[%c0_2, %c0_3] : memref<16x64xf32, #tpu.memory_space<vmem>>, vector<16x64xf32>
    %c0_4 = arith.constant 0 : index
    %c0_5 = arith.constant 0 : index
    %5 = vector.load %arg4[%c0_4, %c0_5] : memref<32x64xbf16, #tpu.memory_space<vmem>>, vector<32x64xbf16>
    %cst = arith.constant dense<0.000000e+00> : vector<16x64xf32>
    %6 = tpu.matmul %3, %5, %cst {dimension_numbers = #tpu.dot_dimension_numbers<[1], [0], [0], [1], [0, 0, 1, 1], [], []>} : vector<16x32xbf16>, vector<32x64xbf16>, vector<16x64xf32> -> vector<16x64xf32>
    %7 = arith.addf %4, %6 : vector<16x64xf32>
    %c0_6 = arith.constant 0 : index
    %c0_7 = arith.constant 0 : index
    %8 = vector.load %arg7[%c0_6, %c0_7] : memref<16x64xf32, #tpu.memory_space<vmem>>, vector<16x64xf32>
    tpu.vector_store %arg7[%c0_6, %c0_7], %7 {strides = array<i32>} : memref<16x64xf32, #tpu.memory_space<vmem>>, vector<16x64xf32>,
    %c0_i32_8 = arith.constant 0 : i32
    %9 = arith.cmpi eq, %arg2, %c0_i32_8 : i32
    %10 = arith.extui %9 : i1 to i32
    %c0_i32_9 = arith.constant 0 : i32
    %11 = arith.cmpi ne, %10, %c0_i32_9 : i32
    scf.if %11 {
      %c0_10 = arith.constant 0 : index
      %c0_11 = arith.constant 0 : index
      %12 = vector.load %arg7[%c0_10, %c0_11] : memref<16x64xf32, #tpu.memory_space<vmem>>, vector<16x64xf32>
      %c0_12 = arith.constant 0 : index
      %c0_13 = arith.constant 0 : index
      %13 = vector.load %arg5[%c0_12, %c0_13] : memref<1x64xf32, #tpu.memory_space<vmem>>, vector<1x64xf32>
      %14 = vector.broadcast %13 : vector<1x64xf32> to vector<16x64xf32>
      %15 = arith.addf %12, %14 : vector<16x64xf32>
      %16 = arith.truncf %15 : vector<16x64xf32> to vector<16x64xbf16>
      %c0_14 = arith.constant 0 : index
      %c0_15 = arith.constant 0 : index
      %17 = vector.load %arg6[%c0_14, %c0_15] : memref<16x64xbf16, #tpu.memory_space<vmem>>, vector<16x64xbf16>
      tpu.vector_store %arg6[%c0_14, %c0_15], %16 {strides = array<i32>} : memref<16x64xbf16, #tpu.memory_space<vmem>>, vector<16x64xbf16>,
    } else {
    }
    return
  }
  func.func @transform_0(%arg0: i32, %arg1: i32, %arg2: i32) -> (i32, i32) {
    %c0_i32 = arith.constant 0 : i32
    return %arg0, %arg2 : i32, i32
  }
  func.func @transform_1(%arg0: i32, %arg1: i32, %arg2: i32) -> (i32, i32) {
    %c0_i32 = arith.constant 0 : i32
    return %arg2, %arg1 : i32, i32
  }
  func.func @transform_2(%arg0: i32, %arg1: i32, %arg2: i32) -> (i32, i32) {
    %c0_i32 = arith.constant 0 : i32
    %c0_i32_0 = arith.constant 0 : i32
    return %c0_i32, %arg1 : i32, i32
  }
  func.func @transform_3(%arg0: i32, %arg1: i32, %arg2: i32) -> (i32, i32) {
    %c0_i32 = arith.constant 0 : i32
    return %arg0, %arg1 : i32, i32
  }
}

module attributes {stable_mosaic.version = 11 : i64} {
  func.func @_rmsnorm_kernel(%arg0: i32, %arg1: memref<16x32xbf16, #tpu.memory_space<vmem>>, %arg2: memref<1x32xf32, #tpu.memory_space<vmem>>, %arg3: memref<16x32xf32, #tpu.memory_space<vmem>>) attributes {dimension_semantics = [#tpu.dimension_semantics<parallel>], iteration_bounds = array<i64: 1>, scalar_prefetch = 0 : i64, scratch_operands = 0 : i64, tpu.core_type = #tpu.core_type<tc>, window_params = [{transform_indices = @transform_0, window_bounds = array<i64: 16, 32>}, {pipeline_mode = #tpu.pipeline_mode<synchronous>, transform_indices = @transform_1, window_bounds = array<i64: 1, 32>}, {transform_indices = @transform_2, window_bounds = array<i64: 16, 32>}]} {
    %c0 = arith.constant 0 : index
    %c0_0 = arith.constant 0 : index
    %0 = vector.load %arg1[%c0, %c0_0] : memref<16x32xbf16, #tpu.memory_space<vmem>>, vector<16x32xbf16>
    %1 = arith.extf %0 : vector<16x32xbf16> to vector<16x32xf32>
    %2 = arith.mulf %1, %1 : vector<16x32xf32>
    %cst = arith.constant dense<0.000000e+00> : vector<16xf32>
    %3 = vector.multi_reduction <add>, %2, %cst [1] : vector<16x32xf32> to vector<16xf32>
    %4 = vector.shape_cast %3 : vector<16xf32> to vector<16x1xf32>
    %cst_1 = arith.constant 3.125000e-02 : f32
    %5 = vector.broadcast %cst_1 : f32 to vector<16x1xf32>
    %6 = arith.mulf %4, %5 : vector<16x1xf32>
    %cst_2 = arith.constant 9.99999997E-7 : f32
    %7 = vector.broadcast %cst_2 : f32 to vector<16x1xf32>
    %8 = arith.addf %6, %7 : vector<16x1xf32>
    %9 = math.rsqrt %8 : vector<16x1xf32>
    %10 = vector.broadcast %9 : vector<16x1xf32> to vector<16x32xf32>
    %11 = arith.mulf %1, %10 : vector<16x32xf32>
    %c0_3 = arith.constant 0 : index
    %c0_4 = arith.constant 0 : index
    %12 = vector.load %arg2[%c0_3, %c0_4] : memref<1x32xf32, #tpu.memory_space<vmem>>, vector<1x32xf32>
    %13 = vector.broadcast %12 : vector<1x32xf32> to vector<16x32xf32>
    %14 = arith.mulf %11, %13 : vector<16x32xf32>
    %c0_5 = arith.constant 0 : index
    %c0_6 = arith.constant 0 : index
    %15 = vector.load %arg3[%c0_5, %c0_6] : memref<16x32xf32, #tpu.memory_space<vmem>>, vector<16x32xf32>
    tpu.vector_store %arg3[%c0_5, %c0_6], %14 {strides = array<i32>} : memref<16x32xf32, #tpu.memory_space<vmem>>, vector<16x32xf32>,
    return
  }
  func.func @transform_0(%arg0: i32) -> (i32, i32) {
    %c0_i32 = arith.constant 0 : i32
    %c0_i32_0 = arith.constant 0 : i32
    return %arg0, %c0_i32 : i32, i32
  }
  func.func @transform_1(%arg0: i32) -> (i32, i32) {
    %c0_i32 = arith.constant 0 : i32
    %c0_i32_0 = arith.constant 0 : i32
    %c0_i32_1 = arith.constant 0 : i32
    return %c0_i32, %c0_i32_0 : i32, i32
  }
  func.func @transform_2(%arg0: i32) -> (i32, i32) {
    %c0_i32 = arith.constant 0 : i32
    %c0_i32_0 = arith.constant 0 : i32
    return %arg0, %c0_i32 : i32, i32
  }
}

</mosaic_0001>

<llo_original>
// kernel: t5_forward.29
$region0: #{t5_forward.29}
  #allocation0 [shape = 'u32[]', space=smem, size = 0x4, offset = 0x4, fixed_abs, tag = 'smem constant byte address 0x4 - core index']
  #allocation1 [shape = 'u32[144,128]{1,0:T(1,128)}', space=vmem, size = 0x12000, scoped, tag = 'internal scratch']
  #allocation2 [shape = 'f32[16,96]{1,0:T(8,128)}', space=vmem, size = 0x2000, scoped, tag = 'scratch operand']
  #allocation3 [shape = 'bf16[16,32]{1,0:T(16,128)(2,1)}', space=vmem, size = 0x1000, scoped, tag = 'scratch operand']
  %s0 = inlined_call_operand.hbm [shape: bf16[16,32], index: 0, kind: input, shape index: {}]
  %s1 = inlined_call_operand.hbm [shape: bf16[32,96], index: 1, kind: input, shape index: {}]
  %s2 = inlined_call_operand.hbm [shape: f32[1,96], index: 2, kind: input, shape index: {}]
  %s3 = inlined_call_operand.hbm [shape: f32[1,32], index: 3, kind: input, shape index: {}]
  %s4 = inlined_call_operand.hbm [shape: bf16[16,96], index: 4, kind: output, shape index: {}]
  %s5 = sld [smem:[#allocation0]]
  $region54: #{t5_forward.29} parent=0
    _
  %s7 = ssub.s32 1, %s5
  %s8 = scalar_select 0, %s7, %s5
  $region1: #{t5_forward.29} parent=0
    #allocation4 [shape = 'u8[4096]{0}', space=vmem, size = 0x1000, scoped, tag = 'input window, operand 0, single buffered']
    #allocation5 [shape = 's32[1]{0}', space=sflag, size = 0x4, scoped, tag = 'scoped memory for t5_forward.29']
    #allocation6 [shape = 's32[1]{0}', space=sflag, size = 0x4, scoped, tag = 'scoped memory for t5_forward.29']
    #allocation7 [shape = 'u8[8192]{0}', space=vmem, size = 0x2000, scoped, tag = 'input window, operand 1, single buffered']
    #allocation8 [shape = 's32[1]{0}', space=sflag, size = 0x4, scoped, tag = 'scoped memory for t5_forward.29']
    #allocation9 [shape = 'u8[512]{0}', space=vmem, size = 0x400, scoped, tag = 'input window, operand 2, single buffered']
    #allocation10 [shape = 'u8[512]{0}', space=vmem, size = 0x400, scoped, tag = 'input window, operand 3, single buffered']
    #allocation11 [shape = 's32[1]{0}', space=sflag, size = 0x4, scoped, tag = 'scoped memory for t5_forward.29']
    #allocation12 [shape = 'u8[4096]{0}', space=vmem, size = 0x1000, scoped, tag = 'output window, operand 0, single buffered']
    %9 = vsyncpa [#allocation5], 0
    %10 = vsyncpa [#allocation8], 0
    %11 = vsyncpa [#allocation11], 0
    %12 = vsyncpa [#allocation6], 0
    // Predicated region
    $region2: #{t5_forward.29} parent=1 // pred_check
      _
    $region3: #{t5_forward.29} parent=1 // pred_check_branch
      %14 = sbr.rel (0) target = $region5
    $region4: #{t5_forward.29} parent=1 // pred_region
      %s16 = ssub.s32 128, 128
      %17 = vsyncadd [#allocation5], %s16
      %s18 = sshll.u32 [#allocation4], 4
      %s19 = int_to_ptr.vmem [resolvable:$true] %s18
      %24 = dma.hbm_to_vmem [thread:$0]  %s0, 128, %s19, [#allocation5], 64, 64, 4
    $region5: #{t5_forward.29} parent=1 // pred_fallthru
      _
    // Predicated region
    $region6: #{t5_forward.29} parent=1 // pred_check
      _
    $region7: #{t5_forward.29} parent=1 // pred_check_branch
      %26 = sbr.rel (0) target = $region9
    $region8: #{t5_forward.29} parent=1 // pred_region
      %s28 = ssub.s32 256, 256
      %29 = vsyncadd [#allocation8], %s28
      %s30 = sshll.u32 [#allocation7], 4
      %s31 = int_to_ptr.vmem [resolvable:$true] %s30
      %36 = dma.hbm_to_vmem [thread:$0]  %s1, 256, %s31, [#allocation8], 64, 64, 4
    $region9: #{t5_forward.29} parent=1 // pred_fallthru
      _
    // Predicated region
    $region10: #{t5_forward.29} parent=1 // pred_check
      _
    $region11: #{t5_forward.29} parent=1 // pred_check_branch
      %38 = sbr.rel (0) target = $region13
    $region12: #{t5_forward.29} parent=1 // pred_region
      %s40 = ssub.s32 16, 16
      %41 = vsyncadd [#allocation8], %s40
      %s43 = sshll.u32 [#allocation9], 4
      %s44 = int_to_ptr.vmem [resolvable:$true] %s43
      %46 = dma.hbm_to_vmem [thread:$0]  %s2, 16, %s44, [#allocation8]
    $region13: #{t5_forward.29} parent=1 // pred_fallthru
      _
    // Predicated region
    $region14: #{t5_forward.29} parent=1 // pred_check
      _
    $region15: #{t5_forward.29} parent=1 // pred_check_branch
      %48 = sbr.rel (0) target = $region17
    $region16: #{t5_forward.29} parent=1 // pred_region
      %s50 = ssub.s32 16, 16
      %51 = vsyncadd [#allocation11], %s50
      %s53 = sshll.u32 [#allocation10], 4
      %s54 = int_to_ptr.vmem [resolvable:$true] %s53
      %56 = dma.hbm_to_vmem [thread:$0]  %s3, 16, %s54, [#allocation11]
    $region17: #{t5_forward.29} parent=1 // pred_fallthru
      _
    // Predicated region
    $region18: #{t5_forward.29} parent=1 // pred_check
      _
    $region19: #{t5_forward.29} parent=1 // pred_check_branch
      %58 = sbr.rel (0) target = $region21
    $region20: #{t5_forward.29} parent=1 // pred_region
      %59 = dma.done [#allocation5], 128
    $region21: #{t5_forward.29} parent=1 // pred_fallthru
      _
    // Predicated region
    $region22: #{t5_forward.29} parent=1 // pred_check
      _
    $region23: #{t5_forward.29} parent=1 // pred_check_branch
      %61 = sbr.rel (0) target = $region25
    $region24: #{t5_forward.29} parent=1 // pred_region
      %62 = dma.done [#allocation8], 256
    $region25: #{t5_forward.29} parent=1 // pred_fallthru
      _
    // Predicated region
    $region26: #{t5_forward.29} parent=1 // pred_check
      _
    $region27: #{t5_forward.29} parent=1 // pred_check_branch
      %64 = sbr.rel (0) target = $region29
    $region28: #{t5_forward.29} parent=1 // pred_region
      %65 = dma.done [#allocation8], 16
    $region29: #{t5_forward.29} parent=1 // pred_fallthru
      _
    // Predicated region
    $region30: #{t5_forward.29} parent=1 // pred_check
      _
    $region31: #{t5_forward.29} parent=1 // pred_check_branch
      %67 = sbr.rel (0) target = $region33
    $region32: #{t5_forward.29} parent=1 // pred_region
      %68 = dma.done [#allocation11], 16
    $region33: #{t5_forward.29} parent=1 // pred_fallthru
      _
    %p70 = scmp.eq.s32.totalorder 0, 0
    // Predicated region
    $region34: #{t5_forward.29} parent=1 // pred_check
      %p71 = pneg %p70
    $region35: #{t5_forward.29} parent=1 // pred_check_branch
      %73 = sbr.rel (%p71) target = $region37
    $region36: #{t5_forward.29} parent=1 // pred_region
      %vm74 = vcmask 785408
      %75 = vst.msk [vmem:[#allocation2] sm:$0xff] %vm74, 0.0
      %76 = vst.msk [vmem:[#allocation2 + $0x8] sm:$0xff] %vm74, 0.0
    $region37: #{t5_forward.29} parent=1 // pred_fallthru
      _
    %p77 = scmp.eq.s32.totalorder 0, 0
    // Predicated region
    $region38: #{t5_forward.29} parent=1 // pred_check
      %p78 = pneg %p77
    $region39: #{t5_forward.29} parent=1 // pred_check_branch
      %80 = sbr.rel (%p78) target = $region41
    $region40: #{t5_forward.29} parent=1 // pred_region
      %v81 = vld [vmem:[#allocation4] sm:$0xf]
      %v82 = vld [vmem:[#allocation4 + $0x4] sm:$0xf]
      %v83 = vunpack.c.l.bf16 %v81
      %v84 = vunpack.c.l.bf16 %v82
      %v85 = vmul.f32 %v83, %v83
      %v86 = vmul.f32 %v84, %v84
      %vm87 = vcmask 261120
      %v88 = vsel %vm87, %v85, 0.0
      %89 = vadd.xlane.f32.xlu0 %v88
      %v90 = vpop.xlane.xlu0 %89
      %v91 = vsel %vm87, %v86, 0.0
      %92 = vadd.xlane.f32.xlu0 %v91
      %v93 = vpop.xlane.xlu0 %92
      %v94 = vmul.f32 %v90, 0.03125
      %v95 = vmul.f32 %v93, 0.03125
      %v96 = vadd.f32 %v94, 1e-06
      %v97 = vadd.f32 %v95, 1e-06
      %v98 = vrsqrt.pop %v96
      %v99 = vrsqrt.pop %v97
      %v100 = vmul.f32 %v83, %v98
      %v101 = vmul.f32 %v84, %v99
      %v102 = vld [vmem:[#allocation10] sm:$0x1]
      %v104 = vlaneseq
      %v105 = vshrl.u32 %v104, 7
      %v106 = vsub.s32 0, %v105
      %v107 = vrot.slane %v102, %v106
      %v109 = vmul.f32 %v100, %v107
      %v110 = vmul.f32 %v101, %v107
      %v111 = vpack.c.bf16 %v110, %v109
      %112 = vst.msk [vmem:[#allocation3] sm:$0xff] %vm87, %v111
    $region41: #{t5_forward.29} parent=1 // pred_fallthru
      _
    %v113 = vld [vmem:[#allocation3] sm:$0xff]
    %v114 = vld [vmem:[#allocation2] sm:$0xff]
    %v115 = vld [vmem:[#allocation2 + $0x8] sm:$0xff]
    %v116 = vld [vmem:[#allocation7] sm:$0xf]
    %v117 = vld [vmem:[#allocation7 + $0x4] sm:$0xf]
    %v118 = vld [vmem:[#allocation7 + $0x8] sm:$0xf]
    %v119 = vld [vmem:[#allocation7 + $0xc] sm:$0xf]
    %v124 = vunpack.c.l.b16 %v116
    %v125 = vunpack.c.l.b16 %v117
    %v126 = vunpack.c.l.b16 %v118
    %v127 = vunpack.c.l.b16 %v119
    %v128 = vpack.c.b16 %v125, %v124
    %v129 = vpack.c.b16 %v127, %v126
    %vm132 = vcmask 261120
    %v134 = vsel %vm132, %v113, 0
    %136 = vmatprep.subr.bf16.mxu0 0
    %137 = vmatpush1.bf16.msra.mxu0 %v128
    %138 = vmatprep.subr.bf16.mxu0 0
    %139 = vmatpush1.bf16.msra.mxu0 %v129
    %140 = vmatprep.subr.bf16.mxu0 0
    %141 = vmatpush1.bf16.msra.mxu0 0
    %142 = vmatprep.subr.bf16.mxu0 0
    %143 = vmatpush1.bf16.msra.mxu0 0
    %144 = vmatprep.subr.bf16.mxu0 0
    %145 = vmatpush1.bf16.msra.mxu0 0
    %146 = vmatprep.subr.bf16.mxu0 0
    %147 = vmatpush1.bf16.msra.mxu0 0
    %148 = vmatprep.subr.bf16.mxu0 0
    %149 = vmatpush1.bf16.msra.mxu0 0
    %150 = vmatprep.subr.bf16.mxu0 0
    %151 = vmatpush1.bf16.msra.mxu0 0
    %152 = vmatprep.subr.bf16.mxu0 0
    %153 = vmatpush1.bf16.msra.mxu0 0
    %154 = vmatprep.subr.bf16.mxu0 0
    %155 = vmatpush1.bf16.msra.mxu0 0
    %156 = vmatprep.subr.bf16.mxu0 0
    %157 = vmatpush1.bf16.msra.mxu0 0
    %158 = vmatprep.subr.bf16.mxu0 0
    %159 = vmatpush1.bf16.msra.mxu0 0
    %160 = vmatprep.subr.bf16.mxu0 0
    %161 = vmatpush1.bf16.msra.mxu0 0
    %162 = vmatprep.subr.bf16.mxu0 0
    %163 = vmatpush1.bf16.msra.mxu0 0
    %164 = vmatprep.subr.bf16.mxu0 0
    %165 = vmatpush1.bf16.msra.mxu0 0
    %166 = vmatprep.subr.bf16.mxu0 0
    %167 = vmatpush1.bf16.msra.mxu0 0
    %168 = vmatprep.mubr.bf16.mxu0 0
    %169 = vmatmul.mubr.bf16.gmra.mrb[0].mxu0 %v134
    %v170 = vpop.f32.mrb[0].mxu0
    %v171 = vadd.f32 0.0, %v170
    %v172 = vpop.f32.mrb[0].mxu0
    %v173 = vpop.f32.mrb[0].mxu0
    %v174 = vadd.f32 0.0, %v173
    %v175 = vpop.f32.mrb[0].mxu0
    %176 = vdwg.mxu0
    %v177 = vadd.f32 %v114, %v171
    %v178 = vadd.f32 %v115, %v174
    %vm179 = vcmask 785408
    %180 = vst.msk [vmem:[#allocation2] sm:$0xff] %vm179, %v177
    %181 = vst.msk [vmem:[#allocation2 + $0x8] sm:$0xff] %vm179, %v178
    // Predicated region
    $region42: #{t5_forward.29} parent=1 // pred_check
      %p182 = pneg %p70
    $region43: #{t5_forward.29} parent=1 // pred_check_branch
      %184 = sbr.rel (%p182) target = $region45
    $region44: #{t5_forward.29} parent=1 // pred_region
      %v185 = vld [vmem:[#allocation2] sm:$0xff]
      %v186 = vld [vmem:[#allocation2 + $0x8] sm:$0xff]
      %v187 = vld [vmem:[#allocation9] sm:$0x1]
      %v189 = vlaneseq
      %v190 = vshrl.u32 %v189, 7
      %v191 = vsub.s32 0, %v190
      %v192 = vrot.slane %v187, %v191
      %v194 = vadd.f32 %v185, %v192
      %v195 = vadd.f32 %v186, %v192
      %v196 = vpack.c.bf16 %v195, %v194
      %v198 = vunpack.c.l.b16 %v196
      %v199 = vunpack.c.h.b16 %v196
      %v200 = vpack.c.b16 %v198, %v198
      %v201 = vpack.c.b16 %v199, %v199
      %vm204 = vcmask 781312
      %205 = vst.msk [vmem:[#allocation12] sm:$0xf] %vm204, %v200
      %206 = vst.msk [vmem:[#allocation12 + $0x4] sm:$0xf] %vm204, %v201
    $region45: #{t5_forward.29} parent=1 // pred_fallthru
      _
    // Predicated region
    $region46: #{t5_forward.29} parent=1 // pred_check
      _
    $region47: #{t5_forward.29} parent=1 // pred_check_branch
      %208 = sbr.rel (0) target = $region49
    $region48: #{t5_forward.29} parent=1 // pred_region
      %s210 = ssub.s32 128, 128
      %211 = vsyncadd [#allocation6], %s210
      %s212 = sshll.u32 [#allocation12], 4
      %s213 = int_to_ptr.vmem [resolvable:$true] %s212
      %218 = dma.vmem_to_hbm [thread:$0]  %s213, 128, %s4, [#allocation6], 64, 64, 4
    $region49: #{t5_forward.29} parent=1 // pred_fallthru
      _
    // Predicated region
    $region50: #{t5_forward.29} parent=1 // pred_check
      _
    $region51: #{t5_forward.29} parent=1 // pred_check_branch
      %220 = sbr.rel (0) target = $region53
    $region52: #{t5_forward.29} parent=1 // pred_region
      %221 = dma.done [#allocation6], 128
    $region53: #{t5_forward.29} parent=1 // pred_fallthru
      _
    %222 = vsyncpa [#allocation5], 1
    %223 = vsyncpa [#allocation8], 1
    %224 = vsyncpa [#allocation11], 1
    %225 = vsyncpa [#allocation6], 1

// kernel: t5_forward.32
$region0: #{t5_forward.32}
  #allocation0 [shape = 'u32[]', space=smem, size = 0x4, offset = 0x4, fixed_abs, tag = 'smem constant byte address 0x4 - core index']
  #allocation1 [shape = 'u32[144,128]{1,0:T(1,128)}', space=vmem, size = 0x12000, scoped, tag = 'internal scratch']
  #allocation2 [shape = 'f32[16,64]{1,0:T(8,128)}', space=vmem, size = 0x2000, scoped, tag = 'scratch operand']
  #allocation3 [shape = 'bf16[16,32]{1,0:T(16,128)(2,1)}', space=vmem, size = 0x1000, scoped, tag = 'scratch operand']
  %s0 = inlined_call_operand.hbm [shape: bf16[16,32], index: 0, kind: input, shape index: {}]
  %s1 = inlined_call_operand.hbm [shape: bf16[32,64], index: 1, kind: input, shape index: {}]
  %s2 = inlined_call_operand.hbm [shape: f32[1,64], index: 2, kind: input, shape index: {}]
  %s3 = inlined_call_operand.hbm [shape: f32[1,32], index: 3, kind: input, shape index: {}]
  %s4 = inlined_call_operand.hbm [shape: bf16[16,64], index: 4, kind: output, shape index: {}]
  %s5 = sld [smem:[#allocation0]]
  $region54: #{t5_forward.32} parent=0
    _
  %s7 = ssub.s32 1, %s5
  %s8 = scalar_select 0, %s7, %s5
  $region1: #{t5_forward.32} parent=0
    #allocation4 [shape = 'u8[4096]{0}', space=vmem, size = 0x1000, scoped, tag = 'input window, operand 0, single buffered']
    #allocation5 [shape = 's32[1]{0}', space=sflag, size = 0x4, scoped, tag = 'scoped memory for t5_forward.32']
    #allocation6 [shape = 's32[1]{0}', space=sflag, size = 0x4, scoped, tag = 'scoped memory for t5_forward.32']
    #allocation7 [shape = 'u8[8192]{0}', space=vmem, size = 0x2000, scoped, tag = 'input window, operand 1, single buffered']
    #allocation8 [shape = 's32[1]{0}', space=sflag, size = 0x4, scoped, tag = 'scoped memory for t5_forward.32']
    #allocation9 [shape = 'u8[512]{0}', space=vmem, size = 0x400, scoped, tag = 'input window, operand 2, single buffered']
    #allocation10 [shape = 'u8[512]{0}', space=vmem, size = 0x400, scoped, tag = 'input window, operand 3, single buffered']
    #allocation11 [shape = 's32[1]{0}', space=sflag, size = 0x4, scoped, tag = 'scoped memory for t5_forward.32']
    #allocation12 [shape = 'u8[4096]{0}', space=vmem, size = 0x1000, scoped, tag = 'output window, operand 0, single buffered']
    %9 = vsyncpa [#allocation5], 0
    %10 = vsyncpa [#allocation8], 0
    %11 = vsyncpa [#allocation11], 0
    %12 = vsyncpa [#allocation6], 0
    // Predicated region
    $region2: #{t5_forward.32} parent=1 // pred_check
      _
    $region3: #{t5_forward.32} parent=1 // pred_check_branch
      %14 = sbr.rel (0) target = $region5
    $region4: #{t5_forward.32} parent=1 // pred_region
      %s16 = ssub.s32 128, 128
      %17 = vsyncadd [#allocation5], %s16
      %s18 = sshll.u32 [#allocation4], 4
      %s19 = int_to_ptr.vmem [resolvable:$true] %s18
      %24 = dma.hbm_to_vmem [thread:$0]  %s0, 128, %s19, [#allocation5], 64, 64, 4
    $region5: #{t5_forward.32} parent=1 // pred_fallthru
      _
    // Predicated region
    $region6: #{t5_forward.32} parent=1 // pred_check
      _
    $region7: #{t5_forward.32} parent=1 // pred_check_branch
      %26 = sbr.rel (0) target = $region9
    $region8: #{t5_forward.32} parent=1 // pred_region
      %s28 = ssub.s32 256, 256
      %29 = vsyncadd [#allocation8], %s28
      %s30 = sshll.u32 [#allocation7], 4
      %s31 = int_to_ptr.vmem [resolvable:$true] %s30
      %36 = dma.hbm_to_vmem [thread:$0]  %s1, 256, %s31, [#allocation8], 64, 64, 4
    $region9: #{t5_forward.32} parent=1 // pred_fallthru
      _
    // Predicated region
    $region10: #{t5_forward.32} parent=1 // pred_check
      _
    $region11: #{t5_forward.32} parent=1 // pred_check_branch
      %38 = sbr.rel (0) target = $region13
    $region12: #{t5_forward.32} parent=1 // pred_region
      %s40 = ssub.s32 16, 16
      %41 = vsyncadd [#allocation8], %s40
      %s43 = sshll.u32 [#allocation9], 4
      %s44 = int_to_ptr.vmem [resolvable:$true] %s43
      %46 = dma.hbm_to_vmem [thread:$0]  %s2, 16, %s44, [#allocation8]
    $region13: #{t5_forward.32} parent=1 // pred_fallthru
      _
    // Predicated region
    $region14: #{t5_forward.32} parent=1 // pred_check
      _
    $region15: #{t5_forward.32} parent=1 // pred_check_branch
      %48 = sbr.rel (0) target = $region17
    $region16: #{t5_forward.32} parent=1 // pred_region
      %s50 = ssub.s32 16, 16
      %51 = vsyncadd [#allocation11], %s50
      %s53 = sshll.u32 [#allocation10], 4
      %s54 = int_to_ptr.vmem [resolvable:$true] %s53
      %56 = dma.hbm_to_vmem [thread:$0]  %s3, 16, %s54, [#allocation11]
    $region17: #{t5_forward.32} parent=1 // pred_fallthru
      _
    // Predicated region
    $region18: #{t5_forward.32} parent=1 // pred_check
      _
    $region19: #{t5_forward.32} parent=1 // pred_check_branch
      %58 = sbr.rel (0) target = $region21
    $region20: #{t5_forward.32} parent=1 // pred_region
      %59 = dma.done [#allocation5], 128
    $region21: #{t5_forward.32} parent=1 // pred_fallthru
      _
    // Predicated region
    $region22: #{t5_forward.32} parent=1 // pred_check
      _
    $region23: #{t5_forward.32} parent=1 // pred_check_branch
      %61 = sbr.rel (0) target = $region25
    $region24: #{t5_forward.32} parent=1 // pred_region
      %62 = dma.done [#allocation8], 256
    $region25: #{t5_forward.32} parent=1 // pred_fallthru
      _
    // Predicated region
    $region26: #{t5_forward.32} parent=1 // pred_check
      _
    $region27: #{t5_forward.32} parent=1 // pred_check_branch
      %64 = sbr.rel (0) target = $region29
    $region28: #{t5_forward.32} parent=1 // pred_region
      %65 = dma.done [#allocation8], 16
    $region29: #{t5_forward.32} parent=1 // pred_fallthru
      _
    // Predicated region
    $region30: #{t5_forward.32} parent=1 // pred_check
      _
    $region31: #{t5_forward.32} parent=1 // pred_check_branch
      %67 = sbr.rel (0) target = $region33
    $region32: #{t5_forward.32} parent=1 // pred_region
      %68 = dma.done [#allocation11], 16
    $region33: #{t5_forward.32} parent=1 // pred_fallthru
      _
    %p70 = scmp.eq.s32.totalorder 0, 0
    // Predicated region
    $region34: #{t5_forward.32} parent=1 // pred_check
      %p71 = pneg %p70
    $region35: #{t5_forward.32} parent=1 // pred_check_branch
      %73 = sbr.rel (%p71) target = $region37
    $region36: #{t5_forward.32} parent=1 // pred_region
      %vm74 = vcmask 523264
      %75 = vst.msk [vmem:[#allocation2] sm:$0xff] %vm74, 0.0
      %76 = vst.msk [vmem:[#allocation2 + $0x8] sm:$0xff] %vm74, 0.0
    $region37: #{t5_forward.32} parent=1 // pred_fallthru
      _
    %p77 = scmp.eq.s32.totalorder 0, 0
    // Predicated region
    $region38: #{t5_forward.32} parent=1 // pred_check
      %p78 = pneg %p77
    $region39: #{t5_forward.32} parent=1 // pred_check_branch
      %80 = sbr.rel (%p78) target = $region41
    $region40: #{t5_forward.32} parent=1 // pred_region
      %v81 = vld [vmem:[#allocation4] sm:$0xf]
      %v82 = vld [vmem:[#allocation4 + $0x4] sm:$0xf]
      %v83 = vunpack.c.l.bf16 %v81
      %v84 = vunpack.c.l.bf16 %v82
      %v85 = vmul.f32 %v83, %v83
      %v86 = vmul.f32 %v84, %v84
      %vm87 = vcmask 261120
      %v88 = vsel %vm87, %v85, 0.0
      %89 = vadd.xlane.f32.xlu0 %v88
      %v90 = vpop.xlane.xlu0 %89
      %v91 = vsel %vm87, %v86, 0.0
      %92 = vadd.xlane.f32.xlu0 %v91
      %v93 = vpop.xlane.xlu0 %92
      %v94 = vmul.f32 %v90, 0.03125
      %v95 = vmul.f32 %v93, 0.03125
      %v96 = vadd.f32 %v94, 1e-06
      %v97 = vadd.f32 %v95, 1e-06
      %v98 = vrsqrt.pop %v96
      %v99 = vrsqrt.pop %v97
      %v100 = vmul.f32 %v83, %v98
      %v101 = vmul.f32 %v84, %v99
      %v102 = vld [vmem:[#allocation10] sm:$0x1]
      %v104 = vlaneseq
      %v105 = vshrl.u32 %v104, 7
      %v106 = vsub.s32 0, %v105
      %v107 = vrot.slane %v102, %v106
      %v109 = vmul.f32 %v100, %v107
      %v110 = vmul.f32 %v101, %v107
      %v111 = vpack.c.bf16 %v110, %v109
      %112 = vst.msk [vmem:[#allocation3] sm:$0xff] %vm87, %v111
    $region41: #{t5_forward.32} parent=1 // pred_fallthru
      _
    %v113 = vld [vmem:[#allocation3] sm:$0xff]
    %v114 = vld [vmem:[#allocation2] sm:$0xff]
    %v115 = vld [vmem:[#allocation2 + $0x8] sm:$0xff]
    %v116 = vld [vmem:[#allocation7] sm:$0xf]
    %v117 = vld [vmem:[#allocation7 + $0x4] sm:$0xf]
    %v118 = vld [vmem:[#allocation7 + $0x8] sm:$0xf]
    %v119 = vld [vmem:[#allocation7 + $0xc] sm:$0xf]
    %v124 = vunpack.c.l.b16 %v116
    %v125 = vunpack.c.l.b16 %v117
    %v126 = vunpack.c.l.b16 %v118
    %v127 = vunpack.c.l.b16 %v119
    %v128 = vpack.c.b16 %v125, %v124
    %v129 = vpack.c.b16 %v127, %v126
    %vm132 = vcmask 261120
    %v134 = vsel %vm132, %v113, 0
    %136 = vmatprep.subr.bf16.mxu0 0
    %137 = vmatpush1.bf16.msra.mxu0 %v128
    %138 = vmatprep.subr.bf16.mxu0 0
    %139 = vmatpush1.bf16.msra.mxu0 %v129
    %140 = vmatprep.subr.bf16.mxu0 0
    %141 = vmatpush1.bf16.msra.mxu0 0
    %142 = vmatprep.subr.bf16.mxu0 0
    %143 = vmatpush1.bf16.msra.mxu0 0
    %144 = vmatprep.subr.bf16.mxu0 0
    %145 = vmatpush1.bf16.msra.mxu0 0
    %146 = vmatprep.subr.bf16.mxu0 0
    %147 = vmatpush1.bf16.msra.mxu0 0
    %148 = vmatprep.subr.bf16.mxu0 0
    %149 = vmatpush1.bf16.msra.mxu0 0
    %150 = vmatprep.subr.bf16.mxu0 0
    %151 = vmatpush1.bf16.msra.mxu0 0
    %152 = vmatprep.subr.bf16.mxu0 0
    %153 = vmatpush1.bf16.msra.mxu0 0
    %154 = vmatprep.subr.bf16.mxu0 0
    %155 = vmatpush1.bf16.msra.mxu0 0
    %156 = vmatprep.subr.bf16.mxu0 0
    %157 = vmatpush1.bf16.msra.mxu0 0
    %158 = vmatprep.subr.bf16.mxu0 0
    %159 = vmatpush1.bf16.msra.mxu0 0
    %160 = vmatprep.subr.bf16.mxu0 0
    %161 = vmatpush1.bf16.msra.mxu0 0
    %162 = vmatprep.subr.bf16.mxu0 0
    %163 = vmatpush1.bf16.msra.mxu0 0
    %164 = vmatprep.subr.bf16.mxu0 0
    %165 = vmatpush1.bf16.msra.mxu0 0
    %166 = vmatprep.subr.bf16.mxu0 0
    %167 = vmatpush1.bf16.msra.mxu0 0
    %168 = vmatprep.mubr.bf16.mxu0 0
    %169 = vmatmul.mubr.bf16.gmra.mrb[0].mxu0 %v134
    %v170 = vpop.f32.mrb[0].mxu0
    %v171 = vadd.f32 0.0, %v170
    %v172 = vpop.f32.mrb[0].mxu0
    %v173 = vpop.f32.mrb[0].mxu0
    %v174 = vadd.f32 0.0, %v173
    %v175 = vpop.f32.mrb[0].mxu0
    %176 = vdwg.mxu0
    %v177 = vadd.f32 %v114, %v171
    %v178 = vadd.f32 %v115, %v174
    %vm179 = vcmask 523264
    %180 = vst.msk [vmem:[#allocation2] sm:$0xff] %vm179, %v177
    %181 = vst.msk [vmem:[#allocation2 + $0x8] sm:$0xff] %vm179, %v178
    // Predicated region
    $region42: #{t5_forward.32} parent=1 // pred_check
      %p182 = pneg %p70
    $region43: #{t5_forward.32} parent=1 // pred_check_branch
      %184 = sbr.rel (%p182) target = $region45
    $region44: #{t5_forward.32} parent=1 // pred_region
      %v185 = vld [vmem:[#allocation2] sm:$0xff]
      %v186 = vld [vmem:[#allocation2 + $0x8] sm:$0xff]
      %v187 = vld [vmem:[#allocation9] sm:$0x1]
      %v189 = vlaneseq
      %v190 = vshrl.u32 %v189, 7
      %v191 = vsub.s32 0, %v190
      %v192 = vrot.slane %v187, %v191
      %v194 = vadd.f32 %v185, %v192
      %v195 = vadd.f32 %v186, %v192
      %v196 = vmax.f32 %v194, 0.0
      %v197 = vmax.f32 %v195, 0.0
      %v198 = vpack.c.bf16 %v197, %v196
      %v200 = vunpack.c.l.b16 %v198
      %v201 = vunpack.c.h.b16 %v198
      %v202 = vpack.c.b16 %v200, %v200
      %v203 = vpack.c.b16 %v201, %v201
      %vm206 = vcmask 519168
      %207 = vst.msk [vmem:[#allocation12] sm:$0xf] %vm206, %v202
      %208 = vst.msk [vmem:[#allocation12 + $0x4] sm:$0xf] %vm206, %v203
    $region45: #{t5_forward.32} parent=1 // pred_fallthru
      _
    // Predicated region
    $region46: #{t5_forward.32} parent=1 // pred_check
      _
    $region47: #{t5_forward.32} parent=1 // pred_check_branch
      %210 = sbr.rel (0) target = $region49
    $region48: #{t5_forward.32} parent=1 // pred_region
      %s212 = ssub.s32 128, 128
      %213 = vsyncadd [#allocation6], %s212
      %s214 = sshll.u32 [#allocation12], 4
      %s215 = int_to_ptr.vmem [resolvable:$true] %s214
      %220 = dma.vmem_to_hbm [thread:$0]  %s215, 128, %s4, [#allocation6], 64, 64, 4
    $region49: #{t5_forward.32} parent=1 // pred_fallthru
      _
    // Predicated region
    $region50: #{t5_forward.32} parent=1 // pred_check
      _
    $region51: #{t5_forward.32} parent=1 // pred_check_branch
      %222 = sbr.rel (0) target = $region53
    $region52: #{t5_forward.32} parent=1 // pred_region
      %223 = dma.done [#allocation6], 128
    $region53: #{t5_forward.32} parent=1 // pred_fallthru
      _
    %224 = vsyncpa [#allocation5], 1
    %225 = vsyncpa [#allocation8], 1
    %226 = vsyncpa [#allocation11], 1
    %227 = vsyncpa [#allocation6], 1

// kernel: t5_forward.31
$region0: #{t5_forward.31}
  #allocation0 [shape = 'u32[]', space=smem, size = 0x4, offset = 0x4, fixed_abs, tag = 'smem constant byte address 0x4 - core index']
  #allocation1 [shape = 'u32[144,128]{1,0:T(1,128)}', space=vmem, size = 0x12000, scoped, tag = 'internal scratch']
  #allocation2 [shape = 'f32[16,32]{1,0:T(8,128)}', space=vmem, size = 0x2000, scoped, tag = 'scratch operand']
  %s0 = inlined_call_operand.hbm [shape: bf16[16,32], index: 0, kind: input, shape index: {}]
  %s1 = inlined_call_operand.hbm [shape: bf16[32,32], index: 1, kind: input, shape index: {}]
  %s2 = inlined_call_operand.hbm [shape: f32[1,32], index: 2, kind: input, shape index: {}]
  %s3 = inlined_call_operand.hbm [shape: bf16[16,32], index: 3, kind: input, shape index: {}]
  %s4 = inlined_call_operand.hbm [shape: bf16[16,32], index: 4, kind: output, shape index: {}]
  %s5 = sld [smem:[#allocation0]]
  $region50: #{t5_forward.31} parent=0
    _
  %s7 = ssub.s32 1, %s5
  %s8 = scalar_select 0, %s7, %s5
  $region1: #{t5_forward.31} parent=0
    #allocation3 [shape = 'u8[4096]{0}', space=vmem, size = 0x1000, scoped, tag = 'input window, operand 0, single buffered']
    #allocation4 [shape = 's32[1]{0}', space=sflag, size = 0x4, scoped, tag = 'scoped memory for t5_forward.31']
    #allocation5 [shape = 's32[1]{0}', space=sflag, size = 0x4, scoped, tag = 'scoped memory for t5_forward.31']
    #allocation6 [shape = 'u8[8192]{0}', space=vmem, size = 0x2000, scoped, tag = 'input window, operand 1, single buffered']
    #allocation7 [shape = 's32[1]{0}', space=sflag, size = 0x4, scoped, tag = 'scoped memory for t5_forward.31']
    #allocation8 [shape = 'u8[512]{0}', space=vmem, size = 0x400, scoped, tag = 'input window, operand 2, single buffered']
    #allocation9 [shape = 'u8[4096]{0}', space=vmem, size = 0x1000, scoped, tag = 'input window, operand 3, single buffered']
    #allocation10 [shape = 's32[1]{0}', space=sflag, size = 0x4, scoped, tag = 'scoped memory for t5_forward.31']
    #allocation11 [shape = 'u8[4096]{0}', space=vmem, size = 0x1000, scoped, tag = 'output window, operand 0, single buffered']
    %9 = vsyncpa [#allocation4], 0
    %10 = vsyncpa [#allocation7], 0
    %11 = vsyncpa [#allocation10], 0
    %12 = vsyncpa [#allocation5], 0
    // Predicated region
    $region2: #{t5_forward.31} parent=1 // pred_check
      _
    $region3: #{t5_forward.31} parent=1 // pred_check_branch
      %14 = sbr.rel (0) target = $region5
    $region4: #{t5_forward.31} parent=1 // pred_region
      %s16 = ssub.s32 128, 128
      %17 = vsyncadd [#allocation4], %s16
      %s18 = sshll.u32 [#allocation3], 4
      %s19 = int_to_ptr.vmem [resolvable:$true] %s18
      %24 = dma.hbm_to_vmem [thread:$0]  %s0, 128, %s19, [#allocation4], 64, 64, 4
    $region5: #{t5_forward.31} parent=1 // pred_fallthru
      _
    // Predicated region
    $region6: #{t5_forward.31} parent=1 // pred_check
      _
    $region7: #{t5_forward.31} parent=1 // pred_check_branch
      %26 = sbr.rel (0) target = $region9
    $region8: #{t5_forward.31} parent=1 // pred_region
      %s28 = ssub.s32 256, 256
      %29 = vsyncadd [#allocation7], %s28
      %s30 = sshll.u32 [#allocation6], 4
      %s31 = int_to_ptr.vmem [resolvable:$true] %s30
      %36 = dma.hbm_to_vmem [thread:$0]  %s1, 256, %s31, [#allocation7], 64, 64, 4
    $region9: #{t5_forward.31} parent=1 // pred_fallthru
      _
    // Predicated region
    $region10: #{t5_forward.31} parent=1 // pred_check
      _
    $region11: #{t5_forward.31} parent=1 // pred_check_branch
      %38 = sbr.rel (0) target = $region13
    $region12: #{t5_forward.31} parent=1 // pred_region
      %s40 = ssub.s32 16, 16
      %41 = vsyncadd [#allocation7], %s40
      %s43 = sshll.u32 [#allocation8], 4
      %s44 = int_to_ptr.vmem [resolvable:$true] %s43
      %46 = dma.hbm_to_vmem [thread:$0]  %s2, 16, %s44, [#allocation7]
    $region13: #{t5_forward.31} parent=1 // pred_fallthru
      _
    // Predicated region
    $region14: #{t5_forward.31} parent=1 // pred_check
      _
    $region15: #{t5_forward.31} parent=1 // pred_check_branch
      %48 = sbr.rel (0) target = $region17
    $region16: #{t5_forward.31} parent=1 // pred_region
      %s50 = ssub.s32 128, 128
      %51 = vsyncadd [#allocation10], %s50
      %s52 = sshll.u32 [#allocation9], 4
      %s53 = int_to_ptr.vmem [resolvable:$true] %s52
      %58 = dma.hbm_to_vmem [thread:$0]  %s3, 128, %s53, [#allocation10], 64, 64, 4
    $region17: #{t5_forward.31} parent=1 // pred_fallthru
      _
    // Predicated region
    $region18: #{t5_forward.31} parent=1 // pred_check
      _
    $region19: #{t5_forward.31} parent=1 // pred_check_branch
      %60 = sbr.rel (0) target = $region21
    $region20: #{t5_forward.31} parent=1 // pred_region
      %61 = dma.done [#allocation4], 128
    $region21: #{t5_forward.31} parent=1 // pred_fallthru
      _
    // Predicated region
    $region22: #{t5_forward.31} parent=1 // pred_check
      _
    $region23: #{t5_forward.31} parent=1 // pred_check_branch
      %63 = sbr.rel (0) target = $region25
    $region24: #{t5_forward.31} parent=1 // pred_region
      %64 = dma.done [#allocation7], 256
    $region25: #{t5_forward.31} parent=1 // pred_fallthru
      _
    // Predicated region
    $region26: #{t5_forward.31} parent=1 // pred_check
      _
    $region27: #{t5_forward.31} parent=1 // pred_check_branch
      %66 = sbr.rel (0) target = $region29
    $region28: #{t5_forward.31} parent=1 // pred_region
      %67 = dma.done [#allocation7], 16
    $region29: #{t5_forward.31} parent=1 // pred_fallthru
      _
    // Predicated region
    $region30: #{t5_forward.31} parent=1 // pred_check
      _
    $region31: #{t5_forward.31} parent=1 // pred_check_branch
      %69 = sbr.rel (0) target = $region33
    $region32: #{t5_forward.31} parent=1 // pred_region
      %70 = dma.done [#allocation10], 128
    $region33: #{t5_forward.31} parent=1 // pred_fallthru
      _
    %p72 = scmp.eq.s32.totalorder 0, 0
    // Predicated region
    $region34: #{t5_forward.31} parent=1 // pred_check
      %p73 = pneg %p72
    $region35: #{t5_forward.31} parent=1 // pred_check_branch
      %75 = sbr.rel (%p73) target = $region37
    $region36: #{t5_forward.31} parent=1 // pred_region
      %vm76 = vcmask 261120
      %77 = vst.msk [vmem:[#allocation2] sm:$0xff] %vm76, 0.0
      %78 = vst.msk [vmem:[#allocation2 + $0x8] sm:$0xff] %vm76, 0.0
    $region37: #{t5_forward.31} parent=1 // pred_fallthru
      _
    %v79 = vld [vmem:[#allocation3] sm:$0xf]
    %v80 = vld [vmem:[#allocation3 + $0x4] sm:$0xf]
    %v81 = vld [vmem:[#allocation2] sm:$0xff]
    %v82 = vld [vmem:[#allocation2 + $0x8] sm:$0xff]
    %v83 = vld [vmem:[#allocation6] sm:$0xf]
    %v84 = vld [vmem:[#allocation6 + $0x4] sm:$0xf]
    %v85 = vld [vmem:[#allocation6 + $0x8] sm:$0xf]
    %v86 = vld [vmem:[#allocation6 + $0xc] sm:$0xf]
    %v89 = vunpack.c.l.b16 %v79
    %v90 = vunpack.c.l.b16 %v80
    %v91 = vpack.c.b16 %v90, %v89
    %v96 = vunpack.c.l.b16 %v83
    %v97 = vunpack.c.l.b16 %v84
    %v98 = vunpack.c.l.b16 %v85
    %v99 = vunpack.c.l.b16 %v86
    %v100 = vpack.c.b16 %v97, %v96
    %v101 = vpack.c.b16 %v99, %v98
    %vm104 = vcmask 261120
    %v106 = vsel %vm104, %v91, 0
    %108 = vmatprep.subr.bf16.mxu0 0
    %109 = vmatpush1.bf16.msra.mxu0 %v100
    %110 = vmatprep.subr.bf16.mxu0 0
    %111 = vmatpush1.bf16.msra.mxu0 %v101
    %112 = vmatprep.subr.bf16.mxu0 0
    %113 = vmatpush1.bf16.msra.mxu0 0
    %114 = vmatprep.subr.bf16.mxu0 0
    %115 = vmatpush1.bf16.msra.mxu0 0
    %116 = vmatprep.subr.bf16.mxu0 0
    %117 = vmatpush1.bf16.msra.mxu0 0
    %118 = vmatprep.subr.bf16.mxu0 0
    %119 = vmatpush1.bf16.msra.mxu0 0
    %120 = vmatprep.subr.bf16.mxu0 0
    %121 = vmatpush1.bf16.msra.mxu0 0
    %122 = vmatprep.subr.bf16.mxu0 0
    %123 = vmatpush1.bf16.msra.mxu0 0
    %124 = vmatprep.subr.bf16.mxu0 0
    %125 = vmatpush1.bf16.msra.mxu0 0
    %126 = vmatprep.subr.bf16.mxu0 0
    %127 = vmatpush1.bf16.msra.mxu0 0
    %128 = vmatprep.subr.bf16.mxu0 0
    %129 = vmatpush1.bf16.msra.mxu0 0
    %130 = vmatprep.subr.bf16.mxu0 0
    %131 = vmatpush1.bf16.msra.mxu0 0
    %132 = vmatprep.subr.bf16.mxu0 0
    %133 = vmatpush1.bf16.msra.mxu0 0
    %134 = vmatprep.subr.bf16.mxu0 0
    %135 = vmatpush1.bf16.msra.mxu0 0
    %136 = vmatprep.subr.bf16.mxu0 0
    %137 = vmatpush1.bf16.msra.mxu0 0
    %138 = vmatprep.subr.bf16.mxu0 0
    %139 = vmatpush1.bf16.msra.mxu0 0
    %140 = vmatprep.mubr.bf16.mxu0 0
    %141 = vmatmul.mubr.bf16.gmra.mrb[0].mxu0 %v106
    %v142 = vpop.f32.mrb[0].mxu0
    %v143 = vadd.f32 0.0, %v142
    %v144 = vpop.f32.mrb[0].mxu0
    %v145 = vpop.f32.mrb[0].mxu0
    %v146 = vadd.f32 0.0, %v145
    %v147 = vpop.f32.mrb[0].mxu0
    %148 = vdwg.mxu0
    %v149 = vadd.f32 %v81, %v143
    %v150 = vadd.f32 %v82, %v146
    %151 = vst.msk [vmem:[#allocation2] sm:$0xff] %vm104, %v149
    %152 = vst.msk [vmem:[#allocation2 + $0x8] sm:$0xff] %vm104, %v150
    // Predicated region
    $region38: #{t5_forward.31} parent=1 // pred_check
      %p153 = pneg %p72
    $region39: #{t5_forward.31} parent=1 // pred_check_branch
      %155 = sbr.rel (%p153) target = $region41
    $region40: #{t5_forward.31} parent=1 // pred_region
      %v156 = vld [vmem:[#allocation2] sm:$0xff]
      %v157 = vld [vmem:[#allocation2 + $0x8] sm:$0xff]
      %v158 = vld [vmem:[#allocation8] sm:$0x1]
      %v160 = vlaneseq
      %v161 = vshrl.u32 %v160, 7
      %v162 = vsub.s32 0, %v161
      %v163 = vrot.slane %v158, %v162
      %v165 = vadd.f32 %v156, %v163
      %v166 = vadd.f32 %v157, %v163
      %v167 = vld [vmem:[#allocation9] sm:$0xf]
      %v168 = vld [vmem:[#allocation9 + $0x4] sm:$0xf]
      %v169 = vunpack.c.l.bf16 %v167
      %v170 = vunpack.c.l.bf16 %v168
      %v171 = vadd.f32 %v165, %v169
      %v172 = vadd.f32 %v166, %v170
      %v173 = vpack.c.bf16 %v172, %v171
      %v175 = vunpack.c.l.b16 %v173
      %v176 = vunpack.c.h.b16 %v173
      %v177 = vpack.c.b16 %v175, %v175
      %v178 = vpack.c.b16 %v176, %v176
      %vm181 = vcmask 257024
      %182 = vst.msk [vmem:[#allocation11] sm:$0xf] %vm181, %v177
      %183 = vst.msk [vmem:[#allocation11 + $0x4] sm:$0xf] %vm181, %v178
    $region41: #{t5_forward.31} parent=1 // pred_fallthru
      _
    // Predicated region
    $region42: #{t5_forward.31} parent=1 // pred_check
      _
    $region43: #{t5_forward.31} parent=1 // pred_check_branch
      %185 = sbr.rel (0) target = $region45
    $region44: #{t5_forward.31} parent=1 // pred_region
      %s187 = ssub.s32 128, 128
      %188 = vsyncadd [#allocation5], %s187
      %s189 = sshll.u32 [#allocation11], 4
      %s190 = int_to_ptr.vmem [resolvable:$true] %s189
      %195 = dma.vmem_to_hbm [thread:$0]  %s190, 128, %s4, [#allocation5], 64, 64, 4
    $region45: #{t5_forward.31} parent=1 // pred_fallthru
      _
    // Predicated region
    $region46: #{t5_forward.31} parent=1 // pred_check
      _
    $region47: #{t5_forward.31} parent=1 // pred_check_branch
      %197 = sbr.rel (0) target = $region49
    $region48: #{t5_forward.31} parent=1 // pred_region
      %198 = dma.done [#allocation5], 128
    $region49: #{t5_forward.31} parent=1 // pred_fallthru
      _
    %199 = vsyncpa [#allocation4], 1
    %200 = vsyncpa [#allocation7], 1
    %201 = vsyncpa [#allocation10], 1
    %202 = vsyncpa [#allocation5], 1

// kernel: t5_forward.30
$region0: #{t5_forward.30}
  #allocation0 [shape = 'u32[]', space=smem, size = 0x4, offset = 0x4, fixed_abs, tag = 'smem constant byte address 0x4 - core index']
  #allocation1 [shape = 'u32[144,128]{1,0:T(1,128)}', space=vmem, size = 0x12000, scoped, tag = 'internal scratch']
  #allocation2 [shape = 'f32[4,8,1]{2,1,0:T(8,128)}', space=vmem, size = 0x4000, scoped, tag = 'scratch operand']
  #allocation3 [shape = 'f32[4,8,1]{2,1,0:T(8,128)}', space=vmem, size = 0x4000, scoped, tag = 'scratch operand']
  #allocation4 [shape = 'f32[4,8,8]{2,1,0:T(8,128)}', space=vmem, size = 0x4000, scoped, tag = 'scratch operand']
  %s0 = inlined_call_operand.hbm [shape: f32[2,1,8], index: 0, kind: input, shape index: {}]
  %s1 = inlined_call_operand.hbm [shape: bf16[2,4,8,8], index: 1, kind: input, shape index: {}]
  %s2 = inlined_call_operand.hbm [shape: bf16[2,4,8,8], index: 2, kind: input, shape index: {}]
  %s3 = inlined_call_operand.hbm [shape: bf16[2,4,8,8], index: 3, kind: input, shape index: {}]
  %s4 = inlined_call_operand.hbm [shape: bf16[2,4,8,8], index: 4, kind: output, shape index: {}]
  %s5 = sld [smem:[#allocation0]]
  $region73: #{t5_forward.30} parent=0
    _
  %s7 = ssub.s32 1, %s5
  %s8 = scalar_select 0, %s7, %s5
  $region1: #{t5_forward.30} parent=0
    #allocation5 [shape = 'u8[1024]{0}', space=vmem, size = 0x400, scoped, tag = 'input window, operand 0']
    #allocation6 [shape = 's32[2]{0}', space=sflag, size = 0x8, scoped, tag = 'scoped memory for t5_forward.30']
    #allocation7 [shape = 's32[2]{0}', space=sflag, size = 0x8, scoped, tag = 'scoped memory for t5_forward.30']
    #allocation8 [shape = 'u8[16384]{0}', space=vmem, size = 0x4000, scoped, tag = 'input window, operand 1']
    #allocation9 [shape = 's32[2]{0}', space=sflag, size = 0x8, scoped, tag = 'scoped memory for t5_forward.30']
    #allocation10 [shape = 'u8[16384]{0}', space=vmem, size = 0x4000, scoped, tag = 'input window, operand 2']
    #allocation11 [shape = 'u8[16384]{0}', space=vmem, size = 0x4000, scoped, tag = 'input window, operand 3']
    #allocation12 [shape = 's32[2]{0}', space=sflag, size = 0x8, scoped, tag = 'scoped memory for t5_forward.30']
    #allocation13 [shape = 'u8[16384]{0}', space=vmem, size = 0x4000, scoped, tag = 'output window, operand 0']
    %9 = vsyncpa [#allocation6], 0
    %s10 = scalar_lea.sflag [#allocation6], 1
    %11 = vsyncpa %s10, 0
    %12 = vsyncpa [#allocation9], 0
    %s13 = scalar_lea.sflag [#allocation9], 1
    %14 = vsyncpa %s13, 0
    %15 = vsyncpa [#allocation12], 0
    %s16 = scalar_lea.sflag [#allocation12], 1
    %17 = vsyncpa %s16, 0
    %18 = vsyncpa [#allocation7], 0
    %s19 = scalar_lea.sflag [#allocation7], 1
    %20 = vsyncpa %s19, 0
    loop: start=0, step=1, limit=4
    $region2: #{t5_forward.30} parent=1 // loop_pre_header
      _
    $region3: #{t5_forward.30} parent=1 // loop_header
      %s22 = sphi 0, %s26
      %p23 = scmp.ge.s32.totalorder %s22, 4
      %s29 = sphi 0, %s48
      %s30 = sphi 0, %s44
      %s31 = sphi 0, %s40
      %s32 = sphi 0, %s29
      %s33 = sphi 0, %s30
      %s34 = sphi 0, %s31
      %s35 = sphi 0, %s32
      %s36 = sphi 0, %s33
      %s37 = sphi 0, %s34
      %s53 = sphi 0, %s55
      %s56 = sphi 0, %s53
      %s57 = sphi 0, %s56
      %s73 = sphi 0, %s57
      %s81 = sphi 0, %s83
      %s84 = sphi 0, %s81
      %s85 = sphi 0, %s84
      %s101 = sphi 0, %s85
      %s109 = sphi 0, %s111
      %s112 = sphi 0, %s109
      %s113 = sphi 0, %s112
      %s129 = sphi 0, %s113
      %s137 = sphi 0, %s139
      %s140 = sphi 0, %s137
      %s141 = sphi 0, %s140
      %s157 = sphi 0, %s141
      %s165 = sphi 0, %s167
      %s168 = sphi 0, %s165
      %s169 = sphi 0, %s168
      %s185 = sphi 0, %s169
    $region4: #{t5_forward.30} parent=1 // loop_header_branch
      %25 = sbr.rel (%p23) target = $region8
    $region5: #{t5_forward.30} parent=1 // loop_body
      %s27 = ssub.s32 %s22, 1
      %s28 = ssub.s32 %s22, 2
      %s38 = sadd.s32 1, %s31
      %p39 = scmp.ge.s32.totalorder %s38, 1
      %s40 = scalar_select %p39, 0, %s38
      %s41 = sadd.s32 1, %s30
      %s42 = scalar_select %p39, %s41, %s30
      %p43 = scmp.ge.s32.totalorder %s42, 1
      %s44 = scalar_select %p43, 0, %s42
      %s45 = sadd.s32 1, %s29
      %s46 = scalar_select %p43, %s45, %s29
      %p47 = scmp.ge.s32.totalorder %s46, 2
      %s48 = scalar_select %p47, 0, %s46
      %s49 = ssub.s32 %s29, %s48
      %s50 = ssub.s32 %s31, %s40
      %s51 = sor.u32 %s49, %s50
      %p52 = scmp.eq.s32.totalorder %s51, 0
      %s54 = sadd.s32 %s53, 1
      %s55 = scalar_select %p52, %s53, %s54
      %p58 = pneg %p52
      %p59 = scmp.eq.s32.totalorder %s22, 1
      %p60 = por %p58, %p59
      %p61 = scmp.ne.s32.totalorder %s53, %s56
      %p62 = scmp.eq.s32.totalorder %s22, 0
      %p63 = por %p61, %p62
      %p64 = scmp.ne.s32.totalorder %s53, %s56
      %p65 = scmp.eq.s32.totalorder %s27, 1
      %p66 = por %p64, %p65
      %p67 = scmp.ne.s32.totalorder %s56, %s57
      %p68 = scmp.eq.s32.totalorder %s27, 0
      %p69 = por %p67, %p68
      %p70 = scmp.ne.s32.totalorder %s56, %s57
      %p71 = scmp.eq.s32.totalorder %s28, 1
      %p72 = por %p70, %p71
      %p74 = scmp.ne.s32.totalorder %s57, %s73
      %p75 = scmp.eq.s32.totalorder %s28, 0
      %p76 = por %p74, %p75
      %s77 = ssub.s32 %s29, %s48
      %s78 = ssub.s32 %s30, %s44
      %s79 = sor.u32 %s77, %s78
      %p80 = scmp.eq.s32.totalorder %s79, 0
      %s82 = sadd.s32 %s81, 1
      %s83 = scalar_select %p80, %s81, %s82
      %p86 = pneg %p80
      %p87 = scmp.eq.s32.totalorder %s22, 1
      %p88 = por %p86, %p87
      %p89 = scmp.ne.s32.totalorder %s81, %s84
      %p90 = scmp.eq.s32.totalorder %s22, 0
      %p91 = por %p89, %p90
      %p92 = scmp.ne.s32.totalorder %s81, %s84
      %p93 = scmp.eq.s32.totalorder %s27, 1
      %p94 = por %p92, %p93
      %p95 = scmp.ne.s32.totalorder %s84, %s85
      %p96 = scmp.eq.s32.totalorder %s27, 0
      %p97 = por %p95, %p96
      %p98 = scmp.ne.s32.totalorder %s84, %s85
      %p99 = scmp.eq.s32.totalorder %s28, 1
      %p100 = por %p98, %p99
      %p102 = scmp.ne.s32.totalorder %s85, %s101
      %p103 = scmp.eq.s32.totalorder %s28, 0
      %p104 = por %p102, %p103
      %s105 = ssub.s32 %s29, %s48
      %s106 = ssub.s32 %s31, %s40
      %s107 = sor.u32 %s105, %s106
      %p108 = scmp.eq.s32.totalorder %s107, 0
      %s110 = sadd.s32 %s109, 1
      %s111 = scalar_select %p108, %s109, %s110
      %p114 = pneg %p108
      %p115 = scmp.eq.s32.totalorder %s22, 1
      %p116 = por %p114, %p115
      %p117 = scmp.ne.s32.totalorder %s109, %s112
      %p118 = scmp.eq.s32.totalorder %s22, 0
      %p119 = por %p117, %p118
      %p120 = scmp.ne.s32.totalorder %s109, %s112
      %p121 = scmp.eq.s32.totalorder %s27, 1
      %p122 = por %p120, %p121
      %p123 = scmp.ne.s32.totalorder %s112, %s113
      %p124 = scmp.eq.s32.totalorder %s27, 0
      %p125 = por %p123, %p124
      %p126 = scmp.ne.s32.totalorder %s112, %s113
      %p127 = scmp.eq.s32.totalorder %s28, 1
      %p128 = por %p126, %p127
      %p130 = scmp.ne.s32.totalorder %s113, %s129
      %p131 = scmp.eq.s32.totalorder %s28, 0
      %p132 = por %p130, %p131
      %s133 = ssub.s32 %s29, %s48
      %s134 = ssub.s32 %s31, %s40
      %s135 = sor.u32 %s133, %s134
      %p136 = scmp.eq.s32.totalorder %s135, 0
      %s138 = sadd.s32 %s137, 1
      %s139 = scalar_select %p136, %s137, %s138
      %p142 = pneg %p136
      %p143 = scmp.eq.s32.totalorder %s22, 1
      %p144 = por %p142, %p143
      %p145 = scmp.ne.s32.totalorder %s137, %s140
      %p146 = scmp.eq.s32.totalorder %s22, 0
      %p147 = por %p145, %p146
      %p148 = scmp.ne.s32.totalorder %s137, %s140
      %p149 = scmp.eq.s32.totalorder %s27, 1
      %p150 = por %p148, %p149
      %p151 = scmp.ne.s32.totalorder %s140, %s141
      %p152 = scmp.eq.s32.totalorder %s27, 0
      %p153 = por %p151, %p152
      %p154 = scmp.ne.s32.totalorder %s140, %s141
      %p155 = scmp.eq.s32.totalorder %s28, 1
      %p156 = por %p154, %p155
      %p158 = scmp.ne.s32.totalorder %s141, %s157
      %p159 = scmp.eq.s32.totalorder %s28, 0
      %p160 = por %p158, %p159
      %s161 = ssub.s32 %s29, %s48
      %s162 = ssub.s32 %s30, %s44
      %s163 = sor.u32 %s161, %s162
      %p164 = scmp.eq.s32.totalorder %s163, 0
      %s166 = sadd.s32 %s165, 1
      %s167 = scalar_select %p164, %s165, %s166
      %p170 = pneg %p164
      %p171 = scmp.eq.s32.totalorder %s22, 1
      %p172 = por %p170, %p171
      %p173 = scmp.ne.s32.totalorder %s165, %s168
      %p174 = scmp.eq.s32.totalorder %s22, 0
      %p175 = por %p173, %p174
      %p176 = scmp.ne.s32.totalorder %s165, %s168
      %p177 = scmp.eq.s32.totalorder %s27, 1
      %p178 = por %p176, %p177
      %p179 = scmp.ne.s32.totalorder %s168, %s169
      %p180 = scmp.eq.s32.totalorder %s27, 0
      %p181 = por %p179, %p180
      %p182 = scmp.ne.s32.totalorder %s168, %s169
      %p183 = scmp.eq.s32.totalorder %s28, 1
      %p184 = por %p182, %p183
      %p186 = scmp.ne.s32.totalorder %s169, %s185
      %p187 = scmp.eq.s32.totalorder %s28, 0
      %p188 = por %p186, %p187
      %p189 = scmp.le.s32.totalorder 1, %s22
      %p190 = scmp.lt.s32.totalorder %s22, 3
      %p191 = pnand %p189, %p190
      %p192 = pneg %p191
      // Predicated region
      $region9: #{t5_forward.30} parent=5 // pred_check
        _
      $region10: #{t5_forward.30} parent=5 // pred_check_branch
        %194 = sbr.rel (%p191) target = $region12
      $region11: #{t5_forward.30} parent=5 // pred_region
        %s195 = ssub.s32 %s22, 1
      $region12: #{t5_forward.30} parent=5 // pred_fallthru
        _
      %p196 = scmp.lt.s32.totalorder %s22, 2
      // Predicated region
      $region13: #{t5_forward.30} parent=5 // pred_check
        %p197 = pneg %p196
      $region14: #{t5_forward.30} parent=5 // pred_check_branch
        %199 = sbr.rel (%p197) target = $region16
      $region15: #{t5_forward.30} parent=5 // pred_region
        // Predicated region
        $region17: #{t5_forward.30} parent=15 // pred_check
          %p200 = pneg %p63
        $region18: #{t5_forward.30} parent=15 // pred_check_branch
          %202 = sbr.rel (%p200) target = $region20
        $region19: #{t5_forward.30} parent=15 // pred_region
          %s203 = sand.u32 %s53, 1
          %s204 = scalar_lea.sflag [#allocation6], %s203
          %s205 = sand.u32 %s53, 1
          %s206 = scalar_lea.vmem [#allocation5], %s205
          %s208 = ssub.s32 16, 16
          %209 = vsyncadd %s204, %s208
          %s210 = sadd.s32 %s31, %s29
          %s211 = smul.addr %s210, 16
          %s212 = scalar_lea.hbm %s0, %s211
          %s214 = sshll.u32 %s206, 4
          %s215 = int_to_ptr.vmem [resolvable:$true] %s214
          %217 = dma.hbm_to_vmem [thread:$0]  %s212, 16, %s215, %s204
        $region20: #{t5_forward.30} parent=15 // pred_fallthru
          _
        // Predicated region
        $region21: #{t5_forward.30} parent=15 // pred_check
          %p218 = pneg %p91
        $region22: #{t5_forward.30} parent=15 // pred_check_branch
          %220 = sbr.rel (%p218) target = $region24
        $region23: #{t5_forward.30} parent=15 // pred_region
          %s221 = sand.u32 %s22, 1
          %s222 = scalar_lea.sflag [#allocation9], %s221
          %s223 = sand.u32 %s81, 1
          %s224 = smul.addr %s223, 16
          %s225 = scalar_lea.vmem [#allocation8], %s224
          %s227 = ssub.s32 256, 256
          %228 = vsyncadd %s222, %s227
          %s229 = smul.addr %s29, 4
          %s230 = sadd.s32 %s30, %s229
          %s231 = smul.addr %s230, 64
          %s232 = scalar_lea.hbm %s1, %s231
          %s233 = sshll.u32 %s225, 4
          %s234 = int_to_ptr.vmem [resolvable:$true] %s233
          %239 = dma.hbm_to_vmem [thread:$0]  %s232, 256, %s234, %s222, 64, 64, 4
        $region24: #{t5_forward.30} parent=15 // pred_fallthru
          _
        // Predicated region
        $region25: #{t5_forward.30} parent=15 // pred_check
          %p240 = pneg %p119
        $region26: #{t5_forward.30} parent=15 // pred_check_branch
          %242 = sbr.rel (%p240) target = $region28
        $region27: #{t5_forward.30} parent=15 // pred_region
          %s243 = sand.u32 %s22, 1
          %s244 = scalar_lea.sflag [#allocation9], %s243
          %s245 = sand.u32 %s109, 1
          %s246 = smul.addr %s245, 16
          %s247 = scalar_lea.vmem [#allocation10], %s246
          %s249 = ssub.s32 256, 256
          %250 = vsyncadd %s244, %s249
          %s251 = smul.addr %s29, 4
          %s252 = sadd.s32 %s31, %s251
          %s253 = smul.addr %s252, 64
          %s254 = scalar_lea.hbm %s2, %s253
          %s255 = sshll.u32 %s247, 4
          %s256 = int_to_ptr.vmem [resolvable:$true] %s255
          %261 = dma.hbm_to_vmem [thread:$0]  %s254, 256, %s256, %s244, 64, 64, 4
        $region28: #{t5_forward.30} parent=15 // pred_fallthru
          _
        // Predicated region
        $region29: #{t5_forward.30} parent=15 // pred_check
          %p262 = pneg %p147
        $region30: #{t5_forward.30} parent=15 // pred_check_branch
          %264 = sbr.rel (%p262) target = $region32
        $region31: #{t5_forward.30} parent=15 // pred_region
          %s265 = sand.u32 %s137, 1
          %s266 = scalar_lea.sflag [#allocation12], %s265
          %s267 = sand.u32 %s137, 1
          %s268 = smul.addr %s267, 16
          %s269 = scalar_lea.vmem [#allocation11], %s268
          %s271 = ssub.s32 256, 256
          %272 = vsyncadd %s266, %s271
          %s273 = smul.addr %s29, 4
          %s274 = sadd.s32 %s31, %s273
          %s275 = smul.addr %s274, 64
          %s276 = scalar_lea.hbm %s3, %s275
          %s277 = sshll.u32 %s269, 4
          %s278 = int_to_ptr.vmem [resolvable:$true] %s277
          %283 = dma.hbm_to_vmem [thread:$0]  %s276, 256, %s278, %s266, 64, 64, 4
        $region32: #{t5_forward.30} parent=15 // pred_fallthru
          _
      $region16: #{t5_forward.30} parent=5 // pred_fallthru
        _
      %p284 = scmp.le.s32.totalorder 1, %s22
      %p285 = scmp.lt.s32.totalorder %s22, 3
      %p286 = pnand %p284, %p285
      %p287 = pneg %p286
      // Predicated region
      $region33: #{t5_forward.30} parent=5 // pred_check
        _
      $region34: #{t5_forward.30} parent=5 // pred_check_branch
        %289 = sbr.rel (%p286) target = $region36
      $region35: #{t5_forward.30} parent=5 // pred_region
        %s290 = ssub.s32 %s22, 1
        %s291 = sand.u32 %s56, 1
        %s292 = scalar_lea.sflag [#allocation6], %s291
        %s293 = sand.u32 %s56, 1
        %s294 = scalar_lea.vmem [#allocation5], %s293
        // Predicated region
        $region37: #{t5_forward.30} parent=35 // pred_check
          %p295 = pneg %p69
        $region38: #{t5_forward.30} parent=35 // pred_check_branch
          %297 = sbr.rel (%p295) target = $region40
        $region39: #{t5_forward.30} parent=35 // pred_region
          %298 = dma.done %s292, 16
        $region40: #{t5_forward.30} parent=35 // pred_fallthru
          _
        %s299 = sand.u32 %s27, 1
        %s300 = scalar_lea.sflag [#allocation9], %s299
        %s301 = sand.u32 %s84, 1
        %s302 = smul.addr %s301, 16
        %s303 = scalar_lea.vmem [#allocation8], %s302
        // Predicated region
        $region41: #{t5_forward.30} parent=35 // pred_check
          %p304 = pneg %p97
        $region42: #{t5_forward.30} parent=35 // pred_check_branch
          %306 = sbr.rel (%p304) target = $region44
        $region43: #{t5_forward.30} parent=35 // pred_region
          %307 = dma.done %s300, 256
        $region44: #{t5_forward.30} parent=35 // pred_fallthru
          _
        %s308 = sand.u32 %s27, 1
        %s309 = scalar_lea.sflag [#allocation9], %s308
        %s310 = sand.u32 %s112, 1
        %s311 = smul.addr %s310, 16
        %s312 = scalar_lea.vmem [#allocation10], %s311
        // Predicated region
        $region45: #{t5_forward.30} parent=35 // pred_check
          %p313 = pneg %p125
        $region46: #{t5_forward.30} parent=35 // pred_check_branch
          %315 = sbr.rel (%p313) target = $region48
        $region47: #{t5_forward.30} parent=35 // pred_region
          %316 = dma.done %s309, 256
        $region48: #{t5_forward.30} parent=35 // pred_fallthru
          _
        %s317 = sand.u32 %s140, 1
        %s318 = scalar_lea.sflag [#allocation12], %s317
        %s319 = sand.u32 %s140, 1
        %s320 = smul.addr %s319, 16
        %s321 = scalar_lea.vmem [#allocation11], %s320
        // Predicated region
        $region49: #{t5_forward.30} parent=35 // pred_check
          %p322 = pneg %p153
        $region50: #{t5_forward.30} parent=35 // pred_check_branch
          %324 = sbr.rel (%p322) target = $region52
        $region51: #{t5_forward.30} parent=35 // pred_region
          %325 = dma.done %s318, 256
        $region52: #{t5_forward.30} parent=35 // pred_fallthru
          _
        %s326 = sand.u32 %s56, 1
        %s327 = scalar_lea.sflag [#allocation6], %s326
        %s328 = sand.u32 %s56, 1
        %s329 = scalar_lea.vmem [#allocation5], %s328
        %p330 = pneg %p69
        %p331 = pneg %p66
        %s332 = sand.u32 %s27, 1
        %s333 = scalar_lea.sflag [#allocation9], %s332
        %s334 = sand.u32 %s84, 1
        %s335 = smul.addr %s334, 16
        %s336 = scalar_lea.vmem [#allocation8], %s335
        %p337 = pneg %p97
        %p338 = pneg %p94
        %s339 = sand.u32 %s27, 1
        %s340 = scalar_lea.sflag [#allocation9], %s339
        %s341 = sand.u32 %s112, 1
        %s342 = smul.addr %s341, 16
        %s343 = scalar_lea.vmem [#allocation10], %s342
        %p344 = pneg %p125
        %p345 = pneg %p122
        %s346 = sand.u32 %s140, 1
        %s347 = scalar_lea.sflag [#allocation12], %s346
        %s348 = sand.u32 %s140, 1
        %s349 = smul.addr %s348, 16
        %s350 = scalar_lea.vmem [#allocation11], %s349
        %p351 = pneg %p153
        %p352 = pneg %p150
        %p353 = pneg %p181
        %p354 = pneg %p178
        %s355 = sand.u32 %s168, 1
        %s356 = scalar_lea.sflag [#allocation7], %s355
        %s357 = sand.u32 %s168, 1
        %s358 = smul.addr %s357, 16
        %s359 = scalar_lea.vmem [#allocation13], %s358
        %p361 = scmp.eq.s32.totalorder %s34, 0
        // Predicated region
        $region53: #{t5_forward.30} parent=35 // pred_check
          %p362 = pneg %p361
        $region54: #{t5_forward.30} parent=35 // pred_check_branch
          %364 = sbr.rel (%p362) target = $region56
        $region55: #{t5_forward.30} parent=35 // pred_region
          %vm365 = vcmask 7168
          %366 = vst.msk [vmem:[#allocation2] sm:$0xff] %vm365, -inf
          %367 = vst.msk [vmem:[#allocation2 + $0x8] sm:$0xff] %vm365, -inf
          %368 = vst.msk [vmem:[#allocation2 + $0x10] sm:$0xff] %vm365, -inf
          %369 = vst.msk [vmem:[#allocation2 + $0x18] sm:$0xff] %vm365, -inf
          %370 = vst.msk [vmem:[#allocation3] sm:$0xff] %vm365, 0.0
          %371 = vst.msk [vmem:[#allocation3 + $0x8] sm:$0xff] %vm365, 0.0
          %372 = vst.msk [vmem:[#allocation3 + $0x10] sm:$0xff] %vm365, 0.0
          %373 = vst.msk [vmem:[#allocation3 + $0x18] sm:$0xff] %vm365, 0.0
          %vm374 = vcmask 64512
          %375 = vst.msk [vmem:[#allocation4] sm:$0xff] %vm374, 0.0
          %376 = vst.msk [vmem:[#allocation4 + $0x8] sm:$0xff] %vm374, 0.0
          %377 = vst.msk [vmem:[#allocation4 + $0x10] sm:$0xff] %vm374, 0.0
          %378 = vst.msk [vmem:[#allocation4 + $0x18] sm:$0xff] %vm374, 0.0
        $region56: #{t5_forward.30} parent=35 // pred_fallthru
          _
        %v379 = vld [vmem:[%s303] sm:$0xf]
        %v380 = vld [vmem:[%s303 + $0x4] sm:$0xf]
        %v381 = vld [vmem:[%s303 + $0x8] sm:$0xf]
        %v382 = vld [vmem:[%s303 + $0xc] sm:$0xf]
        %v383 = vld [vmem:[%s312] sm:$0xf]
        %v384 = vld [vmem:[%s312 + $0x4] sm:$0xf]
        %v385 = vld [vmem:[%s312 + $0x8] sm:$0xf]
        %v386 = vld [vmem:[%s312 + $0xc] sm:$0xf]
        %v387 = vld [vmem:[%s321] sm:$0xf]
        %v388 = vld [vmem:[%s321 + $0x4] sm:$0xf]
        %v389 = vld [vmem:[%s321 + $0x8] sm:$0xf]
        %v390 = vld [vmem:[%s321 + $0xc] sm:$0xf]
        %vm391 = vcmask 64512
        %v393 = vsel %vm391, %v379, 0
        %v396 = vsel %vm391, %v383, 0
        %398 = vmatprep.subr.bf16.mxu0 0
        %399 = vmatpush1.bf16.xpose.msra.mxu0 %v396
        %400 = vmatprep.subr.bf16.mxu0 0
        %401 = vmatpush1.bf16.xpose.msra.mxu0 0
        %402 = vmatprep.subr.bf16.mxu0 0
        %403 = vmatpush1.bf16.xpose.msra.mxu0 0
        %404 = vmatprep.subr.bf16.mxu0 0
        %405 = vmatpush1.bf16.xpose.msra.mxu0 0
        %406 = vmatprep.subr.bf16.mxu0 0
        %407 = vmatpush1.bf16.xpose.msra.mxu0 0
        %408 = vmatprep.subr.bf16.mxu0 0
        %409 = vmatpush1.bf16.xpose.msra.mxu0 0
        %410 = vmatprep.subr.bf16.mxu0 0
        %411 = vmatpush1.bf16.xpose.msra.mxu0 0
        %412 = vmatprep.subr.bf16.mxu0 0
        %413 = vmatpush1.bf16.xpose.msra.mxu0 0
        %414 = vmatprep.subr.bf16.mxu0 0
        %415 = vmatpush1.bf16.xpose.msra.mxu0 0
        %416 = vmatprep.subr.bf16.mxu0 0
        %417 = vmatpush1.bf16.xpose.msra.mxu0 0
        %418 = vmatprep.subr.bf16.mxu0 0
        %419 = vmatpush1.bf16.xpose.msra.mxu0 0
        %420 = vmatprep.subr.bf16.mxu0 0
        %421 = vmatpush1.bf16.xpose.msra.mxu0 0
        %422 = vmatprep.subr.bf16.mxu0 0
        %423 = vmatpush1.bf16.xpose.msra.mxu0 0
        %424 = vmatprep.subr.bf16.mxu0 0
        %425 = vmatpush1.bf16.xpose.msra.mxu0 0
        %426 = vmatprep.subr.bf16.mxu0 0
        %427 = vmatpush1.bf16.xpose.msra.mxu0 0
        %428 = vmatprep.subr.bf16.mxu0 0
        %429 = vmatpush1.bf16.xpose.msra.mxu0 0
        %430 = vmatprep.mubr.bf16.mxu0 0
        %431 = vmatmul.mubr.bf16.gmra.mrb[0].mxu0 %v393
        %v432 = vpop.f32.mrb[0].mxu0
        %v433 = vadd.f32 0.0, %v432
        %v434 = vpop.f32.mrb[0].mxu0
        %v435 = vpop.f32.mrb[0].mxu0
        %v436 = vpop.f32.mrb[0].mxu0
        %437 = vdwg.mxu0
        %v439 = vsel %vm391, %v380, 0
        %v442 = vsel %vm391, %v384, 0
        %444 = vmatprep.subr.bf16.mxu0 0
        %445 = vmatpush1.bf16.xpose.msra.mxu0 %v442
        %446 = vmatprep.subr.bf16.mxu0 0
        %447 = vmatpush1.bf16.xpose.msra.mxu0 0
        %448 = vmatprep.subr.bf16.mxu0 0
        %449 = vmatpush1.bf16.xpose.msra.mxu0 0
        %450 = vmatprep.subr.bf16.mxu0 0
        %451 = vmatpush1.bf16.xpose.msra.mxu0 0
        %452 = vmatprep.subr.bf16.mxu0 0
        %453 = vmatpush1.bf16.xpose.msra.mxu0 0
        %454 = vmatprep.subr.bf16.mxu0 0
        %455 = vmatpush1.bf16.xpose.msra.mxu0 0
        %456 = vmatprep.subr.bf16.mxu0 0
        %457 = vmatpush1.bf16.xpose.msra.mxu0 0
        %458 = vmatprep.subr.bf16.mxu0 0
        %459 = vmatpush1.bf16.xpose.msra.mxu0 0
        %460 = vmatprep.subr.bf16.mxu0 0
        %461 = vmatpush1.bf16.xpose.msra.mxu0 0
        %462 = vmatprep.subr.bf16.mxu0 0
        %463 = vmatpush1.bf16.xpose.msra.mxu0 0
        %464 = vmatprep.subr.bf16.mxu0 0
        %465 = vmatpush1.bf16.xpose.msra.mxu0 0
        %466 = vmatprep.subr.bf16.mxu0 0
        %467 = vmatpush1.bf16.xpose.msra.mxu0 0
        %468 = vmatprep.subr.bf16.mxu0 0
        %469 = vmatpush1.bf16.xpose.msra.mxu0 0
        %470 = vmatprep.subr.bf16.mxu0 0
        %471 = vmatpush1.bf16.xpose.msra.mxu0 0
        %472 = vmatprep.subr.bf16.mxu0 0
        %473 = vmatpush1.bf16.xpose.msra.mxu0 0
        %474 = vmatprep.subr.bf16.mxu0 0
        %475 = vmatpush1.bf16.xpose.msra.mxu0 0
        %476 = vmatprep.mubr.bf16.mxu0 0
        %477 = vmatmul.mubr.bf16.gmra.mrb[0].mxu0 %v439
        %v478 = vpop.f32.mrb[0].mxu0
        %v479 = vadd.f32 0.0, %v478
        %v480 = vpop.f32.mrb[0].mxu0
        %v481 = vpop.f32.mrb[0].mxu0
        %v482 = vpop.f32.mrb[0].mxu0
        %483 = vdwg.mxu0
        %v485 = vsel %vm391, %v381, 0
        %v488 = vsel %vm391, %v385, 0
        %490 = vmatprep.subr.bf16.mxu0 0
        %491 = vmatpush1.bf16.xpose.msra.mxu0 %v488
        %492 = vmatprep.subr.bf16.mxu0 0
        %493 = vmatpush1.bf16.xpose.msra.mxu0 0
        %494 = vmatprep.subr.bf16.mxu0 0
        %495 = vmatpush1.bf16.xpose.msra.mxu0 0
        %496 = vmatprep.subr.bf16.mxu0 0
        %497 = vmatpush1.bf16.xpose.msra.mxu0 0
        %498 = vmatprep.subr.bf16.mxu0 0
        %499 = vmatpush1.bf16.xpose.msra.mxu0 0
        %500 = vmatprep.subr.bf16.mxu0 0
        %501 = vmatpush1.bf16.xpose.msra.mxu0 0
        %502 = vmatprep.subr.bf16.mxu0 0
        %503 = vmatpush1.bf16.xpose.msra.mxu0 0
        %504 = vmatprep.subr.bf16.mxu0 0
        %505 = vmatpush1.bf16.xpose.msra.mxu0 0
        %506 = vmatprep.subr.bf16.mxu0 0
        %507 = vmatpush1.bf16.xpose.msra.mxu0 0
        %508 = vmatprep.subr.bf16.mxu0 0
        %509 = vmatpush1.bf16.xpose.msra.mxu0 0
        %510 = vmatprep.subr.bf16.mxu0 0
        %511 = vmatpush1.bf16.xpose.msra.mxu0 0
        %512 = vmatprep.subr.bf16.mxu0 0
        %513 = vmatpush1.bf16.xpose.msra.mxu0 0
        %514 = vmatprep.subr.bf16.mxu0 0
        %515 = vmatpush1.bf16.xpose.msra.mxu0 0
        %516 = vmatprep.subr.bf16.mxu0 0
        %517 = vmatpush1.bf16.xpose.msra.mxu0 0
        %518 = vmatprep.subr.bf16.mxu0 0
        %519 = vmatpush1.bf16.xpose.msra.mxu0 0
        %520 = vmatprep.subr.bf16.mxu0 0
        %521 = vmatpush1.bf16.xpose.msra.mxu0 0
        %522 = vmatprep.mubr.bf16.mxu0 0
        %523 = vmatmul.mubr.bf16.gmra.mrb[0].mxu0 %v485
        %v524 = vpop.f32.mrb[0].mxu0
        %v525 = vadd.f32 0.0, %v524
        %v526 = vpop.f32.mrb[0].mxu0
        %v527 = vpop.f32.mrb[0].mxu0
        %v528 = vpop.f32.mrb[0].mxu0
        %529 = vdwg.mxu0
        %v531 = vsel %vm391, %v382, 0
        %v534 = vsel %vm391, %v386, 0
        %536 = vmatprep.subr.bf16.mxu0 0
        %537 = vmatpush1.bf16.xpose.msra.mxu0 %v534
        %538 = vmatprep.subr.bf16.mxu0 0
        %539 = vmatpush1.bf16.xpose.msra.mxu0 0
        %540 = vmatprep.subr.bf16.mxu0 0
        %541 = vmatpush1.bf16.xpose.msra.mxu0 0
        %542 = vmatprep.subr.bf16.mxu0 0
        %543 = vmatpush1.bf16.xpose.msra.mxu0 0
        %544 = vmatprep.subr.bf16.mxu0 0
        %545 = vmatpush1.bf16.xpose.msra.mxu0 0
        %546 = vmatprep.subr.bf16.mxu0 0
        %547 = vmatpush1.bf16.xpose.msra.mxu0 0
        %548 = vmatprep.subr.bf16.mxu0 0
        %549 = vmatpush1.bf16.xpose.msra.mxu0 0
        %550 = vmatprep.subr.bf16.mxu0 0
        %551 = vmatpush1.bf16.xpose.msra.mxu0 0
        %552 = vmatprep.subr.bf16.mxu0 0
        %553 = vmatpush1.bf16.xpose.msra.mxu0 0
        %554 = vmatprep.subr.bf16.mxu0 0
        %555 = vmatpush1.bf16.xpose.msra.mxu0 0
        %556 = vmatprep.subr.bf16.mxu0 0
        %557 = vmatpush1.bf16.xpose.msra.mxu0 0
        %558 = vmatprep.subr.bf16.mxu0 0
        %559 = vmatpush1.bf16.xpose.msra.mxu0 0
        %560 = vmatprep.subr.bf16.mxu0 0
        %561 = vmatpush1.bf16.xpose.msra.mxu0 0
        %562 = vmatprep.subr.bf16.mxu0 0
        %563 = vmatpush1.bf16.xpose.msra.mxu0 0
        %564 = vmatprep.subr.bf16.mxu0 0
        %565 = vmatpush1.bf16.xpose.msra.mxu0 0
        %566 = vmatprep.subr.bf16.mxu0 0
        %567 = vmatpush1.bf16.xpose.msra.mxu0 0
        %568 = vmatprep.mubr.bf16.mxu0 0
        %569 = vmatmul.mubr.bf16.gmra.mrb[0].mxu0 %v531
        %v570 = vpop.f32.mrb[0].mxu0
        %v571 = vadd.f32 0.0, %v570
        %v572 = vpop.f32.mrb[0].mxu0
        %v573 = vpop.f32.mrb[0].mxu0
        %v574 = vpop.f32.mrb[0].mxu0
        %575 = vdwg.mxu0
        %v576 = vmul.f32 %v433, 0.35355338
        %v577 = vmul.f32 %v479, 0.35355338
        %v578 = vmul.f32 %v525, 0.35355338
        %v579 = vmul.f32 %v571, 0.35355338
        %v580 = vld [vmem:[%s294] sm:$0x1]
        %v581 = vsub.f32 1.0, %v580
        %v582 = vmul.f32 %v581, -3.4028235e+38
        %v584 = vlaneseq
        %v585 = vshrl.u32 %v584, 7
        %v586 = vsub.s32 0, %v585
        %v587 = vrot.slane %v582, %v586
        %v589 = vadd.f32 %v576, %v587
        %v590 = vadd.f32 %v577, %v587
        %v591 = vadd.f32 %v578, %v587
        %v592 = vadd.f32 %v579, %v587
        %v593 = vmax.f32 %v589, -3.4028235e+38
        %v594 = vmax.f32 %v590, -3.4028235e+38
        %v595 = vmax.f32 %v591, -3.4028235e+38
        %v596 = vmax.f32 %v592, -3.4028235e+38
        %v597 = vld [vmem:[#allocation2] sm:$0xff]
        %v598 = vld [vmem:[#allocation2 + $0x8] sm:$0xff]
        %v599 = vld [vmem:[#allocation2 + $0x10] sm:$0xff]
        %v600 = vld [vmem:[#allocation2 + $0x18] sm:$0xff]
        %v601 = vsel %vm391, %v593, -inf
        %602 = vmax.xlane.f32.xlu0 %v601
        %v603 = vpop.xlane.xlu0 %602
        %v604 = vsel %vm391, %v594, -inf
        %605 = vmax.xlane.f32.xlu0 %v604
        %v606 = vpop.xlane.xlu0 %605
        %v607 = vsel %vm391, %v595, -inf
        %608 = vmax.xlane.f32.xlu0 %v607
        %v609 = vpop.xlane.xlu0 %608
        %v610 = vsel %vm391, %v596, -inf
        %611 = vmax.xlane.f32.xlu0 %v610
        %v612 = vpop.xlane.xlu0 %611
        %v613 = vmax.f32 %v597, %v603
        %v614 = vmax.f32 %v598, %v606
        %v615 = vmax.f32 %v599, %v609
        %v616 = vmax.f32 %v600, %v612
        %v617 = vsub.f32 %v597, %v613
        %v618 = vsub.f32 %v598, %v614
        %v619 = vsub.f32 %v599, %v615
        %v620 = vsub.f32 %v600, %v616
        %v621 = vmul.f32 %v617, 1.442695
        %v622 = vpow.pop %v621
        %v623 = vmul.f32 %v618, 1.442695
        %v624 = vpow.pop %v623
        %v625 = vmul.f32 %v619, 1.442695
        %v626 = vpow.pop %v625
        %v627 = vmul.f32 %v620, 1.442695
        %v628 = vpow.pop %v627
        %630 = vset.pattern.permute.xlu0 0
        %631 = vperm.xlu0 %630, %v613
        %v632 = vpop.permute.xlu0 %631
        %635 = vset.pattern.permute.xlu0 0
        %636 = vperm.xlu0 %635, %v614
        %v637 = vpop.permute.xlu0 %636
        %640 = vset.pattern.permute.xlu0 0
        %641 = vperm.xlu0 %640, %v615
        %v642 = vpop.permute.xlu0 %641
        %645 = vset.pattern.permute.xlu0 0
        %646 = vperm.xlu0 %645, %v616
        %v647 = vpop.permute.xlu0 %646
        %v649 = vsub.f32 %v593, %v632
        %v650 = vsub.f32 %v594, %v637
        %v651 = vsub.f32 %v595, %v642
        %v652 = vsub.f32 %v596, %v647
        %v653 = vmul.f32 %v649, 1.442695
        %v654 = vpow.pop %v653
        %v655 = vmul.f32 %v650, 1.442695
        %v656 = vpow.pop %v655
        %v657 = vmul.f32 %v651, 1.442695
        %v658 = vpow.pop %v657
        %v659 = vmul.f32 %v652, 1.442695
        %v660 = vpow.pop %v659
        %v661 = vld [vmem:[#allocation3] sm:$0xff]
        %v662 = vld [vmem:[#allocation3 + $0x8] sm:$0xff]
        %v663 = vld [vmem:[#allocation3 + $0x10] sm:$0xff]
        %v664 = vld [vmem:[#allocation3 + $0x18] sm:$0xff]
        %v665 = vmul.f32 %v622, %v661
        %v666 = vmul.f32 %v624, %v662
        %v667 = vmul.f32 %v626, %v663
        %v668 = vmul.f32 %v628, %v664
        %v669 = vsel %vm391, %v654, 0.0
        %670 = vadd.xlane.f32.xlu0 %v669
        %v671 = vpop.xlane.xlu0 %670
        %v672 = vsel %vm391, %v656, 0.0
        %673 = vadd.xlane.f32.xlu0 %v672
        %v674 = vpop.xlane.xlu0 %673
        %v675 = vsel %vm391, %v658, 0.0
        %676 = vadd.xlane.f32.xlu0 %v675
        %v677 = vpop.xlane.xlu0 %676
        %v678 = vsel %vm391, %v660, 0.0
        %679 = vadd.xlane.f32.xlu0 %v678
        %v680 = vpop.xlane.xlu0 %679
        %v681 = vadd.f32 %v665, %v671
        %v682 = vadd.f32 %v666, %v674
        %v683 = vadd.f32 %v667, %v677
        %v684 = vadd.f32 %v668, %v680
        %vm685 = vcmask 7168
        %686 = vst.msk [vmem:[#allocation3] sm:$0xff] %vm685, %v681
        %687 = vst.msk [vmem:[#allocation3 + $0x8] sm:$0xff] %vm685, %v682
        %688 = vst.msk [vmem:[#allocation3 + $0x10] sm:$0xff] %vm685, %v683
        %689 = vst.msk [vmem:[#allocation3 + $0x18] sm:$0xff] %vm685, %v684
        %v690 = vld [vmem:[#allocation4] sm:$0xff]
        %v691 = vld [vmem:[#allocation4 + $0x8] sm:$0xff]
        %v692 = vld [vmem:[#allocation4 + $0x10] sm:$0xff]
        %v693 = vld [vmem:[#allocation4 + $0x18] sm:$0xff]
        %695 = vset.pattern.permute.xlu0 0
        %696 = vperm.xlu0 %695, %v622
        %v697 = vpop.permute.xlu0 %696
        %700 = vset.pattern.permute.xlu0 0
        %701 = vperm.xlu0 %700, %v624
        %v702 = vpop.permute.xlu0 %701
        %705 = vset.pattern.permute.xlu0 0
        %706 = vperm.xlu0 %705, %v626
        %v707 = vpop.permute.xlu0 %706
        %710 = vset.pattern.permute.xlu0 0
        %711 = vperm.xlu0 %710, %v628
        %v712 = vpop.permute.xlu0 %711
        %v714 = vmul.f32 %v697, %v690
        %v715 = vmul.f32 %v702, %v691
        %v716 = vmul.f32 %v707, %v692
        %v717 = vmul.f32 %v712, %v693
        %v718 = vpack.c.bf16 %v654, %v654
        %v719 = vpack.c.bf16 %v656, %v656
        %v720 = vpack.c.bf16 %v658, %v658
        %v721 = vpack.c.bf16 %v660, %v660
        %v723 = vsel %vm391, %v718, 0
        %vm725 = vcmask 1043456
        %v727 = vsel %vm725, %v387, 0
        %729 = vmatprep.subr.bf16.mxu0 0
        %730 = vmatpush1.bf16.msra.mxu0 %v727
        %731 = vmatprep.subr.bf16.mxu0 0
        %732 = vmatpush1.bf16.msra.mxu0 0
        %733 = vmatprep.subr.bf16.mxu0 0
        %734 = vmatpush1.bf16.msra.mxu0 0
        %735 = vmatprep.subr.bf16.mxu0 0
        %736 = vmatpush1.bf16.msra.mxu0 0
        %737 = vmatprep.subr.bf16.mxu0 0
        %738 = vmatpush1.bf16.msra.mxu0 0
        %739 = vmatprep.subr.bf16.mxu0 0
        %740 = vmatpush1.bf16.msra.mxu0 0
        %741 = vmatprep.subr.bf16.mxu0 0
        %742 = vmatpush1.bf16.msra.mxu0 0
        %743 = vmatprep.subr.bf16.mxu0 0
        %744 = vmatpush1.bf16.msra.mxu0 0
        %745 = vmatprep.subr.bf16.mxu0 0
        %746 = vmatpush1.bf16.msra.mxu0 0
        %747 = vmatprep.subr.bf16.mxu0 0
        %748 = vmatpush1.bf16.msra.mxu0 0
        %749 = vmatprep.subr.bf16.mxu0 0
        %750 = vmatpush1.bf16.msra.mxu0 0
        %751 = vmatprep.subr.bf16.mxu0 0
        %752 = vmatpush1.bf16.msra.mxu0 0
        %753 = vmatprep.subr.bf16.mxu0 0
        %754 = vmatpush1.bf16.msra.mxu0 0
        %755 = vmatprep.subr.bf16.mxu0 0
        %756 = vmatpush1.bf16.msra.mxu0 0
        %757 = vmatprep.subr.bf16.mxu0 0
        %758 = vmatpush1.bf16.msra.mxu0 0
        %759 = vmatprep.subr.bf16.mxu0 0
        %760 = vmatpush1.bf16.msra.mxu0 0
        %761 = vmatprep.mubr.bf16.mxu0 0
        %762 = vmatmul.mubr.bf16.gmra.mrb[0].mxu0 %v723
        %v763 = vpop.f32.mrb[0].mxu0
        %v764 = vadd.f32 0.0, %v763
        %v765 = vpop.f32.mrb[0].mxu0
        %v766 = vpop.f32.mrb[0].mxu0
        %v767 = vpop.f32.mrb[0].mxu0
        %768 = vdwg.mxu0
        %v770 = vsel %vm391, %v719, 0
        %v773 = vsel %vm725, %v388, 0
        %775 = vmatprep.subr.bf16.mxu0 0
        %776 = vmatpush1.bf16.msra.mxu0 %v773
        %777 = vmatprep.subr.bf16.mxu0 0
        %778 = vmatpush1.bf16.msra.mxu0 0
        %779 = vmatprep.subr.bf16.mxu0 0
        %780 = vmatpush1.bf16.msra.mxu0 0
        %781 = vmatprep.subr.bf16.mxu0 0
        %782 = vmatpush1.bf16.msra.mxu0 0
        %783 = vmatprep.subr.bf16.mxu0 0
        %784 = vmatpush1.bf16.msra.mxu0 0
        %785 = vmatprep.subr.bf16.mxu0 0
        %786 = vmatpush1.bf16.msra.mxu0 0
        %787 = vmatprep.subr.bf16.mxu0 0
        %788 = vmatpush1.bf16.msra.mxu0 0
        %789 = vmatprep.subr.bf16.mxu0 0
        %790 = vmatpush1.bf16.msra.mxu0 0
        %791 = vmatprep.subr.bf16.mxu0 0
        %792 = vmatpush1.bf16.msra.mxu0 0
        %793 = vmatprep.subr.bf16.mxu0 0
        %794 = vmatpush1.bf16.msra.mxu0 0
        %795 = vmatprep.subr.bf16.mxu0 0
        %796 = vmatpush1.bf16.msra.mxu0 0
        %797 = vmatprep.subr.bf16.mxu0 0
        %798 = vmatpush1.bf16.msra.mxu0 0
        %799 = vmatprep.subr.bf16.mxu0 0
        %800 = vmatpush1.bf16.msra.mxu0 0
        %801 = vmatprep.subr.bf16.mxu0 0
        %802 = vmatpush1.bf16.msra.mxu0 0
        %803 = vmatprep.subr.bf16.mxu0 0
        %804 = vmatpush1.bf16.msra.mxu0 0
        %805 = vmatprep.subr.bf16.mxu0 0
        %806 = vmatpush1.bf16.msra.mxu0 0
        %807 = vmatprep.mubr.bf16.mxu0 0
        %808 = vmatmul.mubr.bf16.gmra.mrb[0].mxu0 %v770
        %v809 = vpop.f32.mrb[0].mxu0
        %v810 = vadd.f32 0.0, %v809
        %v811 = vpop.f32.mrb[0].mxu0
        %v812 = vpop.f32.mrb[0].mxu0
        %v813 = vpop.f32.mrb[0].mxu0
        %814 = vdwg.mxu0
        %v816 = vsel %vm391, %v720, 0
        %v819 = vsel %vm725, %v389, 0
        %821 = vmatprep.subr.bf16.mxu0 0
        %822 = vmatpush1.bf16.msra.mxu0 %v819
        %823 = vmatprep.subr.bf16.mxu0 0
        %824 = vmatpush1.bf16.msra.mxu0 0
        %825 = vmatprep.subr.bf16.mxu0 0
        %826 = vmatpush1.bf16.msra.mxu0 0
        %827 = vmatprep.subr.bf16.mxu0 0
        %828 = vmatpush1.bf16.msra.mxu0 0
        %829 = vmatprep.subr.bf16.mxu0 0
        %830 = vmatpush1.bf16.msra.mxu0 0
        %831 = vmatprep.subr.bf16.mxu0 0
        %832 = vmatpush1.bf16.msra.mxu0 0
        %833 = vmatprep.subr.bf16.mxu0 0
        %834 = vmatpush1.bf16.msra.mxu0 0
        %835 = vmatprep.subr.bf16.mxu0 0
        %836 = vmatpush1.bf16.msra.mxu0 0
        %837 = vmatprep.subr.bf16.mxu0 0
        %838 = vmatpush1.bf16.msra.mxu0 0
        %839 = vmatprep.subr.bf16.mxu0 0
        %840 = vmatpush1.bf16.msra.mxu0 0
        %841 = vmatprep.subr.bf16.mxu0 0
        %842 = vmatpush1.bf16.msra.mxu0 0
        %843 = vmatprep.subr.bf16.mxu0 0
        %844 = vmatpush1.bf16.msra.mxu0 0
        %845 = vmatprep.subr.bf16.mxu0 0
        %846 = vmatpush1.bf16.msra.mxu0 0
        %847 = vmatprep.subr.bf16.mxu0 0
        %848 = vmatpush1.bf16.msra.mxu0 0
        %849 = vmatprep.subr.bf16.mxu0 0
        %850 = vmatpush1.bf16.msra.mxu0 0
        %851 = vmatprep.subr.bf16.mxu0 0
        %852 = vmatpush1.bf16.msra.mxu0 0
        %853 = vmatprep.mubr.bf16.mxu0 0
        %854 = vmatmul.mubr.bf16.gmra.mrb[0].mxu0 %v816
        %v855 = vpop.f32.mrb[0].mxu0
        %v856 = vadd.f32 0.0, %v855
        %v857 = vpop.f32.mrb[0].mxu0
        %v858 = vpop.f32.mrb[0].mxu0
        %v859 = vpop.f32.mrb[0].mxu0
        %860 = vdwg.mxu0
        %v862 = vsel %vm391, %v721, 0
        %v865 = vsel %vm725, %v390, 0
        %867 = vmatprep.subr.bf16.mxu0 0
        %868 = vmatpush1.bf16.msra.mxu0 %v865
        %869 = vmatprep.subr.bf16.mxu0 0
        %870 = vmatpush1.bf16.msra.mxu0 0
        %871 = vmatprep.subr.bf16.mxu0 0
        %872 = vmatpush1.bf16.msra.mxu0 0
        %873 = vmatprep.subr.bf16.mxu0 0
        %874 = vmatpush1.bf16.msra.mxu0 0
        %875 = vmatprep.subr.bf16.mxu0 0
        %876 = vmatpush1.bf16.msra.mxu0 0
        %877 = vmatprep.subr.bf16.mxu0 0
        %878 = vmatpush1.bf16.msra.mxu0 0
        %879 = vmatprep.subr.bf16.mxu0 0
        %880 = vmatpush1.bf16.msra.mxu0 0
        %881 = vmatprep.subr.bf16.mxu0 0
        %882 = vmatpush1.bf16.msra.mxu0 0
        %883 = vmatprep.subr.bf16.mxu0 0
        %884 = vmatpush1.bf16.msra.mxu0 0
        %885 = vmatprep.subr.bf16.mxu0 0
        %886 = vmatpush1.bf16.msra.mxu0 0
        %887 = vmatprep.subr.bf16.mxu0 0
        %888 = vmatpush1.bf16.msra.mxu0 0
        %889 = vmatprep.subr.bf16.mxu0 0
        %890 = vmatpush1.bf16.msra.mxu0 0
        %891 = vmatprep.subr.bf16.mxu0 0
        %892 = vmatpush1.bf16.msra.mxu0 0
        %893 = vmatprep.subr.bf16.mxu0 0
        %894 = vmatpush1.bf16.msra.mxu0 0
        %895 = vmatprep.subr.bf16.mxu0 0
        %896 = vmatpush1.bf16.msra.mxu0 0
        %897 = vmatprep.subr.bf16.mxu0 0
        %898 = vmatpush1.bf16.msra.mxu0 0
        %899 = vmatprep.mubr.bf16.mxu0 0
        %900 = vmatmul.mubr.bf16.gmra.mrb[0].mxu0 %v862
        %v901 = vpop.f32.mrb[0].mxu0
        %v902 = vadd.f32 0.0, %v901
        %v903 = vpop.f32.mrb[0].mxu0
        %v904 = vpop.f32.mrb[0].mxu0
        %v905 = vpop.f32.mrb[0].mxu0
        %906 = vdwg.mxu0
        %v907 = vadd.f32 %v714, %v764
        %v908 = vadd.f32 %v715, %v810
        %v909 = vadd.f32 %v716, %v856
        %v910 = vadd.f32 %v717, %v902
        %911 = vst.msk [vmem:[#allocation4] sm:$0xff] %vm391, %v907
        %912 = vst.msk [vmem:[#allocation4 + $0x8] sm:$0xff] %vm391, %v908
        %913 = vst.msk [vmem:[#allocation4 + $0x10] sm:$0xff] %vm391, %v909
        %914 = vst.msk [vmem:[#allocation4 + $0x18] sm:$0xff] %vm391, %v910
        %915 = vst.msk [vmem:[#allocation2] sm:$0xff] %vm685, %v613
        %916 = vst.msk [vmem:[#allocation2 + $0x8] sm:$0xff] %vm685, %v614
        %917 = vst.msk [vmem:[#allocation2 + $0x10] sm:$0xff] %vm685, %v615
        %918 = vst.msk [vmem:[#allocation2 + $0x18] sm:$0xff] %vm685, %v616
        // Predicated region
        $region57: #{t5_forward.30} parent=35 // pred_check
          %p919 = pneg %p361
        $region58: #{t5_forward.30} parent=35 // pred_check_branch
          %921 = sbr.rel (%p919) target = $region60
        $region59: #{t5_forward.30} parent=35 // pred_region
          %v922 = vld [vmem:[#allocation4] sm:$0xff]
          %v923 = vld [vmem:[#allocation4 + $0x8] sm:$0xff]
          %v924 = vld [vmem:[#allocation4 + $0x10] sm:$0xff]
          %v925 = vld [vmem:[#allocation4 + $0x18] sm:$0xff]
          %v926 = vld [vmem:[#allocation3] sm:$0xff]
          %v927 = vld [vmem:[#allocation3 + $0x8] sm:$0xff]
          %v928 = vld [vmem:[#allocation3 + $0x10] sm:$0xff]
          %v929 = vld [vmem:[#allocation3 + $0x18] sm:$0xff]
          %v930 = vrcp.pop %v926
          %v931 = vrcp.pop %v927
          %v932 = vrcp.pop %v928
          %v933 = vrcp.pop %v929
          %935 = vset.pattern.permute.xlu0 0
          %936 = vperm.xlu0 %935, %v930
          %v937 = vpop.permute.xlu0 %936
          %940 = vset.pattern.permute.xlu0 0
          %941 = vperm.xlu0 %940, %v931
          %v942 = vpop.permute.xlu0 %941
          %945 = vset.pattern.permute.xlu0 0
          %946 = vperm.xlu0 %945, %v932
          %v947 = vpop.permute.xlu0 %946
          %950 = vset.pattern.permute.xlu0 0
          %951 = vperm.xlu0 %950, %v933
          %v952 = vpop.permute.xlu0 %951
          %v954 = vmul.f32 %v922, %v937
          %v955 = vmul.f32 %v923, %v942
          %v956 = vmul.f32 %v924, %v947
          %v957 = vmul.f32 %v925, %v952
          %v958 = vpack.c.bf16 %v954, %v954
          %v959 = vpack.c.bf16 %v955, %v955
          %v960 = vpack.c.bf16 %v956, %v956
          %v961 = vpack.c.bf16 %v957, %v957
          %vm962 = vcmask 60416
          %963 = vst.msk [vmem:[%s359] sm:$0xf] %vm962, %v958
          %964 = vst.msk [vmem:[%s359 + $0x4] sm:$0xf] %vm962, %v959
          %965 = vst.msk [vmem:[%s359 + $0x8] sm:$0xf] %vm962, %v960
          %966 = vst.msk [vmem:[%s359 + $0xc] sm:$0xf] %vm962, %v961
        $region60: #{t5_forward.30} parent=35 // pred_fallthru
          _
        %s967 = sand.u32 %s168, 1
        %s968 = scalar_lea.sflag [#allocation7], %s967
        %s969 = sand.u32 %s168, 1
        %s970 = smul.addr %s969, 16
        %s971 = scalar_lea.vmem [#allocation13], %s970
        // Predicated region
        $region61: #{t5_forward.30} parent=35 // pred_check
          %p972 = pneg %p178
        $region62: #{t5_forward.30} parent=35 // pred_check_branch
          %974 = sbr.rel (%p972) target = $region64
        $region63: #{t5_forward.30} parent=35 // pred_region
          %s976 = ssub.s32 256, 256
          %977 = vsyncadd %s968, %s976
          %s978 = smul.addr %s32, 4
          %s979 = sadd.s32 %s33, %s978
          %s980 = smul.addr %s979, 64
          %s981 = scalar_lea.hbm %s4, %s980
          %s982 = sshll.u32 %s971, 4
          %s983 = int_to_ptr.vmem [resolvable:$true] %s982
          %988 = dma.vmem_to_hbm [thread:$0]  %s983, 256, %s981, %s968, 64, 64, 4
        $region64: #{t5_forward.30} parent=35 // pred_fallthru
          _
      $region36: #{t5_forward.30} parent=5 // pred_fallthru
        _
      %p989 = scmp.le.s32.totalorder 2, %s22
      // Predicated region
      $region65: #{t5_forward.30} parent=5 // pred_check
        %p990 = pneg %p989
      $region66: #{t5_forward.30} parent=5 // pred_check_branch
        %992 = sbr.rel (%p990) target = $region68
      $region67: #{t5_forward.30} parent=5 // pred_region
        %s993 = ssub.s32 %s22, 2
        // Predicated region
        $region69: #{t5_forward.30} parent=67 // pred_check
          %p994 = pneg %p184
        $region70: #{t5_forward.30} parent=67 // pred_check_branch
          %996 = sbr.rel (%p994) target = $region72
        $region71: #{t5_forward.30} parent=67 // pred_region
          %s997 = sand.u32 %s169, 1
          %s998 = scalar_lea.sflag [#allocation7], %s997
          %s999 = sand.u32 %s169, 1
          %s1000 = smul.addr %s999, 16
          %s1001 = scalar_lea.vmem [#allocation13], %s1000
          %1002 = dma.done %s998, 256
        $region72: #{t5_forward.30} parent=67 // pred_fallthru
          _
      $region68: #{t5_forward.30} parent=5 // pred_fallthru
        _
    $region6: #{t5_forward.30} parent=1 // loop_footer
      %s26 = sadd.s32 1, %s22
    $region7: #{t5_forward.30} parent=1 // loop_footer_branch
      %21 = sbr.rel target = $region3
    $region8: #{t5_forward.30} parent=1 // loop_exit
      _
    %1003 = vsyncpa [#allocation6], 1
    %s1004 = scalar_lea.sflag [#allocation6], 1
    %1005 = vsyncpa %s1004, 1
    %1006 = vsyncpa [#allocation9], 1
    %s1007 = scalar_lea.sflag [#allocation9], 1
    %1008 = vsyncpa %s1007, 1
    %1009 = vsyncpa [#allocation12], 1
    %s1010 = scalar_lea.sflag [#allocation12], 1
    %1011 = vsyncpa %s1010, 1
    %1012 = vsyncpa [#allocation7], 1
    %s1013 = scalar_lea.sflag [#allocation7], 1
    %1014 = vsyncpa %s1013, 1

// kernel: t5_forward.33
$region0: #{t5_forward.33}
  #allocation0 [shape = 'u32[]', space=smem, size = 0x4, offset = 0x4, fixed_abs, tag = 'smem constant byte address 0x4 - core index']
  #allocation1 [shape = 'u32[144,128]{1,0:T(1,128)}', space=vmem, size = 0x12000, scoped, tag = 'internal scratch']
  #allocation2 [shape = 'f32[16,32]{1,0:T(8,128)}', space=vmem, size = 0x2000, scoped, tag = 'scratch operand']
  %s0 = inlined_call_operand.hbm [shape: bf16[16,64], index: 0, kind: input, shape index: {}]
  %s1 = inlined_call_operand.hbm [shape: bf16[64,32], index: 1, kind: input, shape index: {}]
  %s2 = inlined_call_operand.hbm [shape: f32[1,32], index: 2, kind: input, shape index: {}]
  %s3 = inlined_call_operand.hbm [shape: bf16[16,32], index: 3, kind: input, shape index: {}]
  %s4 = inlined_call_operand.hbm [shape: bf16[16,32], index: 4, kind: output, shape index: {}]
  %s5 = sld [smem:[#allocation0]]
  $region50: #{t5_forward.33} parent=0
    _
  %s7 = ssub.s32 1, %s5
  %s8 = scalar_select 0, %s7, %s5
  $region1: #{t5_forward.33} parent=0
    #allocation3 [shape = 'u8[4096]{0}', space=vmem, size = 0x1000, scoped, tag = 'input window, operand 0, single buffered']
    #allocation4 [shape = 's32[1]{0}', space=sflag, size = 0x4, scoped, tag = 'scoped memory for t5_forward.33']
    #allocation5 [shape = 's32[1]{0}', space=sflag, size = 0x4, scoped, tag = 'scoped memory for t5_forward.33']
    #allocation6 [shape = 'u8[16384]{0}', space=vmem, size = 0x4000, scoped, tag = 'input window, operand 1, single buffered']
    #allocation7 [shape = 's32[1]{0}', space=sflag, size = 0x4, scoped, tag = 'scoped memory for t5_forward.33']
    #allocation8 [shape = 'u8[512]{0}', space=vmem, size = 0x400, scoped, tag = 'input window, operand 2, single buffered']
    #allocation9 [shape = 'u8[4096]{0}', space=vmem, size = 0x1000, scoped, tag = 'input window, operand 3, single buffered']
    #allocation10 [shape = 's32[1]{0}', space=sflag, size = 0x4, scoped, tag = 'scoped memory for t5_forward.33']
    #allocation11 [shape = 'u8[4096]{0}', space=vmem, size = 0x1000, scoped, tag = 'output window, operand 0, single buffered']
    %9 = vsyncpa [#allocation4], 0
    %10 = vsyncpa [#allocation7], 0
    %11 = vsyncpa [#allocation10], 0
    %12 = vsyncpa [#allocation5], 0
    // Predicated region
    $region2: #{t5_forward.33} parent=1 // pred_check
      _
    $region3: #{t5_forward.33} parent=1 // pred_check_branch
      %14 = sbr.rel (0) target = $region5
    $region4: #{t5_forward.33} parent=1 // pred_region
      %s16 = ssub.s32 128, 128
      %17 = vsyncadd [#allocation4], %s16
      %s18 = sshll.u32 [#allocation3], 4
      %s19 = int_to_ptr.vmem [resolvable:$true] %s18
      %24 = dma.hbm_to_vmem [thread:$0]  %s0, 128, %s19, [#allocation4], 64, 64, 4
    $region5: #{t5_forward.33} parent=1 // pred_fallthru
      _
    // Predicated region
    $region6: #{t5_forward.33} parent=1 // pred_check
      _
    $region7: #{t5_forward.33} parent=1 // pred_check_branch
      %26 = sbr.rel (0) target = $region9
    $region8: #{t5_forward.33} parent=1 // pred_region
      %s28 = ssub.s32 512, 512
      %29 = vsyncadd [#allocation7], %s28
      %s30 = sshll.u32 [#allocation6], 4
      %s31 = int_to_ptr.vmem [resolvable:$true] %s30
      %36 = dma.hbm_to_vmem [thread:$0]  %s1, 512, %s31, [#allocation7], 64, 64, 4
    $region9: #{t5_forward.33} parent=1 // pred_fallthru
      _
    // Predicated region
    $region10: #{t5_forward.33} parent=1 // pred_check
      _
    $region11: #{t5_forward.33} parent=1 // pred_check_branch
      %38 = sbr.rel (0) target = $region13
    $region12: #{t5_forward.33} parent=1 // pred_region
      %s40 = ssub.s32 16, 16
      %41 = vsyncadd [#allocation7], %s40
      %s43 = sshll.u32 [#allocation8], 4
      %s44 = int_to_ptr.vmem [resolvable:$true] %s43
      %46 = dma.hbm_to_vmem [thread:$0]  %s2, 16, %s44, [#allocation7]
    $region13: #{t5_forward.33} parent=1 // pred_fallthru
      _
    // Predicated region
    $region14: #{t5_forward.33} parent=1 // pred_check
      _
    $region15: #{t5_forward.33} parent=1 // pred_check_branch
      %48 = sbr.rel (0) target = $region17
    $region16: #{t5_forward.33} parent=1 // pred_region
      %s50 = ssub.s32 128, 128
      %51 = vsyncadd [#allocation10], %s50
      %s52 = sshll.u32 [#allocation9], 4
      %s53 = int_to_ptr.vmem [resolvable:$true] %s52
      %58 = dma.hbm_to_vmem [thread:$0]  %s3, 128, %s53, [#allocation10], 64, 64, 4
    $region17: #{t5_forward.33} parent=1 // pred_fallthru
      _
    // Predicated region
    $region18: #{t5_forward.33} parent=1 // pred_check
      _
    $region19: #{t5_forward.33} parent=1 // pred_check_branch
      %60 = sbr.rel (0) target = $region21
    $region20: #{t5_forward.33} parent=1 // pred_region
      %61 = dma.done [#allocation4], 128
    $region21: #{t5_forward.33} parent=1 // pred_fallthru
      _
    // Predicated region
    $region22: #{t5_forward.33} parent=1 // pred_check
      _
    $region23: #{t5_forward.33} parent=1 // pred_check_branch
      %63 = sbr.rel (0) target = $region25
    $region24: #{t5_forward.33} parent=1 // pred_region
      %64 = dma.done [#allocation7], 512
    $region25: #{t5_forward.33} parent=1 // pred_fallthru
      _
    // Predicated region
    $region26: #{t5_forward.33} parent=1 // pred_check
      _
    $region27: #{t5_forward.33} parent=1 // pred_check_branch
      %66 = sbr.rel (0) target = $region29
    $region28: #{t5_forward.33} parent=1 // pred_region
      %67 = dma.done [#allocation7], 16
    $region29: #{t5_forward.33} parent=1 // pred_fallthru
      _
    // Predicated region
    $region30: #{t5_forward.33} parent=1 // pred_check
      _
    $region31: #{t5_forward.33} parent=1 // pred_check_branch
      %69 = sbr.rel (0) target = $region33
    $region32: #{t5_forward.33} parent=1 // pred_region
      %70 = dma.done [#allocation10], 128
    $region33: #{t5_forward.33} parent=1 // pred_fallthru
      _
    %p72 = scmp.eq.s32.totalorder 0, 0
    // Predicated region
    $region34: #{t5_forward.33} parent=1 // pred_check
      %p73 = pneg %p72
    $region35: #{t5_forward.33} parent=1 // pred_check_branch
      %75 = sbr.rel (%p73) target = $region37
    $region36: #{t5_forward.33} parent=1 // pred_region
      %vm76 = vcmask 261120
      %77 = vst.msk [vmem:[#allocation2] sm:$0xff] %vm76, 0.0
      %78 = vst.msk [vmem:[#allocation2 + $0x8] sm:$0xff] %vm76, 0.0
    $region37: #{t5_forward.33} parent=1 // pred_fallthru
      _
    %v79 = vld [vmem:[#allocation3] sm:$0xf]
    %v80 = vld [vmem:[#allocation3 + $0x4] sm:$0xf]
    %v81 = vld [vmem:[#allocation2] sm:$0xff]
    %v82 = vld [vmem:[#allocation2 + $0x8] sm:$0xff]
    %v83 = vld [vmem:[#allocation6] sm:$0xf]
    %v84 = vld [vmem:[#allocation6 + $0x4] sm:$0xf]
    %v85 = vld [vmem:[#allocation6 + $0x8] sm:$0xf]
    %v86 = vld [vmem:[#allocation6 + $0xc] sm:$0xf]
    %v87 = vld [vmem:[#allocation6 + $0x10] sm:$0xf]
    %v88 = vld [vmem:[#allocation6 + $0x14] sm:$0xf]
    %v89 = vld [vmem:[#allocation6 + $0x18] sm:$0xf]
    %v90 = vld [vmem:[#allocation6 + $0x1c] sm:$0xf]
    %v93 = vunpack.c.l.b16 %v79
    %v94 = vunpack.c.l.b16 %v80
    %v95 = vpack.c.b16 %v94, %v93
    %v104 = vunpack.c.l.b16 %v83
    %v105 = vunpack.c.l.b16 %v84
    %v106 = vunpack.c.l.b16 %v85
    %v107 = vunpack.c.l.b16 %v86
    %v108 = vunpack.c.l.b16 %v87
    %v109 = vunpack.c.l.b16 %v88
    %v110 = vunpack.c.l.b16 %v89
    %v111 = vunpack.c.l.b16 %v90
    %v112 = vpack.c.b16 %v105, %v104
    %v113 = vpack.c.b16 %v107, %v106
    %v114 = vpack.c.b16 %v109, %v108
    %v115 = vpack.c.b16 %v111, %v110
    %vm120 = vcmask 523264
    %v122 = vsel %vm120, %v95, 0
    %124 = vmatprep.subr.bf16.mxu0 0
    %125 = vmatpush1.bf16.msra.mxu0 %v112
    %126 = vmatprep.subr.bf16.mxu0 0
    %127 = vmatpush1.bf16.msra.mxu0 %v113
    %128 = vmatprep.subr.bf16.mxu0 0
    %129 = vmatpush1.bf16.msra.mxu0 %v114
    %130 = vmatprep.subr.bf16.mxu0 0
    %131 = vmatpush1.bf16.msra.mxu0 %v115
    %132 = vmatprep.subr.bf16.mxu0 0
    %133 = vmatpush1.bf16.msra.mxu0 0
    %134 = vmatprep.subr.bf16.mxu0 0
    %135 = vmatpush1.bf16.msra.mxu0 0
    %136 = vmatprep.subr.bf16.mxu0 0
    %137 = vmatpush1.bf16.msra.mxu0 0
    %138 = vmatprep.subr.bf16.mxu0 0
    %139 = vmatpush1.bf16.msra.mxu0 0
    %140 = vmatprep.subr.bf16.mxu0 0
    %141 = vmatpush1.bf16.msra.mxu0 0
    %142 = vmatprep.subr.bf16.mxu0 0
    %143 = vmatpush1.bf16.msra.mxu0 0
    %144 = vmatprep.subr.bf16.mxu0 0
    %145 = vmatpush1.bf16.msra.mxu0 0
    %146 = vmatprep.subr.bf16.mxu0 0
    %147 = vmatpush1.bf16.msra.mxu0 0
    %148 = vmatprep.subr.bf16.mxu0 0
    %149 = vmatpush1.bf16.msra.mxu0 0
    %150 = vmatprep.subr.bf16.mxu0 0
    %151 = vmatpush1.bf16.msra.mxu0 0
    %152 = vmatprep.subr.bf16.mxu0 0
    %153 = vmatpush1.bf16.msra.mxu0 0
    %154 = vmatprep.subr.bf16.mxu0 0
    %155 = vmatpush1.bf16.msra.mxu0 0
    %156 = vmatprep.mubr.bf16.mxu0 0
    %157 = vmatmul.mubr.bf16.gmra.mrb[0].mxu0 %v122
    %v158 = vpop.f32.mrb[0].mxu0
    %v159 = vadd.f32 0.0, %v158
    %v160 = vpop.f32.mrb[0].mxu0
    %v161 = vpop.f32.mrb[0].mxu0
    %v162 = vadd.f32 0.0, %v161
    %v163 = vpop.f32.mrb[0].mxu0
    %164 = vdwg.mxu0
    %v165 = vadd.f32 %v81, %v159
    %v166 = vadd.f32 %v82, %v162
    %vm167 = vcmask 261120
    %168 = vst.msk [vmem:[#allocation2] sm:$0xff] %vm167, %v165
    %169 = vst.msk [vmem:[#allocation2 + $0x8] sm:$0xff] %vm167, %v166
    // Predicated region
    $region38: #{t5_forward.33} parent=1 // pred_check
      %p170 = pneg %p72
    $region39: #{t5_forward.33} parent=1 // pred_check_branch
      %172 = sbr.rel (%p170) target = $region41
    $region40: #{t5_forward.33} parent=1 // pred_region
      %v173 = vld [vmem:[#allocation2] sm:$0xff]
      %v174 = vld [vmem:[#allocation2 + $0x8] sm:$0xff]
      %v175 = vld [vmem:[#allocation8] sm:$0x1]
      %v177 = vlaneseq
      %v178 = vshrl.u32 %v177, 7
      %v179 = vsub.s32 0, %v178
      %v180 = vrot.slane %v175, %v179
      %v182 = vadd.f32 %v173, %v180
      %v183 = vadd.f32 %v174, %v180
      %v184 = vld [vmem:[#allocation9] sm:$0xf]
      %v185 = vld [vmem:[#allocation9 + $0x4] sm:$0xf]
      %v186 = vunpack.c.l.bf16 %v184
      %v187 = vunpack.c.l.bf16 %v185
      %v188 = vadd.f32 %v182, %v186
      %v189 = vadd.f32 %v183, %v187
      %v190 = vpack.c.bf16 %v189, %v188
      %v192 = vunpack.c.l.b16 %v190
      %v193 = vunpack.c.h.b16 %v190
      %v194 = vpack.c.b16 %v192, %v192
      %v195 = vpack.c.b16 %v193, %v193
      %vm198 = vcmask 257024
      %199 = vst.msk [vmem:[#allocation11] sm:$0xf] %vm198, %v194
      %200 = vst.msk [vmem:[#allocation11 + $0x4] sm:$0xf] %vm198, %v195
    $region41: #{t5_forward.33} parent=1 // pred_fallthru
      _
    // Predicated region
    $region42: #{t5_forward.33} parent=1 // pred_check
      _
    $region43: #{t5_forward.33} parent=1 // pred_check_branch
      %202 = sbr.rel (0) target = $region45
    $region44: #{t5_forward.33} parent=1 // pred_region
      %s204 = ssub.s32 128, 128
      %205 = vsyncadd [#allocation5], %s204
      %s206 = sshll.u32 [#allocation11], 4
      %s207 = int_to_ptr.vmem [resolvable:$true] %s206
      %212 = dma.vmem_to_hbm [thread:$0]  %s207, 128, %s4, [#allocation5], 64, 64, 4
    $region45: #{t5_forward.33} parent=1 // pred_fallthru
      _
    // Predicated region
    $region46: #{t5_forward.33} parent=1 // pred_check
      _
    $region47: #{t5_forward.33} parent=1 // pred_check_branch
      %214 = sbr.rel (0) target = $region49
    $region48: #{t5_forward.33} parent=1 // pred_region
      %215 = dma.done [#allocation5], 128
    $region49: #{t5_forward.33} parent=1 // pred_fallthru
      _
    %216 = vsyncpa [#allocation4], 1
    %217 = vsyncpa [#allocation7], 1
    %218 = vsyncpa [#allocation10], 1
    %219 = vsyncpa [#allocation5], 1

// kernel: t5_forward.42
$region0: #{t5_forward.42}
  #allocation0 [shape = 'u32[]', space=smem, size = 0x4, offset = 0x4, fixed_abs, tag = 'smem constant byte address 0x4 - core index']
  #allocation1 [shape = 'u32[144,128]{1,0:T(1,128)}', space=vmem, size = 0x12000, scoped, tag = 'internal scratch']
  #allocation2 [shape = 'f32[16,32]{1,0:T(8,128)}', space=vmem, size = 0x2000, scoped, tag = 'scratch operand']
  #allocation3 [shape = 'bf16[16,32]{1,0:T(16,128)(2,1)}', space=vmem, size = 0x1000, scoped, tag = 'scratch operand']
  %s0 = inlined_call_operand.hbm [shape: bf16[16,32], index: 0, kind: input, shape index: {}]
  %s1 = inlined_call_operand.hbm [shape: bf16[32,32], index: 1, kind: input, shape index: {}]
  %s2 = inlined_call_operand.hbm [shape: f32[1,32], index: 2, kind: input, shape index: {}]
  %s3 = inlined_call_operand.hbm [shape: f32[1,32], index: 3, kind: input, shape index: {}]
  %s4 = inlined_call_operand.hbm [shape: bf16[16,32], index: 4, kind: output, shape index: {}]
  %s5 = sld [smem:[#allocation0]]
  $region54: #{t5_forward.42} parent=0
    _
  %s7 = ssub.s32 1, %s5
  %s8 = scalar_select 0, %s7, %s5
  $region1: #{t5_forward.42} parent=0
    #allocation4 [shape = 'u8[4096]{0}', space=vmem, size = 0x1000, scoped, tag = 'input window, operand 0, single buffered']
    #allocation5 [shape = 's32[1]{0}', space=sflag, size = 0x4, scoped, tag = 'scoped memory for t5_forward.42']
    #allocation6 [shape = 's32[1]{0}', space=sflag, size = 0x4, scoped, tag = 'scoped memory for t5_forward.42']
    #allocation7 [shape = 'u8[8192]{0}', space=vmem, size = 0x2000, scoped, tag = 'input window, operand 1, single buffered']
    #allocation8 [shape = 's32[1]{0}', space=sflag, size = 0x4, scoped, tag = 'scoped memory for t5_forward.42']
    #allocation9 [shape = 'u8[512]{0}', space=vmem, size = 0x400, scoped, tag = 'input window, operand 2, single buffered']
    #allocation10 [shape = 'u8[512]{0}', space=vmem, size = 0x400, scoped, tag = 'input window, operand 3, single buffered']
    #allocation11 [shape = 's32[1]{0}', space=sflag, size = 0x4, scoped, tag = 'scoped memory for t5_forward.42']
    #allocation12 [shape = 'u8[4096]{0}', space=vmem, size = 0x1000, scoped, tag = 'output window, operand 0, single buffered']
    %9 = vsyncpa [#allocation5], 0
    %10 = vsyncpa [#allocation8], 0
    %11 = vsyncpa [#allocation11], 0
    %12 = vsyncpa [#allocation6], 0
    // Predicated region
    $region2: #{t5_forward.42} parent=1 // pred_check
      _
    $region3: #{t5_forward.42} parent=1 // pred_check_branch
      %14 = sbr.rel (0) target = $region5
    $region4: #{t5_forward.42} parent=1 // pred_region
      %s16 = ssub.s32 128, 128
      %17 = vsyncadd [#allocation5], %s16
      %s18 = sshll.u32 [#allocation4], 4
      %s19 = int_to_ptr.vmem [resolvable:$true] %s18
      %24 = dma.hbm_to_vmem [thread:$0]  %s0, 128, %s19, [#allocation5], 64, 64, 4
    $region5: #{t5_forward.42} parent=1 // pred_fallthru
      _
    // Predicated region
    $region6: #{t5_forward.42} parent=1 // pred_check
      _
    $region7: #{t5_forward.42} parent=1 // pred_check_branch
      %26 = sbr.rel (0) target = $region9
    $region8: #{t5_forward.42} parent=1 // pred_region
      %s28 = ssub.s32 256, 256
      %29 = vsyncadd [#allocation8], %s28
      %s30 = sshll.u32 [#allocation7], 4
      %s31 = int_to_ptr.vmem [resolvable:$true] %s30
      %36 = dma.hbm_to_vmem [thread:$0]  %s1, 256, %s31, [#allocation8], 64, 64, 4
    $region9: #{t5_forward.42} parent=1 // pred_fallthru
      _
    // Predicated region
    $region10: #{t5_forward.42} parent=1 // pred_check
      _
    $region11: #{t5_forward.42} parent=1 // pred_check_branch
      %38 = sbr.rel (0) target = $region13
    $region12: #{t5_forward.42} parent=1 // pred_region
      %s40 = ssub.s32 16, 16
      %41 = vsyncadd [#allocation8], %s40
      %s43 = sshll.u32 [#allocation9], 4
      %s44 = int_to_ptr.vmem [resolvable:$true] %s43
      %46 = dma.hbm_to_vmem [thread:$0]  %s2, 16, %s44, [#allocation8]
    $region13: #{t5_forward.42} parent=1 // pred_fallthru
      _
    // Predicated region
    $region14: #{t5_forward.42} parent=1 // pred_check
      _
    $region15: #{t5_forward.42} parent=1 // pred_check_branch
      %48 = sbr.rel (0) target = $region17
    $region16: #{t5_forward.42} parent=1 // pred_region
      %s50 = ssub.s32 16, 16
      %51 = vsyncadd [#allocation11], %s50
      %s53 = sshll.u32 [#allocation10], 4
      %s54 = int_to_ptr.vmem [resolvable:$true] %s53
      %56 = dma.hbm_to_vmem [thread:$0]  %s3, 16, %s54, [#allocation11]
    $region17: #{t5_forward.42} parent=1 // pred_fallthru
      _
    // Predicated region
    $region18: #{t5_forward.42} parent=1 // pred_check
      _
    $region19: #{t5_forward.42} parent=1 // pred_check_branch
      %58 = sbr.rel (0) target = $region21
    $region20: #{t5_forward.42} parent=1 // pred_region
      %59 = dma.done [#allocation5], 128
    $region21: #{t5_forward.42} parent=1 // pred_fallthru
      _
    // Predicated region
    $region22: #{t5_forward.42} parent=1 // pred_check
      _
    $region23: #{t5_forward.42} parent=1 // pred_check_branch
      %61 = sbr.rel (0) target = $region25
    $region24: #{t5_forward.42} parent=1 // pred_region
      %62 = dma.done [#allocation8], 256
    $region25: #{t5_forward.42} parent=1 // pred_fallthru
      _
    // Predicated region
    $region26: #{t5_forward.42} parent=1 // pred_check
      _
    $region27: #{t5_forward.42} parent=1 // pred_check_branch
      %64 = sbr.rel (0) target = $region29
    $region28: #{t5_forward.42} parent=1 // pred_region
      %65 = dma.done [#allocation8], 16
    $region29: #{t5_forward.42} parent=1 // pred_fallthru
      _
    // Predicated region
    $region30: #{t5_forward.42} parent=1 // pred_check
      _
    $region31: #{t5_forward.42} parent=1 // pred_check_branch
      %67 = sbr.rel (0) target = $region33
    $region32: #{t5_forward.42} parent=1 // pred_region
      %68 = dma.done [#allocation11], 16
    $region33: #{t5_forward.42} parent=1 // pred_fallthru
      _
    %p70 = scmp.eq.s32.totalorder 0, 0
    // Predicated region
    $region34: #{t5_forward.42} parent=1 // pred_check
      %p71 = pneg %p70
    $region35: #{t5_forward.42} parent=1 // pred_check_branch
      %73 = sbr.rel (%p71) target = $region37
    $region36: #{t5_forward.42} parent=1 // pred_region
      %vm74 = vcmask 261120
      %75 = vst.msk [vmem:[#allocation2] sm:$0xff] %vm74, 0.0
      %76 = vst.msk [vmem:[#allocation2 + $0x8] sm:$0xff] %vm74, 0.0
    $region37: #{t5_forward.42} parent=1 // pred_fallthru
      _
    %p77 = scmp.eq.s32.totalorder 0, 0
    // Predicated region
    $region38: #{t5_forward.42} parent=1 // pred_check
      %p78 = pneg %p77
    $region39: #{t5_forward.42} parent=1 // pred_check_branch
      %80 = sbr.rel (%p78) target = $region41
    $region40: #{t5_forward.42} parent=1 // pred_region
      %v81 = vld [vmem:[#allocation4] sm:$0xf]
      %v82 = vld [vmem:[#allocation4 + $0x4] sm:$0xf]
      %v83 = vunpack.c.l.bf16 %v81
      %v84 = vunpack.c.l.bf16 %v82
      %v85 = vmul.f32 %v83, %v83
      %v86 = vmul.f32 %v84, %v84
      %vm87 = vcmask 261120
      %v88 = vsel %vm87, %v85, 0.0
      %89 = vadd.xlane.f32.xlu0 %v88
      %v90 = vpop.xlane.xlu0 %89
      %v91 = vsel %vm87, %v86, 0.0
      %92 = vadd.xlane.f32.xlu0 %v91
      %v93 = vpop.xlane.xlu0 %92
      %v94 = vmul.f32 %v90, 0.03125
      %v95 = vmul.f32 %v93, 0.03125
      %v96 = vadd.f32 %v94, 1e-06
      %v97 = vadd.f32 %v95, 1e-06
      %v98 = vrsqrt.pop %v96
      %v99 = vrsqrt.pop %v97
      %v100 = vmul.f32 %v83, %v98
      %v101 = vmul.f32 %v84, %v99
      %v102 = vld [vmem:[#allocation10] sm:$0x1]
      %v104 = vlaneseq
      %v105 = vshrl.u32 %v104, 7
      %v106 = vsub.s32 0, %v105
      %v107 = vrot.slane %v102, %v106
      %v109 = vmul.f32 %v100, %v107
      %v110 = vmul.f32 %v101, %v107
      %v111 = vpack.c.bf16 %v110, %v109
      %112 = vst.msk [vmem:[#allocation3] sm:$0xff] %vm87, %v111
    $region41: #{t5_forward.42} parent=1 // pred_fallthru
      _
    %v113 = vld [vmem:[#allocation3] sm:$0xff]
    %v114 = vld [vmem:[#allocation2] sm:$0xff]
    %v115 = vld [vmem:[#allocation2 + $0x8] sm:$0xff]
    %v116 = vld [vmem:[#allocation7] sm:$0xf]
    %v117 = vld [vmem:[#allocation7 + $0x4] sm:$0xf]
    %v118 = vld [vmem:[#allocation7 + $0x8] sm:$0xf]
    %v119 = vld [vmem:[#allocation7 + $0xc] sm:$0xf]
    %v124 = vunpack.c.l.b16 %v116
    %v125 = vunpack.c.l.b16 %v117
    %v126 = vunpack.c.l.b16 %v118
    %v127 = vunpack.c.l.b16 %v119
    %v128 = vpack.c.b16 %v125, %v124
    %v129 = vpack.c.b16 %v127, %v126
    %vm132 = vcmask 261120
    %v134 = vsel %vm132, %v113, 0
    %136 = vmatprep.subr.bf16.mxu0 0
    %137 = vmatpush1.bf16.msra.mxu0 %v128
    %138 = vmatprep.subr.bf16.mxu0 0
    %139 = vmatpush1.bf16.msra.mxu0 %v129
    %140 = vmatprep.subr.bf16.mxu0 0
    %141 = vmatpush1.bf16.msra.mxu0 0
    %142 = vmatprep.subr.bf16.mxu0 0
    %143 = vmatpush1.bf16.msra.mxu0 0
    %144 = vmatprep.subr.bf16.mxu0 0
    %145 = vmatpush1.bf16.msra.mxu0 0
    %146 = vmatprep.subr.bf16.mxu0 0
    %147 = vmatpush1.bf16.msra.mxu0 0
    %148 = vmatprep.subr.bf16.mxu0 0
    %149 = vmatpush1.bf16.msra.mxu0 0
    %150 = vmatprep.subr.bf16.mxu0 0
    %151 = vmatpush1.bf16.msra.mxu0 0
    %152 = vmatprep.subr.bf16.mxu0 0
    %153 = vmatpush1.bf16.msra.mxu0 0
    %154 = vmatprep.subr.bf16.mxu0 0
    %155 = vmatpush1.bf16.msra.mxu0 0
    %156 = vmatprep.subr.bf16.mxu0 0
    %157 = vmatpush1.bf16.msra.mxu0 0
    %158 = vmatprep.subr.bf16.mxu0 0
    %159 = vmatpush1.bf16.msra.mxu0 0
    %160 = vmatprep.subr.bf16.mxu0 0
    %161 = vmatpush1.bf16.msra.mxu0 0
    %162 = vmatprep.subr.bf16.mxu0 0
    %163 = vmatpush1.bf16.msra.mxu0 0
    %164 = vmatprep.subr.bf16.mxu0 0
    %165 = vmatpush1.bf16.msra.mxu0 0
    %166 = vmatprep.subr.bf16.mxu0 0
    %167 = vmatpush1.bf16.msra.mxu0 0
    %168 = vmatprep.mubr.bf16.mxu0 0
    %169 = vmatmul.mubr.bf16.gmra.mrb[0].mxu0 %v134
    %v170 = vpop.f32.mrb[0].mxu0
    %v171 = vadd.f32 0.0, %v170
    %v172 = vpop.f32.mrb[0].mxu0
    %v173 = vpop.f32.mrb[0].mxu0
    %v174 = vadd.f32 0.0, %v173
    %v175 = vpop.f32.mrb[0].mxu0
    %176 = vdwg.mxu0
    %v177 = vadd.f32 %v114, %v171
    %v178 = vadd.f32 %v115, %v174
    %179 = vst.msk [vmem:[#allocation2] sm:$0xff] %vm132, %v177
    %180 = vst.msk [vmem:[#allocation2 + $0x8] sm:$0xff] %vm132, %v178
    // Predicated region
    $region42: #{t5_forward.42} parent=1 // pred_check
      %p181 = pneg %p70
    $region43: #{t5_forward.42} parent=1 // pred_check_branch
      %183 = sbr.rel (%p181) target = $region45
    $region44: #{t5_forward.42} parent=1 // pred_region
      %v184 = vld [vmem:[#allocation2] sm:$0xff]
      %v185 = vld [vmem:[#allocation2 + $0x8] sm:$0xff]
      %v186 = vld [vmem:[#allocation9] sm:$0x1]
      %v188 = vlaneseq
      %v189 = vshrl.u32 %v188, 7
      %v190 = vsub.s32 0, %v189
      %v191 = vrot.slane %v186, %v190
      %v193 = vadd.f32 %v184, %v191
      %v194 = vadd.f32 %v185, %v191
      %v195 = vpack.c.bf16 %v194, %v193
      %v197 = vunpack.c.l.b16 %v195
      %v198 = vunpack.c.h.b16 %v195
      %v199 = vpack.c.b16 %v197, %v197
      %v200 = vpack.c.b16 %v198, %v198
      %vm203 = vcmask 257024
      %204 = vst.msk [vmem:[#allocation12] sm:$0xf] %vm203, %v199
      %205 = vst.msk [vmem:[#allocation12 + $0x4] sm:$0xf] %vm203, %v200
    $region45: #{t5_forward.42} parent=1 // pred_fallthru
      _
    // Predicated region
    $region46: #{t5_forward.42} parent=1 // pred_check
      _
    $region47: #{t5_forward.42} parent=1 // pred_check_branch
      %207 = sbr.rel (0) target = $region49
    $region48: #{t5_forward.42} parent=1 // pred_region
      %s209 = ssub.s32 128, 128
      %210 = vsyncadd [#allocation6], %s209
      %s211 = sshll.u32 [#allocation12], 4
      %s212 = int_to_ptr.vmem [resolvable:$true] %s211
      %217 = dma.vmem_to_hbm [thread:$0]  %s212, 128, %s4, [#allocation6], 64, 64, 4
    $region49: #{t5_forward.42} parent=1 // pred_fallthru
      _
    // Predicated region
    $region50: #{t5_forward.42} parent=1 // pred_check
      _
    $region51: #{t5_forward.42} parent=1 // pred_check_branch
      %219 = sbr.rel (0) target = $region53
    $region52: #{t5_forward.42} parent=1 // pred_region
      %220 = dma.done [#allocation6], 128
    $region53: #{t5_forward.42} parent=1 // pred_fallthru
      _
    %221 = vsyncpa [#allocation5], 1
    %222 = vsyncpa [#allocation8], 1
    %223 = vsyncpa [#allocation11], 1
    %224 = vsyncpa [#allocation6], 1

// kernel: t5_forward.43
$region0: #{t5_forward.43}
  #allocation0 [shape = 'u32[]', space=smem, size = 0x4, offset = 0x4, fixed_abs, tag = 'smem constant byte address 0x4 - core index']
  #allocation1 [shape = 'u32[144,128]{1,0:T(1,128)}', space=vmem, size = 0x12000, scoped, tag = 'internal scratch']
  #allocation2 [shape = 'f32[16,64]{1,0:T(8,128)}', space=vmem, size = 0x2000, scoped, tag = 'scratch operand']
  %s0 = inlined_call_operand.hbm [shape: bf16[16,32], index: 0, kind: input, shape index: {}]
  %s1 = inlined_call_operand.hbm [shape: bf16[32,64], index: 1, kind: input, shape index: {}]
  %s2 = inlined_call_operand.hbm [shape: f32[1,64], index: 2, kind: input, shape index: {}]
  %s3 = inlined_call_operand.hbm [shape: bf16[16,64], index: 3, kind: output, shape index: {}]
  %s4 = sld [smem:[#allocation0]]
  $region42: #{t5_forward.43} parent=0
    _
  %s6 = ssub.s32 1, %s4
  %s7 = scalar_select 0, %s6, %s4
  $region1: #{t5_forward.43} parent=0
    #allocation3 [shape = 'u8[4096]{0}', space=vmem, size = 0x1000, scoped, tag = 'input window, operand 0, single buffered']
    #allocation4 [shape = 's32[1]{0}', space=sflag, size = 0x4, scoped, tag = 'scoped memory for t5_forward.43']
    #allocation5 [shape = 's32[1]{0}', space=sflag, size = 0x4, scoped, tag = 'scoped memory for t5_forward.43']
    #allocation6 [shape = 'u8[8192]{0}', space=vmem, size = 0x2000, scoped, tag = 'input window, operand 1, single buffered']
    #allocation7 [shape = 's32[1]{0}', space=sflag, size = 0x4, scoped, tag = 'scoped memory for t5_forward.43']
    #allocation8 [shape = 'u8[512]{0}', space=vmem, size = 0x400, scoped, tag = 'input window, operand 2, single buffered']
    #allocation9 [shape = 'u8[4096]{0}', space=vmem, size = 0x1000, scoped, tag = 'output window, operand 0, single buffered']
    %8 = vsyncpa [#allocation4], 0
    %9 = vsyncpa [#allocation7], 0
    %10 = vsyncpa [#allocation5], 0
    // Predicated region
    $region2: #{t5_forward.43} parent=1 // pred_check
      _
    $region3: #{t5_forward.43} parent=1 // pred_check_branch
      %12 = sbr.rel (0) target = $region5
    $region4: #{t5_forward.43} parent=1 // pred_region
      %s14 = ssub.s32 128, 128
      %15 = vsyncadd [#allocation4], %s14
      %s16 = sshll.u32 [#allocation3], 4
      %s17 = int_to_ptr.vmem [resolvable:$true] %s16
      %22 = dma.hbm_to_vmem [thread:$0]  %s0, 128, %s17, [#allocation4], 64, 64, 4
    $region5: #{t5_forward.43} parent=1 // pred_fallthru
      _
    // Predicated region
    $region6: #{t5_forward.43} parent=1 // pred_check
      _
    $region7: #{t5_forward.43} parent=1 // pred_check_branch
      %24 = sbr.rel (0) target = $region9
    $region8: #{t5_forward.43} parent=1 // pred_region
      %s26 = ssub.s32 256, 256
      %27 = vsyncadd [#allocation7], %s26
      %s28 = sshll.u32 [#allocation6], 4
      %s29 = int_to_ptr.vmem [resolvable:$true] %s28
      %34 = dma.hbm_to_vmem [thread:$0]  %s1, 256, %s29, [#allocation7], 64, 64, 4
    $region9: #{t5_forward.43} parent=1 // pred_fallthru
      _
    // Predicated region
    $region10: #{t5_forward.43} parent=1 // pred_check
      _
    $region11: #{t5_forward.43} parent=1 // pred_check_branch
      %36 = sbr.rel (0) target = $region13
    $region12: #{t5_forward.43} parent=1 // pred_region
      %s38 = ssub.s32 16, 16
      %39 = vsyncadd [#allocation7], %s38
      %s41 = sshll.u32 [#allocation8], 4
      %s42 = int_to_ptr.vmem [resolvable:$true] %s41
      %44 = dma.hbm_to_vmem [thread:$0]  %s2, 16, %s42, [#allocation7]
    $region13: #{t5_forward.43} parent=1 // pred_fallthru
      _
    // Predicated region
    $region14: #{t5_forward.43} parent=1 // pred_check
      _
    $region15: #{t5_forward.43} parent=1 // pred_check_branch
      %46 = sbr.rel (0) target = $region17
    $region16: #{t5_forward.43} parent=1 // pred_region
      %47 = dma.done [#allocation4], 128
    $region17: #{t5_forward.43} parent=1 // pred_fallthru
      _
    // Predicated region
    $region18: #{t5_forward.43} parent=1 // pred_check
      _
    $region19: #{t5_forward.43} parent=1 // pred_check_branch
      %49 = sbr.rel (0) target = $region21
    $region20: #{t5_forward.43} parent=1 // pred_region
      %50 = dma.done [#allocation7], 256
    $region21: #{t5_forward.43} parent=1 // pred_fallthru
      _
    // Predicated region
    $region22: #{t5_forward.43} parent=1 // pred_check
      _
    $region23: #{t5_forward.43} parent=1 // pred_check_branch
      %52 = sbr.rel (0) target = $region25
    $region24: #{t5_forward.43} parent=1 // pred_region
      %53 = dma.done [#allocation7], 16
    $region25: #{t5_forward.43} parent=1 // pred_fallthru
      _
    %p55 = scmp.eq.s32.totalorder 0, 0
    // Predicated region
    $region26: #{t5_forward.43} parent=1 // pred_check
      %p56 = pneg %p55
    $region27: #{t5_forward.43} parent=1 // pred_check_branch
      %58 = sbr.rel (%p56) target = $region29
    $region28: #{t5_forward.43} parent=1 // pred_region
      %vm59 = vcmask 523264
      %60 = vst.msk [vmem:[#allocation2] sm:$0xff] %vm59, 0.0
      %61 = vst.msk [vmem:[#allocation2 + $0x8] sm:$0xff] %vm59, 0.0
    $region29: #{t5_forward.43} parent=1 // pred_fallthru
      _
    %v62 = vld [vmem:[#allocation3] sm:$0xf]
    %v63 = vld [vmem:[#allocation3 + $0x4] sm:$0xf]
    %v64 = vld [vmem:[#allocation2] sm:$0xff]
    %v65 = vld [vmem:[#allocation2 + $0x8] sm:$0xff]
    %v66 = vld [vmem:[#allocation6] sm:$0xf]
    %v67 = vld [vmem:[#allocation6 + $0x4] sm:$0xf]
    %v68 = vld [vmem:[#allocation6 + $0x8] sm:$0xf]
    %v69 = vld [vmem:[#allocation6 + $0xc] sm:$0xf]
    %v72 = vunpack.c.l.b16 %v62
    %v73 = vunpack.c.l.b16 %v63
    %v74 = vpack.c.b16 %v73, %v72
    %v79 = vunpack.c.l.b16 %v66
    %v80 = vunpack.c.l.b16 %v67
    %v81 = vunpack.c.l.b16 %v68
    %v82 = vunpack.c.l.b16 %v69
    %v83 = vpack.c.b16 %v80, %v79
    %v84 = vpack.c.b16 %v82, %v81
    %vm87 = vcmask 261120
    %v89 = vsel %vm87, %v74, 0
    %91 = vmatprep.subr.bf16.mxu0 0
    %92 = vmatpush1.bf16.msra.mxu0 %v83
    %93 = vmatprep.subr.bf16.mxu0 0
    %94 = vmatpush1.bf16.msra.mxu0 %v84
    %95 = vmatprep.subr.bf16.mxu0 0
    %96 = vmatpush1.bf16.msra.mxu0 0
    %97 = vmatprep.subr.bf16.mxu0 0
    %98 = vmatpush1.bf16.msra.mxu0 0
    %99 = vmatprep.subr.bf16.mxu0 0
    %100 = vmatpush1.bf16.msra.mxu0 0
    %101 = vmatprep.subr.bf16.mxu0 0
    %102 = vmatpush1.bf16.msra.mxu0 0
    %103 = vmatprep.subr.bf16.mxu0 0
    %104 = vmatpush1.bf16.msra.mxu0 0
    %105 = vmatprep.subr.bf16.mxu0 0
    %106 = vmatpush1.bf16.msra.mxu0 0
    %107 = vmatprep.subr.bf16.mxu0 0
    %108 = vmatpush1.bf16.msra.mxu0 0
    %109 = vmatprep.subr.bf16.mxu0 0
    %110 = vmatpush1.bf16.msra.mxu0 0
    %111 = vmatprep.subr.bf16.mxu0 0
    %112 = vmatpush1.bf16.msra.mxu0 0
    %113 = vmatprep.subr.bf16.mxu0 0
    %114 = vmatpush1.bf16.msra.mxu0 0
    %115 = vmatprep.subr.bf16.mxu0 0
    %116 = vmatpush1.bf16.msra.mxu0 0
    %117 = vmatprep.subr.bf16.mxu0 0
    %118 = vmatpush1.bf16.msra.mxu0 0
    %119 = vmatprep.subr.bf16.mxu0 0
    %120 = vmatpush1.bf16.msra.mxu0 0
    %121 = vmatprep.subr.bf16.mxu0 0
    %122 = vmatpush1.bf16.msra.mxu0 0
    %123 = vmatprep.mubr.bf16.mxu0 0
    %124 = vmatmul.mubr.bf16.gmra.mrb[0].mxu0 %v89
    %v125 = vpop.f32.mrb[0].mxu0
    %v126 = vadd.f32 0.0, %v125
    %v127 = vpop.f32.mrb[0].mxu0
    %v128 = vpop.f32.mrb[0].mxu0
    %v129 = vadd.f32 0.0, %v128
    %v130 = vpop.f32.mrb[0].mxu0
    %131 = vdwg.mxu0
    %v132 = vadd.f32 %v64, %v126
    %v133 = vadd.f32 %v65, %v129
    %vm134 = vcmask 523264
    %135 = vst.msk [vmem:[#allocation2] sm:$0xff] %vm134, %v132
    %136 = vst.msk [vmem:[#allocation2 + $0x8] sm:$0xff] %vm134, %v133
    // Predicated region
    $region30: #{t5_forward.43} parent=1 // pred_check
      %p137 = pneg %p55
    $region31: #{t5_forward.43} parent=1 // pred_check_branch
      %139 = sbr.rel (%p137) target = $region33
    $region32: #{t5_forward.43} parent=1 // pred_region
      %v140 = vld [vmem:[#allocation2] sm:$0xff]
      %v141 = vld [vmem:[#allocation2 + $0x8] sm:$0xff]
      %v142 = vld [vmem:[#allocation8] sm:$0x1]
      %v144 = vlaneseq
      %v145 = vshrl.u32 %v144, 7
      %v146 = vsub.s32 0, %v145
      %v147 = vrot.slane %v142, %v146
      %v149 = vadd.f32 %v140, %v147
      %v150 = vadd.f32 %v141, %v147
      %v151 = vpack.c.bf16 %v150, %v149
      %v153 = vunpack.c.l.b16 %v151
      %v154 = vunpack.c.h.b16 %v151
      %v155 = vpack.c.b16 %v153, %v153
      %v156 = vpack.c.b16 %v154, %v154
      %vm159 = vcmask 519168
      %160 = vst.msk [vmem:[#allocation9] sm:$0xf] %vm159, %v155
      %161 = vst.msk [vmem:[#allocation9 + $0x4] sm:$0xf] %vm159, %v156
    $region33: #{t5_forward.43} parent=1 // pred_fallthru
      _
    // Predicated region
    $region34: #{t5_forward.43} parent=1 // pred_check
      _
    $region35: #{t5_forward.43} parent=1 // pred_check_branch
      %163 = sbr.rel (0) target = $region37
    $region36: #{t5_forward.43} parent=1 // pred_region
      %s165 = ssub.s32 128, 128
      %166 = vsyncadd [#allocation5], %s165
      %s167 = sshll.u32 [#allocation9], 4
      %s168 = int_to_ptr.vmem [resolvable:$true] %s167
      %173 = dma.vmem_to_hbm [thread:$0]  %s168, 128, %s3, [#allocation5], 64, 64, 4
    $region37: #{t5_forward.43} parent=1 // pred_fallthru
      _
    // Predicated region
    $region38: #{t5_forward.43} parent=1 // pred_check
      _
    $region39: #{t5_forward.43} parent=1 // pred_check_branch
      %175 = sbr.rel (0) target = $region41
    $region40: #{t5_forward.43} parent=1 // pred_region
      %176 = dma.done [#allocation5], 128
    $region41: #{t5_forward.43} parent=1 // pred_fallthru
      _
    %177 = vsyncpa [#allocation4], 1
    %178 = vsyncpa [#allocation7], 1
    %179 = vsyncpa [#allocation5], 1

// kernel: t5_forward.40
$region0: #{t5_forward.40}
  #allocation0 [shape = 'u32[]', space=smem, size = 0x4, offset = 0x4, fixed_abs, tag = 'smem constant byte address 0x4 - core index']
  #allocation1 [shape = 'u32[144,128]{1,0:T(1,128)}', space=vmem, size = 0x12000, scoped, tag = 'internal scratch']
  #allocation2 [shape = 'f32[4,8,1]{2,1,0:T(8,128)}', space=vmem, size = 0x4000, scoped, tag = 'scratch operand']
  #allocation3 [shape = 'f32[4,8,1]{2,1,0:T(8,128)}', space=vmem, size = 0x4000, scoped, tag = 'scratch operand']
  #allocation4 [shape = 'f32[4,8,8]{2,1,0:T(8,128)}', space=vmem, size = 0x4000, scoped, tag = 'scratch operand']
  %s0 = inlined_call_operand.hbm [shape: f32[2,1,8], index: 0, kind: input, shape index: {}]
  %s1 = inlined_call_operand.hbm [shape: bf16[2,4,8,8], index: 1, kind: input, shape index: {}]
  %s2 = inlined_call_operand.hbm [shape: bf16[2,4,8,8], index: 2, kind: input, shape index: {}]
  %s3 = inlined_call_operand.hbm [shape: bf16[2,4,8,8], index: 3, kind: input, shape index: {}]
  %s4 = inlined_call_operand.hbm [shape: bf16[2,4,8,8], index: 4, kind: output, shape index: {}]
  %s5 = sld [smem:[#allocation0]]
  $region73: #{t5_forward.40} parent=0
    _
  %s7 = ssub.s32 1, %s5
  %s8 = scalar_select 0, %s7, %s5
  $region1: #{t5_forward.40} parent=0
    #allocation5 [shape = 'u8[1024]{0}', space=vmem, size = 0x400, scoped, tag = 'input window, operand 0']
    #allocation6 [shape = 's32[2]{0}', space=sflag, size = 0x8, scoped, tag = 'scoped memory for t5_forward.40']
    #allocation7 [shape = 's32[2]{0}', space=sflag, size = 0x8, scoped, tag = 'scoped memory for t5_forward.40']
    #allocation8 [shape = 'u8[16384]{0}', space=vmem, size = 0x4000, scoped, tag = 'input window, operand 1']
    #allocation9 [shape = 's32[2]{0}', space=sflag, size = 0x8, scoped, tag = 'scoped memory for t5_forward.40']
    #allocation10 [shape = 'u8[16384]{0}', space=vmem, size = 0x4000, scoped, tag = 'input window, operand 2']
    #allocation11 [shape = 'u8[16384]{0}', space=vmem, size = 0x4000, scoped, tag = 'input window, operand 3']
    #allocation12 [shape = 's32[2]{0}', space=sflag, size = 0x8, scoped, tag = 'scoped memory for t5_forward.40']
    #allocation13 [shape = 'u8[16384]{0}', space=vmem, size = 0x4000, scoped, tag = 'output window, operand 0']
    %9 = vsyncpa [#allocation6], 0
    %s10 = scalar_lea.sflag [#allocation6], 1
    %11 = vsyncpa %s10, 0
    %12 = vsyncpa [#allocation9], 0
    %s13 = scalar_lea.sflag [#allocation9], 1
    %14 = vsyncpa %s13, 0
    %15 = vsyncpa [#allocation12], 0
    %s16 = scalar_lea.sflag [#allocation12], 1
    %17 = vsyncpa %s16, 0
    %18 = vsyncpa [#allocation7], 0
    %s19 = scalar_lea.sflag [#allocation7], 1
    %20 = vsyncpa %s19, 0
    loop: start=0, step=1, limit=4
    $region2: #{t5_forward.40} parent=1 // loop_pre_header
      _
    $region3: #{t5_forward.40} parent=1 // loop_header
      %s22 = sphi 0, %s26
      %p23 = scmp.ge.s32.totalorder %s22, 4
      %s29 = sphi 0, %s48
      %s30 = sphi 0, %s44
      %s31 = sphi 0, %s40
      %s32 = sphi 0, %s29
      %s33 = sphi 0, %s30
      %s34 = sphi 0, %s31
      %s35 = sphi 0, %s32
      %s36 = sphi 0, %s33
      %s37 = sphi 0, %s34
      %s53 = sphi 0, %s55
      %s56 = sphi 0, %s53
      %s57 = sphi 0, %s56
      %s73 = sphi 0, %s57
      %s81 = sphi 0, %s83
      %s84 = sphi 0, %s81
      %s85 = sphi 0, %s84
      %s101 = sphi 0, %s85
      %s109 = sphi 0, %s111
      %s112 = sphi 0, %s109
      %s113 = sphi 0, %s112
      %s129 = sphi 0, %s113
      %s137 = sphi 0, %s139
      %s140 = sphi 0, %s137
      %s141 = sphi 0, %s140
      %s157 = sphi 0, %s141
      %s165 = sphi 0, %s167
      %s168 = sphi 0, %s165
      %s169 = sphi 0, %s168
      %s185 = sphi 0, %s169
    $region4: #{t5_forward.40} parent=1 // loop_header_branch
      %25 = sbr.rel (%p23) target = $region8
    $region5: #{t5_forward.40} parent=1 // loop_body
      %s27 = ssub.s32 %s22, 1
      %s28 = ssub.s32 %s22, 2
      %s38 = sadd.s32 1, %s31
      %p39 = scmp.ge.s32.totalorder %s38, 1
      %s40 = scalar_select %p39, 0, %s38
      %s41 = sadd.s32 1, %s30
      %s42 = scalar_select %p39, %s41, %s30
      %p43 = scmp.ge.s32.totalorder %s42, 1
      %s44 = scalar_select %p43, 0, %s42
      %s45 = sadd.s32 1, %s29
      %s46 = scalar_select %p43, %s45, %s29
      %p47 = scmp.ge.s32.totalorder %s46, 2
      %s48 = scalar_select %p47, 0, %s46
      %s49 = ssub.s32 %s29, %s48
      %s50 = ssub.s32 %s31, %s40
      %s51 = sor.u32 %s49, %s50
      %p52 = scmp.eq.s32.totalorder %s51, 0
      %s54 = sadd.s32 %s53, 1
      %s55 = scalar_select %p52, %s53, %s54
      %p58 = pneg %p52
      %p59 = scmp.eq.s32.totalorder %s22, 1
      %p60 = por %p58, %p59
      %p61 = scmp.ne.s32.totalorder %s53, %s56
      %p62 = scmp.eq.s32.totalorder %s22, 0
      %p63 = por %p61, %p62
      %p64 = scmp.ne.s32.totalorder %s53, %s56
      %p65 = scmp.eq.s32.totalorder %s27, 1
      %p66 = por %p64, %p65
      %p67 = scmp.ne.s32.totalorder %s56, %s57
      %p68 = scmp.eq.s32.totalorder %s27, 0
      %p69 = por %p67, %p68
      %p70 = scmp.ne.s32.totalorder %s56, %s57
      %p71 = scmp.eq.s32.totalorder %s28, 1
      %p72 = por %p70, %p71
      %p74 = scmp.ne.s32.totalorder %s57, %s73
      %p75 = scmp.eq.s32.totalorder %s28, 0
      %p76 = por %p74, %p75
      %s77 = ssub.s32 %s29, %s48
      %s78 = ssub.s32 %s30, %s44
      %s79 = sor.u32 %s77, %s78
      %p80 = scmp.eq.s32.totalorder %s79, 0
      %s82 = sadd.s32 %s81, 1
      %s83 = scalar_select %p80, %s81, %s82
      %p86 = pneg %p80
      %p87 = scmp.eq.s32.totalorder %s22, 1
      %p88 = por %p86, %p87
      %p89 = scmp.ne.s32.totalorder %s81, %s84
      %p90 = scmp.eq.s32.totalorder %s22, 0
      %p91 = por %p89, %p90
      %p92 = scmp.ne.s32.totalorder %s81, %s84
      %p93 = scmp.eq.s32.totalorder %s27, 1
      %p94 = por %p92, %p93
      %p95 = scmp.ne.s32.totalorder %s84, %s85
      %p96 = scmp.eq.s32.totalorder %s27, 0
      %p97 = por %p95, %p96
      %p98 = scmp.ne.s32.totalorder %s84, %s85
      %p99 = scmp.eq.s32.totalorder %s28, 1
      %p100 = por %p98, %p99
      %p102 = scmp.ne.s32.totalorder %s85, %s101
      %p103 = scmp.eq.s32.totalorder %s28, 0
      %p104 = por %p102, %p103
      %s105 = ssub.s32 %s29, %s48
      %s106 = ssub.s32 %s31, %s40
      %s107 = sor.u32 %s105, %s106
      %p108 = scmp.eq.s32.totalorder %s107, 0
      %s110 = sadd.s32 %s109, 1
      %s111 = scalar_select %p108, %s109, %s110
      %p114 = pneg %p108
      %p115 = scmp.eq.s32.totalorder %s22, 1
      %p116 = por %p114, %p115
      %p117 = scmp.ne.s32.totalorder %s109, %s112
      %p118 = scmp.eq.s32.totalorder %s22, 0
      %p119 = por %p117, %p118
      %p120 = scmp.ne.s32.totalorder %s109, %s112
      %p121 = scmp.eq.s32.totalorder %s27, 1
      %p122 = por %p120, %p121
      %p123 = scmp.ne.s32.totalorder %s112, %s113
      %p124 = scmp.eq.s32.totalorder %s27, 0
      %p125 = por %p123, %p124
      %p126 = scmp.ne.s32.totalorder %s112, %s113
      %p127 = scmp.eq.s32.totalorder %s28, 1
      %p128 = por %p126, %p127
      %p130 = scmp.ne.s32.totalorder %s113, %s129
      %p131 = scmp.eq.s32.totalorder %s28, 0
      %p132 = por %p130, %p131
      %s133 = ssub.s32 %s29, %s48
      %s134 = ssub.s32 %s31, %s40
      %s135 = sor.u32 %s133, %s134
      %p136 = scmp.eq.s32.totalorder %s135, 0
      %s138 = sadd.s32 %s137, 1
      %s139 = scalar_select %p136, %s137, %s138
      %p142 = pneg %p136
      %p143 = scmp.eq.s32.totalorder %s22, 1
      %p144 = por %p142, %p143
      %p145 = scmp.ne.s32.totalorder %s137, %s140
      %p146 = scmp.eq.s32.totalorder %s22, 0
      %p147 = por %p145, %p146
      %p148 = scmp.ne.s32.totalorder %s137, %s140
      %p149 = scmp.eq.s32.totalorder %s27, 1
      %p150 = por %p148, %p149
      %p151 = scmp.ne.s32.totalorder %s140, %s141
      %p152 = scmp.eq.s32.totalorder %s27, 0
      %p153 = por %p151, %p152
      %p154 = scmp.ne.s32.totalorder %s140, %s141
      %p155 = scmp.eq.s32.totalorder %s28, 1
      %p156 = por %p154, %p155
      %p158 = scmp.ne.s32.totalorder %s141, %s157
      %p159 = scmp.eq.s32.totalorder %s28, 0
      %p160 = por %p158, %p159
      %s161 = ssub.s32 %s29, %s48
      %s162 = ssub.s32 %s30, %s44
      %s163 = sor.u32 %s161, %s162
      %p164 = scmp.eq.s32.totalorder %s163, 0
      %s166 = sadd.s32 %s165, 1
      %s167 = scalar_select %p164, %s165, %s166
      %p170 = pneg %p164
      %p171 = scmp.eq.s32.totalorder %s22, 1
      %p172 = por %p170, %p171
      %p173 = scmp.ne.s32.totalorder %s165, %s168
      %p174 = scmp.eq.s32.totalorder %s22, 0
      %p175 = por %p173, %p174
      %p176 = scmp.ne.s32.totalorder %s165, %s168
      %p177 = scmp.eq.s32.totalorder %s27, 1
      %p178 = por %p176, %p177
      %p179 = scmp.ne.s32.totalorder %s168, %s169
      %p180 = scmp.eq.s32.totalorder %s27, 0
      %p181 = por %p179, %p180
      %p182 = scmp.ne.s32.totalorder %s168, %s169
      %p183 = scmp.eq.s32.totalorder %s28, 1
      %p184 = por %p182, %p183
      %p186 = scmp.ne.s32.totalorder %s169, %s185
      %p187 = scmp.eq.s32.totalorder %s28, 0
      %p188 = por %p186, %p187
      %p189 = scmp.le.s32.totalorder 1, %s22
      %p190 = scmp.lt.s32.totalorder %s22, 3
      %p191 = pnand %p189, %p190
      %p192 = pneg %p191
      // Predicated region
      $region9: #{t5_forward.40} parent=5 // pred_check
        _
      $region10: #{t5_forward.40} parent=5 // pred_check_branch
        %194 = sbr.rel (%p191) target = $region12
      $region11: #{t5_forward.40} parent=5 // pred_region
        %s195 = ssub.s32 %s22, 1
      $region12: #{t5_forward.40} parent=5 // pred_fallthru
        _
      %p196 = scmp.lt.s32.totalorder %s22, 2
      // Predicated region
      $region13: #{t5_forward.40} parent=5 // pred_check
        %p197 = pneg %p196
      $region14: #{t5_forward.40} parent=5 // pred_check_branch
        %199 = sbr.rel (%p197) target = $region16
      $region15: #{t5_forward.40} parent=5 // pred_region
        // Predicated region
        $region17: #{t5_forward.40} parent=15 // pred_check
          %p200 = pneg %p63
        $region18: #{t5_forward.40} parent=15 // pred_check_branch
          %202 = sbr.rel (%p200) target = $region20
        $region19: #{t5_forward.40} parent=15 // pred_region
          %s203 = sand.u32 %s53, 1
          %s204 = scalar_lea.sflag [#allocation6], %s203
          %s205 = sand.u32 %s53, 1
          %s206 = scalar_lea.vmem [#allocation5], %s205
          %s208 = ssub.s32 16, 16
          %209 = vsyncadd %s204, %s208
          %s210 = sadd.s32 %s31, %s29
          %s211 = smul.addr %s210, 16
          %s212 = scalar_lea.hbm %s0, %s211
          %s214 = sshll.u32 %s206, 4
          %s215 = int_to_ptr.vmem [resolvable:$true] %s214
          %217 = dma.hbm_to_vmem [thread:$0]  %s212, 16, %s215, %s204
        $region20: #{t5_forward.40} parent=15 // pred_fallthru
          _
        // Predicated region
        $region21: #{t5_forward.40} parent=15 // pred_check
          %p218 = pneg %p91
        $region22: #{t5_forward.40} parent=15 // pred_check_branch
          %220 = sbr.rel (%p218) target = $region24
        $region23: #{t5_forward.40} parent=15 // pred_region
          %s221 = sand.u32 %s22, 1
          %s222 = scalar_lea.sflag [#allocation9], %s221
          %s223 = sand.u32 %s81, 1
          %s224 = smul.addr %s223, 16
          %s225 = scalar_lea.vmem [#allocation8], %s224
          %s227 = ssub.s32 256, 256
          %228 = vsyncadd %s222, %s227
          %s229 = smul.addr %s29, 4
          %s230 = sadd.s32 %s30, %s229
          %s231 = smul.addr %s230, 64
          %s232 = scalar_lea.hbm %s1, %s231
          %s233 = sshll.u32 %s225, 4
          %s234 = int_to_ptr.vmem [resolvable:$true] %s233
          %239 = dma.hbm_to_vmem [thread:$0]  %s232, 256, %s234, %s222, 64, 64, 4
        $region24: #{t5_forward.40} parent=15 // pred_fallthru
          _
        // Predicated region
        $region25: #{t5_forward.40} parent=15 // pred_check
          %p240 = pneg %p119
        $region26: #{t5_forward.40} parent=15 // pred_check_branch
          %242 = sbr.rel (%p240) target = $region28
        $region27: #{t5_forward.40} parent=15 // pred_region
          %s243 = sand.u32 %s22, 1
          %s244 = scalar_lea.sflag [#allocation9], %s243
          %s245 = sand.u32 %s109, 1
          %s246 = smul.addr %s245, 16
          %s247 = scalar_lea.vmem [#allocation10], %s246
          %s249 = ssub.s32 256, 256
          %250 = vsyncadd %s244, %s249
          %s251 = smul.addr %s29, 4
          %s252 = sadd.s32 %s31, %s251
          %s253 = smul.addr %s252, 64
          %s254 = scalar_lea.hbm %s2, %s253
          %s255 = sshll.u32 %s247, 4
          %s256 = int_to_ptr.vmem [resolvable:$true] %s255
          %261 = dma.hbm_to_vmem [thread:$0]  %s254, 256, %s256, %s244, 64, 64, 4
        $region28: #{t5_forward.40} parent=15 // pred_fallthru
          _
        // Predicated region
        $region29: #{t5_forward.40} parent=15 // pred_check
          %p262 = pneg %p147
        $region30: #{t5_forward.40} parent=15 // pred_check_branch
          %264 = sbr.rel (%p262) target = $region32
        $region31: #{t5_forward.40} parent=15 // pred_region
          %s265 = sand.u32 %s137, 1
          %s266 = scalar_lea.sflag [#allocation12], %s265
          %s267 = sand.u32 %s137, 1
          %s268 = smul.addr %s267, 16
          %s269 = scalar_lea.vmem [#allocation11], %s268
          %s271 = ssub.s32 256, 256
          %272 = vsyncadd %s266, %s271
          %s273 = smul.addr %s29, 4
          %s274 = sadd.s32 %s31, %s273
          %s275 = smul.addr %s274, 64
          %s276 = scalar_lea.hbm %s3, %s275
          %s277 = sshll.u32 %s269, 4
          %s278 = int_to_ptr.vmem [resolvable:$true] %s277
          %283 = dma.hbm_to_vmem [thread:$0]  %s276, 256, %s278, %s266, 64, 64, 4
        $region32: #{t5_forward.40} parent=15 // pred_fallthru
          _
      $region16: #{t5_forward.40} parent=5 // pred_fallthru
        _
      %p284 = scmp.le.s32.totalorder 1, %s22
      %p285 = scmp.lt.s32.totalorder %s22, 3
      %p286 = pnand %p284, %p285
      %p287 = pneg %p286
      // Predicated region
      $region33: #{t5_forward.40} parent=5 // pred_check
        _
      $region34: #{t5_forward.40} parent=5 // pred_check_branch
        %289 = sbr.rel (%p286) target = $region36
      $region35: #{t5_forward.40} parent=5 // pred_region
        %s290 = ssub.s32 %s22, 1
        %s291 = sand.u32 %s56, 1
        %s292 = scalar_lea.sflag [#allocation6], %s291
        %s293 = sand.u32 %s56, 1
        %s294 = scalar_lea.vmem [#allocation5], %s293
        // Predicated region
        $region37: #{t5_forward.40} parent=35 // pred_check
          %p295 = pneg %p69
        $region38: #{t5_forward.40} parent=35 // pred_check_branch
          %297 = sbr.rel (%p295) target = $region40
        $region39: #{t5_forward.40} parent=35 // pred_region
          %298 = dma.done %s292, 16
        $region40: #{t5_forward.40} parent=35 // pred_fallthru
          _
        %s299 = sand.u32 %s27, 1
        %s300 = scalar_lea.sflag [#allocation9], %s299
        %s301 = sand.u32 %s84, 1
        %s302 = smul.addr %s301, 16
        %s303 = scalar_lea.vmem [#allocation8], %s302
        // Predicated region
        $region41: #{t5_forward.40} parent=35 // pred_check
          %p304 = pneg %p97
        $region42: #{t5_forward.40} parent=35 // pred_check_branch
          %306 = sbr.rel (%p304) target = $region44
        $region43: #{t5_forward.40} parent=35 // pred_region
          %307 = dma.done %s300, 256
        $region44: #{t5_forward.40} parent=35 // pred_fallthru
          _
        %s308 = sand.u32 %s27, 1
        %s309 = scalar_lea.sflag [#allocation9], %s308
        %s310 = sand.u32 %s112, 1
        %s311 = smul.addr %s310, 16
        %s312 = scalar_lea.vmem [#allocation10], %s311
        // Predicated region
        $region45: #{t5_forward.40} parent=35 // pred_check
          %p313 = pneg %p125
        $region46: #{t5_forward.40} parent=35 // pred_check_branch
          %315 = sbr.rel (%p313) target = $region48
        $region47: #{t5_forward.40} parent=35 // pred_region
          %316 = dma.done %s309, 256
        $region48: #{t5_forward.40} parent=35 // pred_fallthru
          _
        %s317 = sand.u32 %s140, 1
        %s318 = scalar_lea.sflag [#allocation12], %s317
        %s319 = sand.u32 %s140, 1
        %s320 = smul.addr %s319, 16
        %s321 = scalar_lea.vmem [#allocation11], %s320
        // Predicated region
        $region49: #{t5_forward.40} parent=35 // pred_check
          %p322 = pneg %p153
        $region50: #{t5_forward.40} parent=35 // pred_check_branch
          %324 = sbr.rel (%p322) target = $region52
        $region51: #{t5_forward.40} parent=35 // pred_region
          %325 = dma.done %s318, 256
        $region52: #{t5_forward.40} parent=35 // pred_fallthru
          _
        %s326 = sand.u32 %s56, 1
        %s327 = scalar_lea.sflag [#allocation6], %s326
        %s328 = sand.u32 %s56, 1
        %s329 = scalar_lea.vmem [#allocation5], %s328
        %p330 = pneg %p69
        %p331 = pneg %p66
        %s332 = sand.u32 %s27, 1
        %s333 = scalar_lea.sflag [#allocation9], %s332
        %s334 = sand.u32 %s84, 1
        %s335 = smul.addr %s334, 16
        %s336 = scalar_lea.vmem [#allocation8], %s335
        %p337 = pneg %p97
        %p338 = pneg %p94
        %s339 = sand.u32 %s27, 1
        %s340 = scalar_lea.sflag [#allocation9], %s339
        %s341 = sand.u32 %s112, 1
        %s342 = smul.addr %s341, 16
        %s343 = scalar_lea.vmem [#allocation10], %s342
        %p344 = pneg %p125
        %p345 = pneg %p122
        %s346 = sand.u32 %s140, 1
        %s347 = scalar_lea.sflag [#allocation12], %s346
        %s348 = sand.u32 %s140, 1
        %s349 = smul.addr %s348, 16
        %s350 = scalar_lea.vmem [#allocation11], %s349
        %p351 = pneg %p153
        %p352 = pneg %p150
        %p353 = pneg %p181
        %p354 = pneg %p178
        %s355 = sand.u32 %s168, 1
        %s356 = scalar_lea.sflag [#allocation7], %s355
        %s357 = sand.u32 %s168, 1
        %s358 = smul.addr %s357, 16
        %s359 = scalar_lea.vmem [#allocation13], %s358
        %p361 = scmp.eq.s32.totalorder %s34, 0
        // Predicated region
        $region53: #{t5_forward.40} parent=35 // pred_check
          %p362 = pneg %p361
        $region54: #{t5_forward.40} parent=35 // pred_check_branch
          %364 = sbr.rel (%p362) target = $region56
        $region55: #{t5_forward.40} parent=35 // pred_region
          %vm365 = vcmask 7168
          %366 = vst.msk [vmem:[#allocation2] sm:$0xff] %vm365, -inf
          %367 = vst.msk [vmem:[#allocation2 + $0x8] sm:$0xff] %vm365, -inf
          %368 = vst.msk [vmem:[#allocation2 + $0x10] sm:$0xff] %vm365, -inf
          %369 = vst.msk [vmem:[#allocation2 + $0x18] sm:$0xff] %vm365, -inf
          %370 = vst.msk [vmem:[#allocation3] sm:$0xff] %vm365, 0.0
          %371 = vst.msk [vmem:[#allocation3 + $0x8] sm:$0xff] %vm365, 0.0
          %372 = vst.msk [vmem:[#allocation3 + $0x10] sm:$0xff] %vm365, 0.0
          %373 = vst.msk [vmem:[#allocation3 + $0x18] sm:$0xff] %vm365, 0.0
          %vm374 = vcmask 64512
          %375 = vst.msk [vmem:[#allocation4] sm:$0xff] %vm374, 0.0
          %376 = vst.msk [vmem:[#allocation4 + $0x8] sm:$0xff] %vm374, 0.0
          %377 = vst.msk [vmem:[#allocation4 + $0x10] sm:$0xff] %vm374, 0.0
          %378 = vst.msk [vmem:[#allocation4 + $0x18] sm:$0xff] %vm374, 0.0
        $region56: #{t5_forward.40} parent=35 // pred_fallthru
          _
        %v379 = vld [vmem:[%s303] sm:$0xf]
        %v380 = vld [vmem:[%s303 + $0x4] sm:$0xf]
        %v381 = vld [vmem:[%s303 + $0x8] sm:$0xf]
        %v382 = vld [vmem:[%s303 + $0xc] sm:$0xf]
        %v383 = vld [vmem:[%s312] sm:$0xf]
        %v384 = vld [vmem:[%s312 + $0x4] sm:$0xf]
        %v385 = vld [vmem:[%s312 + $0x8] sm:$0xf]
        %v386 = vld [vmem:[%s312 + $0xc] sm:$0xf]
        %v387 = vld [vmem:[%s321] sm:$0xf]
        %v388 = vld [vmem:[%s321 + $0x4] sm:$0xf]
        %v389 = vld [vmem:[%s321 + $0x8] sm:$0xf]
        %v390 = vld [vmem:[%s321 + $0xc] sm:$0xf]
        %vm391 = vcmask 64512
        %v393 = vsel %vm391, %v379, 0
        %v396 = vsel %vm391, %v383, 0
        %398 = vmatprep.subr.bf16.mxu0 0
        %399 = vmatpush1.bf16.xpose.msra.mxu0 %v396
        %400 = vmatprep.subr.bf16.mxu0 0
        %401 = vmatpush1.bf16.xpose.msra.mxu0 0
        %402 = vmatprep.subr.bf16.mxu0 0
        %403 = vmatpush1.bf16.xpose.msra.mxu0 0
        %404 = vmatprep.subr.bf16.mxu0 0
        %405 = vmatpush1.bf16.xpose.msra.mxu0 0
        %406 = vmatprep.subr.bf16.mxu0 0
        %407 = vmatpush1.bf16.xpose.msra.mxu0 0
        %408 = vmatprep.subr.bf16.mxu0 0
        %409 = vmatpush1.bf16.xpose.msra.mxu0 0
        %410 = vmatprep.subr.bf16.mxu0 0
        %411 = vmatpush1.bf16.xpose.msra.mxu0 0
        %412 = vmatprep.subr.bf16.mxu0 0
        %413 = vmatpush1.bf16.xpose.msra.mxu0 0
        %414 = vmatprep.subr.bf16.mxu0 0
        %415 = vmatpush1.bf16.xpose.msra.mxu0 0
        %416 = vmatprep.subr.bf16.mxu0 0
        %417 = vmatpush1.bf16.xpose.msra.mxu0 0
        %418 = vmatprep.subr.bf16.mxu0 0
        %419 = vmatpush1.bf16.xpose.msra.mxu0 0
        %420 = vmatprep.subr.bf16.mxu0 0
        %421 = vmatpush1.bf16.xpose.msra.mxu0 0
        %422 = vmatprep.subr.bf16.mxu0 0
        %423 = vmatpush1.bf16.xpose.msra.mxu0 0
        %424 = vmatprep.subr.bf16.mxu0 0
        %425 = vmatpush1.bf16.xpose.msra.mxu0 0
        %426 = vmatprep.subr.bf16.mxu0 0
        %427 = vmatpush1.bf16.xpose.msra.mxu0 0
        %428 = vmatprep.subr.bf16.mxu0 0
        %429 = vmatpush1.bf16.xpose.msra.mxu0 0
        %430 = vmatprep.mubr.bf16.mxu0 0
        %431 = vmatmul.mubr.bf16.gmra.mrb[0].mxu0 %v393
        %v432 = vpop.f32.mrb[0].mxu0
        %v433 = vadd.f32 0.0, %v432
        %v434 = vpop.f32.mrb[0].mxu0
        %v435 = vpop.f32.mrb[0].mxu0
        %v436 = vpop.f32.mrb[0].mxu0
        %437 = vdwg.mxu0
        %v439 = vsel %vm391, %v380, 0
        %v442 = vsel %vm391, %v384, 0
        %444 = vmatprep.subr.bf16.mxu0 0
        %445 = vmatpush1.bf16.xpose.msra.mxu0 %v442
        %446 = vmatprep.subr.bf16.mxu0 0
        %447 = vmatpush1.bf16.xpose.msra.mxu0 0
        %448 = vmatprep.subr.bf16.mxu0 0
        %449 = vmatpush1.bf16.xpose.msra.mxu0 0
        %450 = vmatprep.subr.bf16.mxu0 0
        %451 = vmatpush1.bf16.xpose.msra.mxu0 0
        %452 = vmatprep.subr.bf16.mxu0 0
        %453 = vmatpush1.bf16.xpose.msra.mxu0 0
        %454 = vmatprep.subr.bf16.mxu0 0
        %455 = vmatpush1.bf16.xpose.msra.mxu0 0
        %456 = vmatprep.subr.bf16.mxu0 0
        %457 = vmatpush1.bf16.xpose.msra.mxu0 0
        %458 = vmatprep.subr.bf16.mxu0 0
        %459 = vmatpush1.bf16.xpose.msra.mxu0 0
        %460 = vmatprep.subr.bf16.mxu0 0
        %461 = vmatpush1.bf16.xpose.msra.mxu0 0
        %462 = vmatprep.subr.bf16.mxu0 0
        %463 = vmatpush1.bf16.xpose.msra.mxu0 0
        %464 = vmatprep.subr.bf16.mxu0 0
        %465 = vmatpush1.bf16.xpose.msra.mxu0 0
        %466 = vmatprep.subr.bf16.mxu0 0
        %467 = vmatpush1.bf16.xpose.msra.mxu0 0
        %468 = vmatprep.subr.bf16.mxu0 0
        %469 = vmatpush1.bf16.xpose.msra.mxu0 0
        %470 = vmatprep.subr.bf16.mxu0 0
        %471 = vmatpush1.bf16.xpose.msra.mxu0 0
        %472 = vmatprep.subr.bf16.mxu0 0
        %473 = vmatpush1.bf16.xpose.msra.mxu0 0
        %474 = vmatprep.subr.bf16.mxu0 0
        %475 = vmatpush1.bf16.xpose.msra.mxu0 0
        %476 = vmatprep.mubr.bf16.mxu0 0
        %477 = vmatmul.mubr.bf16.gmra.mrb[0].mxu0 %v439
        %v478 = vpop.f32.mrb[0].mxu0
        %v479 = vadd.f32 0.0, %v478
        %v480 = vpop.f32.mrb[0].mxu0
        %v481 = vpop.f32.mrb[0].mxu0
        %v482 = vpop.f32.mrb[0].mxu0
        %483 = vdwg.mxu0
        %v485 = vsel %vm391, %v381, 0
        %v488 = vsel %vm391, %v385, 0
        %490 = vmatprep.subr.bf16.mxu0 0
        %491 = vmatpush1.bf16.xpose.msra.mxu0 %v488
        %492 = vmatprep.subr.bf16.mxu0 0
        %493 = vmatpush1.bf16.xpose.msra.mxu0 0
        %494 = vmatprep.subr.bf16.mxu0 0
        %495 = vmatpush1.bf16.xpose.msra.mxu0 0
        %496 = vmatprep.subr.bf16.mxu0 0
        %497 = vmatpush1.bf16.xpose.msra.mxu0 0
        %498 = vmatprep.subr.bf16.mxu0 0
        %499 = vmatpush1.bf16.xpose.msra.mxu0 0
        %500 = vmatprep.subr.bf16.mxu0 0
        %501 = vmatpush1.bf16.xpose.msra.mxu0 0
        %502 = vmatprep.subr.bf16.mxu0 0
        %503 = vmatpush1.bf16.xpose.msra.mxu0 0
        %504 = vmatprep.subr.bf16.mxu0 0
        %505 = vmatpush1.bf16.xpose.msra.mxu0 0
        %506 = vmatprep.subr.bf16.mxu0 0
        %507 = vmatpush1.bf16.xpose.msra.mxu0 0
        %508 = vmatprep.subr.bf16.mxu0 0
        %509 = vmatpush1.bf16.xpose.msra.mxu0 0
        %510 = vmatprep.subr.bf16.mxu0 0
        %511 = vmatpush1.bf16.xpose.msra.mxu0 0
        %512 = vmatprep.subr.bf16.mxu0 0
        %513 = vmatpush1.bf16.xpose.msra.mxu0 0
        %514 = vmatprep.subr.bf16.mxu0 0
        %515 = vmatpush1.bf16.xpose.msra.mxu0 0
        %516 = vmatprep.subr.bf16.mxu0 0
        %517 = vmatpush1.bf16.xpose.msra.mxu0 0
        %518 = vmatprep.subr.bf16.mxu0 0
        %519 = vmatpush1.bf16.xpose.msra.mxu0 0
        %520 = vmatprep.subr.bf16.mxu0 0
        %521 = vmatpush1.bf16.xpose.msra.mxu0 0
        %522 = vmatprep.mubr.bf16.mxu0 0
        %523 = vmatmul.mubr.bf16.gmra.mrb[0].mxu0 %v485
        %v524 = vpop.f32.mrb[0].mxu0
        %v525 = vadd.f32 0.0, %v524
        %v526 = vpop.f32.mrb[0].mxu0
        %v527 = vpop.f32.mrb[0].mxu0
        %v528 = vpop.f32.mrb[0].mxu0
        %529 = vdwg.mxu0
        %v531 = vsel %vm391, %v382, 0
        %v534 = vsel %vm391, %v386, 0
        %536 = vmatprep.subr.bf16.mxu0 0
        %537 = vmatpush1.bf16.xpose.msra.mxu0 %v534
        %538 = vmatprep.subr.bf16.mxu0 0
        %539 = vmatpush1.bf16.xpose.msra.mxu0 0
        %540 = vmatprep.subr.bf16.mxu0 0
        %541 = vmatpush1.bf16.xpose.msra.mxu0 0
        %542 = vmatprep.subr.bf16.mxu0 0
        %543 = vmatpush1.bf16.xpose.msra.mxu0 0
        %544 = vmatprep.subr.bf16.mxu0 0
        %545 = vmatpush1.bf16.xpose.msra.mxu0 0
        %546 = vmatprep.subr.bf16.mxu0 0
        %547 = vmatpush1.bf16.xpose.msra.mxu0 0
        %548 = vmatprep.subr.bf16.mxu0 0
        %549 = vmatpush1.bf16.xpose.msra.mxu0 0
        %550 = vmatprep.subr.bf16.mxu0 0
        %551 = vmatpush1.bf16.xpose.msra.mxu0 0
        %552 = vmatprep.subr.bf16.mxu0 0
        %553 = vmatpush1.bf16.xpose.msra.mxu0 0
        %554 = vmatprep.subr.bf16.mxu0 0
        %555 = vmatpush1.bf16.xpose.msra.mxu0 0
        %556 = vmatprep.subr.bf16.mxu0 0
        %557 = vmatpush1.bf16.xpose.msra.mxu0 0
        %558 = vmatprep.subr.bf16.mxu0 0
        %559 = vmatpush1.bf16.xpose.msra.mxu0 0
        %560 = vmatprep.subr.bf16.mxu0 0
        %561 = vmatpush1.bf16.xpose.msra.mxu0 0
        %562 = vmatprep.subr.bf16.mxu0 0
        %563 = vmatpush1.bf16.xpose.msra.mxu0 0
        %564 = vmatprep.subr.bf16.mxu0 0
        %565 = vmatpush1.bf16.xpose.msra.mxu0 0
        %566 = vmatprep.subr.bf16.mxu0 0
        %567 = vmatpush1.bf16.xpose.msra.mxu0 0
        %568 = vmatprep.mubr.bf16.mxu0 0
        %569 = vmatmul.mubr.bf16.gmra.mrb[0].mxu0 %v531
        %v570 = vpop.f32.mrb[0].mxu0
        %v571 = vadd.f32 0.0, %v570
        %v572 = vpop.f32.mrb[0].mxu0
        %v573 = vpop.f32.mrb[0].mxu0
        %v574 = vpop.f32.mrb[0].mxu0
        %575 = vdwg.mxu0
        %v576 = vmul.f32 %v433, 0.35355338
        %v577 = vmul.f32 %v479, 0.35355338
        %v578 = vmul.f32 %v525, 0.35355338
        %v579 = vmul.f32 %v571, 0.35355338
        %v580 = vld [vmem:[%s294] sm:$0x1]
        %v581 = vsub.f32 1.0, %v580
        %v582 = vmul.f32 %v581, -3.4028235e+38
        %s583 = smul.u32 %s33, 8
        %v584 = vlaneseq
        %v585 = vshrl.u32 %v584, 7
        %v586 = vstv %s583
        %v587 = vadd.s32 %v586, %v585
        %s588 = smul.u32 %s34, 8
        %v589 = vlaneseq
        %v590 = vand.u32 %v589, 127
        %v591 = vstv %s588
        %v592 = vadd.s32 %v591, %v590
        %vm593 = vcmp.le.s32.totalorder %v592, %v587
        %v594 = vsel %vm593, 0.0, -3.4028235e+38
        %v596 = vlaneseq
        %v597 = vshrl.u32 %v596, 7
        %v598 = vsub.s32 0, %v597
        %v599 = vrot.slane %v582, %v598
        %v601 = vadd.f32 %v599, %v594
        %v602 = vadd.f32 %v576, %v601
        %v603 = vadd.f32 %v577, %v601
        %v604 = vadd.f32 %v578, %v601
        %v605 = vadd.f32 %v579, %v601
        %v606 = vmax.f32 %v602, -3.4028235e+38
        %v607 = vmax.f32 %v603, -3.4028235e+38
        %v608 = vmax.f32 %v604, -3.4028235e+38
        %v609 = vmax.f32 %v605, -3.4028235e+38
        %v610 = vld [vmem:[#allocation2] sm:$0xff]
        %v611 = vld [vmem:[#allocation2 + $0x8] sm:$0xff]
        %v612 = vld [vmem:[#allocation2 + $0x10] sm:$0xff]
        %v613 = vld [vmem:[#allocation2 + $0x18] sm:$0xff]
        %v614 = vsel %vm391, %v606, -inf
        %615 = vmax.xlane.f32.xlu0 %v614
        %v616 = vpop.xlane.xlu0 %615
        %v617 = vsel %vm391, %v607, -inf
        %618 = vmax.xlane.f32.xlu0 %v617
        %v619 = vpop.xlane.xlu0 %618
        %v620 = vsel %vm391, %v608, -inf
        %621 = vmax.xlane.f32.xlu0 %v620
        %v622 = vpop.xlane.xlu0 %621
        %v623 = vsel %vm391, %v609, -inf
        %624 = vmax.xlane.f32.xlu0 %v623
        %v625 = vpop.xlane.xlu0 %624
        %v626 = vmax.f32 %v610, %v616
        %v627 = vmax.f32 %v611, %v619
        %v628 = vmax.f32 %v612, %v622
        %v629 = vmax.f32 %v613, %v625
        %v630 = vsub.f32 %v610, %v626
        %v631 = vsub.f32 %v611, %v627
        %v632 = vsub.f32 %v612, %v628
        %v633 = vsub.f32 %v613, %v629
        %v634 = vmul.f32 %v630, 1.442695
        %v635 = vpow.pop %v634
        %v636 = vmul.f32 %v631, 1.442695
        %v637 = vpow.pop %v636
        %v638 = vmul.f32 %v632, 1.442695
        %v639 = vpow.pop %v638
        %v640 = vmul.f32 %v633, 1.442695
        %v641 = vpow.pop %v640
        %643 = vset.pattern.permute.xlu0 0
        %644 = vperm.xlu0 %643, %v626
        %v645 = vpop.permute.xlu0 %644
        %648 = vset.pattern.permute.xlu0 0
        %649 = vperm.xlu0 %648, %v627
        %v650 = vpop.permute.xlu0 %649
        %653 = vset.pattern.permute.xlu0 0
        %654 = vperm.xlu0 %653, %v628
        %v655 = vpop.permute.xlu0 %654
        %658 = vset.pattern.permute.xlu0 0
        %659 = vperm.xlu0 %658, %v629
        %v660 = vpop.permute.xlu0 %659
        %v662 = vsub.f32 %v606, %v645
        %v663 = vsub.f32 %v607, %v650
        %v664 = vsub.f32 %v608, %v655
        %v665 = vsub.f32 %v609, %v660
        %v666 = vmul.f32 %v662, 1.442695
        %v667 = vpow.pop %v666
        %v668 = vmul.f32 %v663, 1.442695
        %v669 = vpow.pop %v668
        %v670 = vmul.f32 %v664, 1.442695
        %v671 = vpow.pop %v670
        %v672 = vmul.f32 %v665, 1.442695
        %v673 = vpow.pop %v672
        %v674 = vld [vmem:[#allocation3] sm:$0xff]
        %v675 = vld [vmem:[#allocation3 + $0x8] sm:$0xff]
        %v676 = vld [vmem:[#allocation3 + $0x10] sm:$0xff]
        %v677 = vld [vmem:[#allocation3 + $0x18] sm:$0xff]
        %v678 = vmul.f32 %v635, %v674
        %v679 = vmul.f32 %v637, %v675
        %v680 = vmul.f32 %v639, %v676
        %v681 = vmul.f32 %v641, %v677
        %v682 = vsel %vm391, %v667, 0.0
        %683 = vadd.xlane.f32.xlu0 %v682
        %v684 = vpop.xlane.xlu0 %683
        %v685 = vsel %vm391, %v669, 0.0
        %686 = vadd.xlane.f32.xlu0 %v685
        %v687 = vpop.xlane.xlu0 %686
        %v688 = vsel %vm391, %v671, 0.0
        %689 = vadd.xlane.f32.xlu0 %v688
        %v690 = vpop.xlane.xlu0 %689
        %v691 = vsel %vm391, %v673, 0.0
        %692 = vadd.xlane.f32.xlu0 %v691
        %v693 = vpop.xlane.xlu0 %692
        %v694 = vadd.f32 %v678, %v684
        %v695 = vadd.f32 %v679, %v687
        %v696 = vadd.f32 %v680, %v690
        %v697 = vadd.f32 %v681, %v693
        %vm698 = vcmask 7168
        %699 = vst.msk [vmem:[#allocation3] sm:$0xff] %vm698, %v694
        %700 = vst.msk [vmem:[#allocation3 + $0x8] sm:$0xff] %vm698, %v695
        %701 = vst.msk [vmem:[#allocation3 + $0x10] sm:$0xff] %vm698, %v696
        %702 = vst.msk [vmem:[#allocation3 + $0x18] sm:$0xff] %vm698, %v697
        %v703 = vld [vmem:[#allocation4] sm:$0xff]
        %v704 = vld [vmem:[#allocation4 + $0x8] sm:$0xff]
        %v705 = vld [vmem:[#allocation4 + $0x10] sm:$0xff]
        %v706 = vld [vmem:[#allocation4 + $0x18] sm:$0xff]
        %708 = vset.pattern.permute.xlu0 0
        %709 = vperm.xlu0 %708, %v635
        %v710 = vpop.permute.xlu0 %709
        %713 = vset.pattern.permute.xlu0 0
        %714 = vperm.xlu0 %713, %v637
        %v715 = vpop.permute.xlu0 %714
        %718 = vset.pattern.permute.xlu0 0
        %719 = vperm.xlu0 %718, %v639
        %v720 = vpop.permute.xlu0 %719
        %723 = vset.pattern.permute.xlu0 0
        %724 = vperm.xlu0 %723, %v641
        %v725 = vpop.permute.xlu0 %724
        %v727 = vmul.f32 %v710, %v703
        %v728 = vmul.f32 %v715, %v704
        %v729 = vmul.f32 %v720, %v705
        %v730 = vmul.f32 %v725, %v706
        %v731 = vpack.c.bf16 %v667, %v667
        %v732 = vpack.c.bf16 %v669, %v669
        %v733 = vpack.c.bf16 %v671, %v671
        %v734 = vpack.c.bf16 %v673, %v673
        %v736 = vsel %vm391, %v731, 0
        %vm738 = vcmask 1043456
        %v740 = vsel %vm738, %v387, 0
        %742 = vmatprep.subr.bf16.mxu0 0
        %743 = vmatpush1.bf16.msra.mxu0 %v740
        %744 = vmatprep.subr.bf16.mxu0 0
        %745 = vmatpush1.bf16.msra.mxu0 0
        %746 = vmatprep.subr.bf16.mxu0 0
        %747 = vmatpush1.bf16.msra.mxu0 0
        %748 = vmatprep.subr.bf16.mxu0 0
        %749 = vmatpush1.bf16.msra.mxu0 0
        %750 = vmatprep.subr.bf16.mxu0 0
        %751 = vmatpush1.bf16.msra.mxu0 0
        %752 = vmatprep.subr.bf16.mxu0 0
        %753 = vmatpush1.bf16.msra.mxu0 0
        %754 = vmatprep.subr.bf16.mxu0 0
        %755 = vmatpush1.bf16.msra.mxu0 0
        %756 = vmatprep.subr.bf16.mxu0 0
        %757 = vmatpush1.bf16.msra.mxu0 0
        %758 = vmatprep.subr.bf16.mxu0 0
        %759 = vmatpush1.bf16.msra.mxu0 0
        %760 = vmatprep.subr.bf16.mxu0 0
        %761 = vmatpush1.bf16.msra.mxu0 0
        %762 = vmatprep.subr.bf16.mxu0 0
        %763 = vmatpush1.bf16.msra.mxu0 0
        %764 = vmatprep.subr.bf16.mxu0 0
        %765 = vmatpush1.bf16.msra.mxu0 0
        %766 = vmatprep.subr.bf16.mxu0 0
        %767 = vmatpush1.bf16.msra.mxu0 0
        %768 = vmatprep.subr.bf16.mxu0 0
        %769 = vmatpush1.bf16.msra.mxu0 0
        %770 = vmatprep.subr.bf16.mxu0 0
        %771 = vmatpush1.bf16.msra.mxu0 0
        %772 = vmatprep.subr.bf16.mxu0 0
        %773 = vmatpush1.bf16.msra.mxu0 0
        %774 = vmatprep.mubr.bf16.mxu0 0
        %775 = vmatmul.mubr.bf16.gmra.mrb[0].mxu0 %v736
        %v776 = vpop.f32.mrb[0].mxu0
        %v777 = vadd.f32 0.0, %v776
        %v778 = vpop.f32.mrb[0].mxu0
        %v779 = vpop.f32.mrb[0].mxu0
        %v780 = vpop.f32.mrb[0].mxu0
        %781 = vdwg.mxu0
        %v783 = vsel %vm391, %v732, 0
        %v786 = vsel %vm738, %v388, 0
        %788 = vmatprep.subr.bf16.mxu0 0
        %789 = vmatpush1.bf16.msra.mxu0 %v786
        %790 = vmatprep.subr.bf16.mxu0 0
        %791 = vmatpush1.bf16.msra.mxu0 0
        %792 = vmatprep.subr.bf16.mxu0 0
        %793 = vmatpush1.bf16.msra.mxu0 0
        %794 = vmatprep.subr.bf16.mxu0 0
        %795 = vmatpush1.bf16.msra.mxu0 0
        %796 = vmatprep.subr.bf16.mxu0 0
        %797 = vmatpush1.bf16.msra.mxu0 0
        %798 = vmatprep.subr.bf16.mxu0 0
        %799 = vmatpush1.bf16.msra.mxu0 0
        %800 = vmatprep.subr.bf16.mxu0 0
        %801 = vmatpush1.bf16.msra.mxu0 0
        %802 = vmatprep.subr.bf16.mxu0 0
        %803 = vmatpush1.bf16.msra.mxu0 0
        %804 = vmatprep.subr.bf16.mxu0 0
        %805 = vmatpush1.bf16.msra.mxu0 0
        %806 = vmatprep.subr.bf16.mxu0 0
        %807 = vmatpush1.bf16.msra.mxu0 0
        %808 = vmatprep.subr.bf16.mxu0 0
        %809 = vmatpush1.bf16.msra.mxu0 0
        %810 = vmatprep.subr.bf16.mxu0 0
        %811 = vmatpush1.bf16.msra.mxu0 0
        %812 = vmatprep.subr.bf16.mxu0 0
        %813 = vmatpush1.bf16.msra.mxu0 0
        %814 = vmatprep.subr.bf16.mxu0 0
        %815 = vmatpush1.bf16.msra.mxu0 0
        %816 = vmatprep.subr.bf16.mxu0 0
        %817 = vmatpush1.bf16.msra.mxu0 0
        %818 = vmatprep.subr.bf16.mxu0 0
        %819 = vmatpush1.bf16.msra.mxu0 0
        %820 = vmatprep.mubr.bf16.mxu0 0
        %821 = vmatmul.mubr.bf16.gmra.mrb[0].mxu0 %v783
        %v822 = vpop.f32.mrb[0].mxu0
        %v823 = vadd.f32 0.0, %v822
        %v824 = vpop.f32.mrb[0].mxu0
        %v825 = vpop.f32.mrb[0].mxu0
        %v826 = vpop.f32.mrb[0].mxu0
        %827 = vdwg.mxu0
        %v829 = vsel %vm391, %v733, 0
        %v832 = vsel %vm738, %v389, 0
        %834 = vmatprep.subr.bf16.mxu0 0
        %835 = vmatpush1.bf16.msra.mxu0 %v832
        %836 = vmatprep.subr.bf16.mxu0 0
        %837 = vmatpush1.bf16.msra.mxu0 0
        %838 = vmatprep.subr.bf16.mxu0 0
        %839 = vmatpush1.bf16.msra.mxu0 0
        %840 = vmatprep.subr.bf16.mxu0 0
        %841 = vmatpush1.bf16.msra.mxu0 0
        %842 = vmatprep.subr.bf16.mxu0 0
        %843 = vmatpush1.bf16.msra.mxu0 0
        %844 = vmatprep.subr.bf16.mxu0 0
        %845 = vmatpush1.bf16.msra.mxu0 0
        %846 = vmatprep.subr.bf16.mxu0 0
        %847 = vmatpush1.bf16.msra.mxu0 0
        %848 = vmatprep.subr.bf16.mxu0 0
        %849 = vmatpush1.bf16.msra.mxu0 0
        %850 = vmatprep.subr.bf16.mxu0 0
        %851 = vmatpush1.bf16.msra.mxu0 0
        %852 = vmatprep.subr.bf16.mxu0 0
        %853 = vmatpush1.bf16.msra.mxu0 0
        %854 = vmatprep.subr.bf16.mxu0 0
        %855 = vmatpush1.bf16.msra.mxu0 0
        %856 = vmatprep.subr.bf16.mxu0 0
        %857 = vmatpush1.bf16.msra.mxu0 0
        %858 = vmatprep.subr.bf16.mxu0 0
        %859 = vmatpush1.bf16.msra.mxu0 0
        %860 = vmatprep.subr.bf16.mxu0 0
        %861 = vmatpush1.bf16.msra.mxu0 0
        %862 = vmatprep.subr.bf16.mxu0 0
        %863 = vmatpush1.bf16.msra.mxu0 0
        %864 = vmatprep.subr.bf16.mxu0 0
        %865 = vmatpush1.bf16.msra.mxu0 0
        %866 = vmatprep.mubr.bf16.mxu0 0
        %867 = vmatmul.mubr.bf16.gmra.mrb[0].mxu0 %v829
        %v868 = vpop.f32.mrb[0].mxu0
        %v869 = vadd.f32 0.0, %v868
        %v870 = vpop.f32.mrb[0].mxu0
        %v871 = vpop.f32.mrb[0].mxu0
        %v872 = vpop.f32.mrb[0].mxu0
        %873 = vdwg.mxu0
        %v875 = vsel %vm391, %v734, 0
        %v878 = vsel %vm738, %v390, 0
        %880 = vmatprep.subr.bf16.mxu0 0
        %881 = vmatpush1.bf16.msra.mxu0 %v878
        %882 = vmatprep.subr.bf16.mxu0 0
        %883 = vmatpush1.bf16.msra.mxu0 0
        %884 = vmatprep.subr.bf16.mxu0 0
        %885 = vmatpush1.bf16.msra.mxu0 0
        %886 = vmatprep.subr.bf16.mxu0 0
        %887 = vmatpush1.bf16.msra.mxu0 0
        %888 = vmatprep.subr.bf16.mxu0 0
        %889 = vmatpush1.bf16.msra.mxu0 0
        %890 = vmatprep.subr.bf16.mxu0 0
        %891 = vmatpush1.bf16.msra.mxu0 0
        %892 = vmatprep.subr.bf16.mxu0 0
        %893 = vmatpush1.bf16.msra.mxu0 0
        %894 = vmatprep.subr.bf16.mxu0 0
        %895 = vmatpush1.bf16.msra.mxu0 0
        %896 = vmatprep.subr.bf16.mxu0 0
        %897 = vmatpush1.bf16.msra.mxu0 0
        %898 = vmatprep.subr.bf16.mxu0 0
        %899 = vmatpush1.bf16.msra.mxu0 0
        %900 = vmatprep.subr.bf16.mxu0 0
        %901 = vmatpush1.bf16.msra.mxu0 0
        %902 = vmatprep.subr.bf16.mxu0 0
        %903 = vmatpush1.bf16.msra.mxu0 0
        %904 = vmatprep.subr.bf16.mxu0 0
        %905 = vmatpush1.bf16.msra.mxu0 0
        %906 = vmatprep.subr.bf16.mxu0 0
        %907 = vmatpush1.bf16.msra.mxu0 0
        %908 = vmatprep.subr.bf16.mxu0 0
        %909 = vmatpush1.bf16.msra.mxu0 0
        %910 = vmatprep.subr.bf16.mxu0 0
        %911 = vmatpush1.bf16.msra.mxu0 0
        %912 = vmatprep.mubr.bf16.mxu0 0
        %913 = vmatmul.mubr.bf16.gmra.mrb[0].mxu0 %v875
        %v914 = vpop.f32.mrb[0].mxu0
        %v915 = vadd.f32 0.0, %v914
        %v916 = vpop.f32.mrb[0].mxu0
        %v917 = vpop.f32.mrb[0].mxu0
        %v918 = vpop.f32.mrb[0].mxu0
        %919 = vdwg.mxu0
        %v920 = vadd.f32 %v727, %v777
        %v921 = vadd.f32 %v728, %v823
        %v922 = vadd.f32 %v729, %v869
        %v923 = vadd.f32 %v730, %v915
        %924 = vst.msk [vmem:[#allocation4] sm:$0xff] %vm391, %v920
        %925 = vst.msk [vmem:[#allocation4 + $0x8] sm:$0xff] %vm391, %v921
        %926 = vst.msk [vmem:[#allocation4 + $0x10] sm:$0xff] %vm391, %v922
        %927 = vst.msk [vmem:[#allocation4 + $0x18] sm:$0xff] %vm391, %v923
        %928 = vst.msk [vmem:[#allocation2] sm:$0xff] %vm698, %v626
        %929 = vst.msk [vmem:[#allocation2 + $0x8] sm:$0xff] %vm698, %v627
        %930 = vst.msk [vmem:[#allocation2 + $0x10] sm:$0xff] %vm698, %v628
        %931 = vst.msk [vmem:[#allocation2 + $0x18] sm:$0xff] %vm698, %v629
        // Predicated region
        $region57: #{t5_forward.40} parent=35 // pred_check
          %p932 = pneg %p361
        $region58: #{t5_forward.40} parent=35 // pred_check_branch
          %934 = sbr.rel (%p932) target = $region60
        $region59: #{t5_forward.40} parent=35 // pred_region
          %v935 = vld [vmem:[#allocation4] sm:$0xff]
          %v936 = vld [vmem:[#allocation4 + $0x8] sm:$0xff]
          %v937 = vld [vmem:[#allocation4 + $0x10] sm:$0xff]
          %v938 = vld [vmem:[#allocation4 + $0x18] sm:$0xff]
          %v939 = vld [vmem:[#allocation3] sm:$0xff]
          %v940 = vld [vmem:[#allocation3 + $0x8] sm:$0xff]
          %v941 = vld [vmem:[#allocation3 + $0x10] sm:$0xff]
          %v942 = vld [vmem:[#allocation3 + $0x18] sm:$0xff]
          %v943 = vrcp.pop %v939
          %v944 = vrcp.pop %v940
          %v945 = vrcp.pop %v941
          %v946 = vrcp.pop %v942
          %948 = vset.pattern.permute.xlu0 0
          %949 = vperm.xlu0 %948, %v943
          %v950 = vpop.permute.xlu0 %949
          %953 = vset.pattern.permute.xlu0 0
          %954 = vperm.xlu0 %953, %v944
          %v955 = vpop.permute.xlu0 %954
          %958 = vset.pattern.permute.xlu0 0
          %959 = vperm.xlu0 %958, %v945
          %v960 = vpop.permute.xlu0 %959
          %963 = vset.pattern.permute.xlu0 0
          %964 = vperm.xlu0 %963, %v946
          %v965 = vpop.permute.xlu0 %964
          %v967 = vmul.f32 %v935, %v950
          %v968 = vmul.f32 %v936, %v955
          %v969 = vmul.f32 %v937, %v960
          %v970 = vmul.f32 %v938, %v965
          %v971 = vpack.c.bf16 %v967, %v967
          %v972 = vpack.c.bf16 %v968, %v968
          %v973 = vpack.c.bf16 %v969, %v969
          %v974 = vpack.c.bf16 %v970, %v970
          %vm975 = vcmask 60416
          %976 = vst.msk [vmem:[%s359] sm:$0xf] %vm975, %v971
          %977 = vst.msk [vmem:[%s359 + $0x4] sm:$0xf] %vm975, %v972
          %978 = vst.msk [vmem:[%s359 + $0x8] sm:$0xf] %vm975, %v973
          %979 = vst.msk [vmem:[%s359 + $0xc] sm:$0xf] %vm975, %v974
        $region60: #{t5_forward.40} parent=35 // pred_fallthru
          _
        %s980 = sand.u32 %s168, 1
        %s981 = scalar_lea.sflag [#allocation7], %s980
        %s982 = sand.u32 %s168, 1
        %s983 = smul.addr %s982, 16
        %s984 = scalar_lea.vmem [#allocation13], %s983
        // Predicated region
        $region61: #{t5_forward.40} parent=35 // pred_check
          %p985 = pneg %p178
        $region62: #{t5_forward.40} parent=35 // pred_check_branch
          %987 = sbr.rel (%p985) target = $region64
        $region63: #{t5_forward.40} parent=35 // pred_region
          %s989 = ssub.s32 256, 256
          %990 = vsyncadd %s981, %s989
          %s991 = smul.addr %s32, 4
          %s992 = sadd.s32 %s33, %s991
          %s993 = smul.addr %s992, 64
          %s994 = scalar_lea.hbm %s4, %s993
          %s995 = sshll.u32 %s984, 4
          %s996 = int_to_ptr.vmem [resolvable:$true] %s995
          %1001 = dma.vmem_to_hbm [thread:$0]  %s996, 256, %s994, %s981, 64, 64, 4
        $region64: #{t5_forward.40} parent=35 // pred_fallthru
          _
      $region36: #{t5_forward.40} parent=5 // pred_fallthru
        _
      %p1002 = scmp.le.s32.totalorder 2, %s22
      // Predicated region
      $region65: #{t5_forward.40} parent=5 // pred_check
        %p1003 = pneg %p1002
      $region66: #{t5_forward.40} parent=5 // pred_check_branch
        %1005 = sbr.rel (%p1003) target = $region68
      $region67: #{t5_forward.40} parent=5 // pred_region
        %s1006 = ssub.s32 %s22, 2
        // Predicated region
        $region69: #{t5_forward.40} parent=67 // pred_check
          %p1007 = pneg %p184
        $region70: #{t5_forward.40} parent=67 // pred_check_branch
          %1009 = sbr.rel (%p1007) target = $region72
        $region71: #{t5_forward.40} parent=67 // pred_region
          %s1010 = sand.u32 %s169, 1
          %s1011 = scalar_lea.sflag [#allocation7], %s1010
          %s1012 = sand.u32 %s169, 1
          %s1013 = smul.addr %s1012, 16
          %s1014 = scalar_lea.vmem [#allocation13], %s1013
          %1015 = dma.done %s1011, 256
        $region72: #{t5_forward.40} parent=67 // pred_fallthru
          _
      $region68: #{t5_forward.40} parent=5 // pred_fallthru
        _
    $region6: #{t5_forward.40} parent=1 // loop_footer
      %s26 = sadd.s32 1, %s22
    $region7: #{t5_forward.40} parent=1 // loop_footer_branch
      %21 = sbr.rel target = $region3
    $region8: #{t5_forward.40} parent=1 // loop_exit
      _
    %1016 = vsyncpa [#allocation6], 1
    %s1017 = scalar_lea.sflag [#allocation6], 1
    %1018 = vsyncpa %s1017, 1
    %1019 = vsyncpa [#allocation9], 1
    %s1020 = scalar_lea.sflag [#allocation9], 1
    %1021 = vsyncpa %s1020, 1
    %1022 = vsyncpa [#allocation12], 1
    %s1023 = scalar_lea.sflag [#allocation12], 1
    %1024 = vsyncpa %s1023, 1
    %1025 = vsyncpa [#allocation7], 1
    %s1026 = scalar_lea.sflag [#allocation7], 1
    %1027 = vsyncpa %s1026, 1

// kernel: t5_forward.57
$region0: #{t5_forward.57}
  #allocation0 [shape = 'u32[]', space=smem, size = 0x4, offset = 0x4, fixed_abs, tag = 'smem constant byte address 0x4 - core index']
  #allocation1 [shape = 'u32[144,128]{1,0:T(1,128)}', space=vmem, size = 0x12000, scoped, tag = 'internal scratch']
  %s0 = inlined_call_operand.hbm [shape: bf16[16,32], index: 0, kind: input, shape index: {}]
  %s1 = inlined_call_operand.hbm [shape: f32[1,32], index: 1, kind: input, shape index: {}]
  %s2 = inlined_call_operand.hbm [shape: f32[16,32], index: 2, kind: output, shape index: {}]
  %s3 = sld [smem:[#allocation0]]
  $region26: #{t5_forward.57} parent=0
    _
  %s5 = ssub.s32 1, %s3
  %s6 = scalar_select 0, %s5, %s3
  $region1: #{t5_forward.57} parent=0
    #allocation2 [shape = 'u8[4096]{0}', space=vmem, size = 0x1000, scoped, tag = 'input window, operand 0, single buffered']
    #allocation3 [shape = 's32[1]{0}', space=sflag, size = 0x4, scoped, tag = 'scoped memory for t5_forward.57']
    #allocation4 [shape = 's32[1]{0}', space=sflag, size = 0x4, scoped, tag = 'scoped memory for t5_forward.57']
    #allocation5 [shape = 'u8[512]{0}', space=vmem, size = 0x400, scoped, tag = 'input window, operand 1, single buffered']
    #allocation6 [shape = 's32[1]{0}', space=sflag, size = 0x4, scoped, tag = 'scoped memory for t5_forward.57']
    #allocation7 [shape = 'u8[8192]{0}', space=vmem, size = 0x2000, scoped, tag = 'output window, operand 0, single buffered']
    %7 = vsyncpa [#allocation3], 0
    %8 = vsyncpa [#allocation6], 0
    %9 = vsyncpa [#allocation4], 0
    // Predicated region
    $region2: #{t5_forward.57} parent=1 // pred_check
      _
    $region3: #{t5_forward.57} parent=1 // pred_check_branch
      %11 = sbr.rel (0) target = $region5
    $region4: #{t5_forward.57} parent=1 // pred_region
      %s13 = ssub.s32 128, 128
      %14 = vsyncadd [#allocation3], %s13
      %s15 = sshll.u32 [#allocation2], 4
      %s16 = int_to_ptr.vmem [resolvable:$true] %s15
      %21 = dma.hbm_to_vmem [thread:$0]  %s0, 128, %s16, [#allocation3], 64, 64, 4
    $region5: #{t5_forward.57} parent=1 // pred_fallthru
      _
    // Predicated region
    $region6: #{t5_forward.57} parent=1 // pred_check
      _
    $region7: #{t5_forward.57} parent=1 // pred_check_branch
      %23 = sbr.rel (0) target = $region9
    $region8: #{t5_forward.57} parent=1 // pred_region
      %s25 = ssub.s32 16, 16
      %26 = vsyncadd [#allocation6], %s25
      %s28 = sshll.u32 [#allocation5], 4
      %s29 = int_to_ptr.vmem [resolvable:$true] %s28
      %31 = dma.hbm_to_vmem [thread:$0]  %s1, 16, %s29, [#allocation6]
    $region9: #{t5_forward.57} parent=1 // pred_fallthru
      _
    // Predicated region
    $region10: #{t5_forward.57} parent=1 // pred_check
      _
    $region11: #{t5_forward.57} parent=1 // pred_check_branch
      %33 = sbr.rel (0) target = $region13
    $region12: #{t5_forward.57} parent=1 // pred_region
      %34 = dma.done [#allocation3], 128
    $region13: #{t5_forward.57} parent=1 // pred_fallthru
      _
    // Predicated region
    $region14: #{t5_forward.57} parent=1 // pred_check
      _
    $region15: #{t5_forward.57} parent=1 // pred_check_branch
      %36 = sbr.rel (0) target = $region17
    $region16: #{t5_forward.57} parent=1 // pred_region
      %37 = dma.done [#allocation6], 16
    $region17: #{t5_forward.57} parent=1 // pred_fallthru
      _
    %v38 = vld [vmem:[#allocation2] sm:$0xf]
    %v39 = vld [vmem:[#allocation2 + $0x4] sm:$0xf]
    %v40 = vunpack.c.l.bf16 %v38
    %v41 = vunpack.c.l.bf16 %v39
    %v42 = vmul.f32 %v40, %v40
    %v43 = vmul.f32 %v41, %v41
    %vm44 = vcmask 261120
    %v45 = vsel %vm44, %v42, 0.0
    %46 = vadd.xlane.f32.xlu0 %v45
    %v47 = vpop.xlane.xlu0 %46
    %v48 = vsel %vm44, %v43, 0.0
    %49 = vadd.xlane.f32.xlu0 %v48
    %v50 = vpop.xlane.xlu0 %49
    %v51 = vmul.f32 %v47, 0.03125
    %v52 = vmul.f32 %v50, 0.03125
    %v53 = vadd.f32 %v51, 1e-06
    %v54 = vadd.f32 %v52, 1e-06
    %v55 = vrsqrt.pop %v53
    %v56 = vrsqrt.pop %v54
    %v57 = vmul.f32 %v40, %v55
    %v58 = vmul.f32 %v41, %v56
    %v59 = vld [vmem:[#allocation5] sm:$0x1]
    %v61 = vlaneseq
    %v62 = vshrl.u32 %v61, 7
    %v63 = vsub.s32 0, %v62
    %v64 = vrot.slane %v59, %v63
    %v66 = vmul.f32 %v57, %v64
    %v67 = vmul.f32 %v58, %v64
    %68 = vst.msk [vmem:[#allocation7] sm:$0xff] %vm44, %v66
    %69 = vst.msk [vmem:[#allocation7 + $0x8] sm:$0xff] %vm44, %v67
    // Predicated region
    $region18: #{t5_forward.57} parent=1 // pred_check
      _
    $region19: #{t5_forward.57} parent=1 // pred_check_branch
      %71 = sbr.rel (0) target = $region21
    $region20: #{t5_forward.57} parent=1 // pred_region
      %s73 = ssub.s32 256, 256
      %74 = vsyncadd [#allocation4], %s73
      %s75 = sshll.u32 [#allocation7], 4
      %s76 = int_to_ptr.vmem [resolvable:$true] %s75
      %81 = dma.vmem_to_hbm [thread:$0]  %s76, 256, %s2, [#allocation4], 128, 128, 8
    $region21: #{t5_forward.57} parent=1 // pred_fallthru
      _
    // Predicated region
    $region22: #{t5_forward.57} parent=1 // pred_check
      _
    $region23: #{t5_forward.57} parent=1 // pred_check_branch
      %83 = sbr.rel (0) target = $region25
    $region24: #{t5_forward.57} parent=1 // pred_region
      %84 = dma.done [#allocation4], 256
    $region25: #{t5_forward.57} parent=1 // pred_fallthru
      _
    %85 = vsyncpa [#allocation3], 1
    %86 = vsyncpa [#allocation6], 1
    %87 = vsyncpa [#allocation4], 1

</llo_original>
